<compile_context>
chip_gen: v7x
topology: tpu7x:2x2x1
jax: 0.10.0
libtpu: 0.0.40
codegen_flags: <defaults>
</compile_context>

<pallas_src>
import functools

import jax
import jax.numpy as jnp
import numpy as np
from jax.experimental import pallas as pl
from jax.experimental.pallas import tpu as pltpu


def _sigmoid(v):
    # numerically-safe sigmoid on the EUP (tanh), no exp overflow for large |v|
    return 0.5 * (jnp.tanh(0.5 * v) + 1.0)


# ----------------------------------------------------------------------------
# The fused kernel: one grid step handles Bt images.
# ----------------------------------------------------------------------------
def _dy_dense_kernel(x_ref, cc_ref, m1w1_ref, m1w2_ref, m2w1_ref, m2w2_ref,
                     w1_ref, w2h_ref, tap_ref, out_ref, mask_ref, copy_sem,
                     *, spatial_w):
    f32 = jnp.float32
    bf16 = jnp.bfloat16
    bt, cin, hw = x_ref.shape
    hidden = w1_ref.shape[0]
    squeeze = m1w1_ref.shape[0]
    hh = m2w2_ref.shape[0]
    heads, ninegph, _ = w2h_ref.shape
    gph = ninegph // 9

    # Dense-concat passthrough of the raw input as a VMEM->VMEM DMA: rides the
    # DMA engine and overlaps the compute below (no vld/vst slot pressure).
    passthru = pltpu.make_async_copy(x_ref, out_ref.at[:, :cin, :], copy_sem)
    passthru.start()

    # ---- unpack the packed per-channel column constants (single operand) ----
    cc = cc_ref[...]
    off = 0

    def _take(n):
        nonlocal off
        v = cc[off:off + n, :]
        off += n
        return v

    bn1_s = _take(cin)
    bn1_b = _take(cin)
    bn2_s = _take(hidden)
    bn2_b = _take(hidden)
    m1b1 = _take(squeeze)
    m1b2 = _take(cin)
    m2b1 = _take(squeeze)
    m2b2 = _take(hh)

    m1w1 = m1w1_ref[...]
    m1w2 = m1w2_ref[...]
    m2w1 = m2w1_ref[...]
    m2w2 = m2w2_ref[...]
    w1 = w1_ref[...]                         # (hidden, Cin)  bf16
    tap = tap_ref[...]                       # (9, HW)        f32 boundary masks

    # Static per-image loop: amortizes grid-step overhead / weight revisits
    # over Bt images while keeping every matmul a plain 2-D MXU dot.
    for b in range(bt):
        x = x_ref[b]                                            # (Cin, HW)

        # ---- BN1 + ReLU (folded scale/shift columns) ----
        xa = jnp.maximum(x * bn1_s + bn1_b, 0.0)

        # ---- global average pool over the spatial (lane) axis ----
        pool = jnp.mean(xa, axis=1, keepdims=True)              # (Cin, 1)

        # ---- MaskGen1 / MaskGen2: tiny squeeze->expand MLPs (f32) ----
        # TODO(synk): MaskGen was not provided with the module; synthesized as
        # fc-squeeze -> ReLU -> fc-expand -> sigmoid gate.
        h1 = jnp.maximum(jnp.dot(m1w1, pool, preferred_element_type=f32) + m1b1, 0.0)
        mask1 = _sigmoid(jnp.dot(m1w2, h1, preferred_element_type=f32) + m1b2)  # (Cin, 1)
        h2 = jnp.maximum(jnp.dot(m2w1, pool, preferred_element_type=f32) + m2b1, 0.0)
        mask2 = _sigmoid(jnp.dot(m2w2, h2, preferred_element_type=f32) + m2b2)  # (hh, 1)
        mask_ref[b, :cin, :] = mask1
        mask_ref[b, cin:, :] = mask2

        # ---- mask1 gate + 1x1 conv on the MXU (bf16 operands, f32 acc) ----
        xam = (xa * mask1).astype(bf16)
        y = jnp.dot(w1, xam, preferred_element_type=f32)        # (hidden, HW)
        y = jnp.maximum(y * bn2_s + bn2_b, 0.0)                 # BN2 + ReLU

        # ---- grouped 3x3 conv: static head loop gates y with the per-head
        # mask2 slice (replaces the old qsel/rfold selector matmul), one
        # tap-major MXU matmul per head, taps combined with lane rolls +
        # zero-padding boundary masks.
        for g in range(heads):
            yg = (y * mask2[g * hidden:(g + 1) * hidden, :]).astype(bf16)
            zg = jnp.dot(w2h_ref[g], yg, preferred_element_type=f32)   # (9*gph, HW)
            accg = jnp.zeros((gph, hw), f32)
            for k in range(9):                                   # static unroll
                dy, dx = k // 3, k % 3
                delta = (dy - 1) * spatial_w + (dx - 1)          # flat tap shift
                t = zg[k * gph:(k + 1) * gph, :]
                if delta != 0:
                    t = pltpu.roll(t, (-delta) % hw, axis=1) * tap[k:k + 1, :]
                accg = accg + t
            out_ref[b, cin + g * gph:cin + (g + 1) * gph, :] = accg

    passthru.wait()


# ----------------------------------------------------------------------------
# Shape-derived constants / helpers.
# ----------------------------------------------------------------------------
def _conv_tapmask(H, W):
    # validity of each of the 9 taps at every flat spatial position (zero pad)
    ii, jj = np.meshgrid(np.arange(H), np.arange(W), indexing="ij")
    masks = []
    for k in range(9):
        dy, dx = k // 3, k % 3
        valid = ((ii + dy - 1 >= 0) & (ii + dy - 1 < H) &
                 (jj + dx - 1 >= 0) & (jj + dx - 1 < W))
        masks.append(valid.reshape(-1))
    return np.stack(masks, 0).astype(np.float32)                 # (9, H*W)


def get_others(mask1, mask2, others, flops_dgc1, flops_dgc2):
    flops_dgc_, bonus_ = others
    f1 = jnp.mean(mask1) * flops_dgc1
    f2 = jnp.mean(mask2) * flops_dgc2
    mask2_d = jax.lax.stop_gradient(mask2)
    heads = mask2_d.shape[1]
    mask_bonus = 1.0 - mask2_d[:, 0, :]
    for i in range(heads):   # NOTE: head 0 applied twice -- faithful to the PyTorch reference
        mask_bonus = mask_bonus * (1.0 - mask2_d[:, i, :])
    bonus = jnp.mean(mask_bonus) * jax.lax.stop_gradient(f1)
    return flops_dgc_ + f1 + f2, bonus_ + bonus


# ----------------------------------------------------------------------------
# Wrapper: one pallas_call per forward; get_others bookkeeping stays in JAX.
# ----------------------------------------------------------------------------
def dy_dense_layer_forward(x_nchw, others, params, *, heads, batch_tile=None):
    B, Cin, H, W = x_nchw.shape
    HW = H * W
    hidden = params["w1"].shape[0]
    growth = params["w2"].shape[0]
    squeeze = params["mg1_w1"].shape[0]
    hh = heads * hidden
    assert growth % heads == 0
    gph = growth // heads

    if batch_tile is None:
        batch_tile = next(bt for bt in range(min(B, 4), 0, -1) if B % bt == 0)
    bt = batch_tile
    assert B % bt == 0

    x_flat = x_nchw.reshape(B, Cin, HW).astype(jnp.float32)      # free reshape

    # head-major / tap-major 3x3 weight slabs (bf16 MXU operand):
    #   w2h[g, k*gph + j, c] = w2[g*gph + j, c, dy(k), dx(k)]
    w2_t = jnp.transpose(jnp.asarray(params["w2"], jnp.float32),
                         (2, 3, 0, 1)).reshape(9, growth, hidden)
    w2h = (w2_t.reshape(9, heads, gph, hidden)
           .transpose(1, 0, 2, 3)
           .reshape(heads, 9 * gph, hidden)).astype(jnp.bfloat16)
    w1_bf = jnp.asarray(params["w1"], jnp.float32).astype(jnp.bfloat16)

    # one packed column operand for all tiny per-channel constants
    flat = lambda v: jnp.asarray(v, jnp.float32).reshape(-1)
    cc = jnp.concatenate([flat(params["bn1_scale"]), flat(params["bn1_shift"]),
                          flat(params["bn2_scale"]), flat(params["bn2_shift"]),
                          flat(params["mg1_b1"]), flat(params["mg1_b2"]),
                          flat(params["mg2_b1"]), flat(params["mg2_b2"])]).reshape(-1, 1)
    CL = cc.shape[0]

    tapmask = jnp.asarray(_conv_tapmask(H, W))

    const2 = lambda b: (0, 0)
    const3 = lambda b: (0, 0, 0)

    out_flat, maskcol = pl.pallas_call(
        functools.partial(_dy_dense_kernel, spatial_w=W),
        out_shape=(jax.ShapeDtypeStruct((B, Cin + growth, HW), jnp.float32),
                   jax.ShapeDtypeStruct((B, Cin + hh, 1), jnp.float32)),
        # TODO(synk): at production H/W (56+) add a spatial-tile grid axis and
        # re-size Bt so 2x(input+output block)+weights fits v7x's 64 MiB VMEM.
        grid=(B // bt,),
        in_specs=[
            pl.BlockSpec((bt, Cin, HW), lambda b: (b, 0, 0)),
            pl.BlockSpec((CL, 1), const2),
            pl.BlockSpec((squeeze, Cin), const2),
            pl.BlockSpec((Cin, squeeze), const2),
            pl.BlockSpec((squeeze, Cin), const2),
            pl.BlockSpec((hh, squeeze), const2),
            pl.BlockSpec((hidden, Cin), const2),
            pl.BlockSpec((heads, 9 * gph, hidden), const3),
            pl.BlockSpec((9, HW), const2),
        ],
        out_specs=(pl.BlockSpec((bt, Cin + growth, HW), lambda b: (b, 0, 0)),
                   pl.BlockSpec((bt, Cin + hh, 1), lambda b: (b, 0, 0))),
        scratch_shapes=[pltpu.SemaphoreType.DMA],
        compiler_params=pltpu.CompilerParams(
            dimension_semantics=("parallel",),       # batch-independent steps
            vmem_limit_bytes=64 * 1024 * 1024),
    )(x_flat, cc,
      jnp.asarray(params["mg1_w1"], jnp.float32),
      jnp.asarray(params["mg1_w2"], jnp.float32),
      jnp.asarray(params["mg2_w1"], jnp.float32),
      jnp.asarray(params["mg2_w2"], jnp.float32),
      w1_bf, w2h, tapmask)

    out = out_flat.reshape(B, Cin + growth, H, W)    # NCHW, matches the module
    mask1 = maskcol[:, :Cin, 0].reshape(B, 1, Cin)
    mask2 = maskcol[:, Cin:, 0].reshape(B, heads, hidden)
    flops_dgc, bonus = get_others(mask1, mask2, others,
                                  params["flops_dgc1"], params["flops_dgc2"])
    return out, (flops_dgc, bonus)


# ----------------------------------------------------------------------------
# Pure-JAX/XLA reference of the same forward (numerical sanity check).
# ----------------------------------------------------------------------------
def reference_forward(x_nchw, params, heads):
    B, Cin, H, W = x_nchw.shape
    hidden = params["w1"].shape[0]
    hp = jax.lax.Precision.HIGHEST
    xa = jax.nn.relu(x_nchw * params["bn1_scale"].reshape(1, Cin, 1, 1)
                     + params["bn1_shift"].reshape(1, Cin, 1, 1))
    pool = jnp.mean(xa, axis=(2, 3))                                  # (B, Cin)

    def mask_mlp(w1, b1, w2, b2):
        h = jax.nn.relu(pool @ w1.T + b1[None, :])
        return jax.nn.sigmoid(h @ w2.T + b2[None, :])

    mask1 = mask_mlp(params["mg1_w1"], params["mg1_b1"],
                     params["mg1_w2"], params["mg1_b2"])              # (B, Cin)
    mask2 = mask_mlp(params["mg2_w1"], params["mg2_b1"],
                     params["mg2_w2"], params["mg2_b2"])              # (B, heads*hidden)
    y = jnp.einsum("oc,bchw->bohw", params["w1"],
                   xa * mask1.reshape(B, Cin, 1, 1), precision=hp)
    y = jax.nn.relu(y * params["bn2_scale"].reshape(1, hidden, 1, 1)
                    + params["bn2_shift"].reshape(1, hidden, 1, 1))
    m2 = mask2.reshape(B, heads, hidden)
    xcat = jnp.concatenate([y * m2[:, g].reshape(B, hidden, 1, 1)
                            for g in range(heads)], axis=1)
    z = jax.lax.conv_general_dilated(
        xcat, params["w2"], window_strides=(1, 1), padding=((1, 1), (1, 1)),
        dimension_numbers=("NCHW", "OIHW", "NCHW"),
        feature_group_count=heads, precision=hp)
    out = jnp.concatenate([x_nchw, z], axis=1)
    return out, mask1, m2


if __name__ == "__main__":
    key = jax.random.PRNGKey(0)
    B, Cin, H, W = 2, 8, 16, 16
    growth, bottleneck, heads = 8, 4, 4
    hidden = bottleneck * growth                    # 32
    squeeze = max(Cin // 4, 1)                      # squeeze_rate = 4 (in_channels < 200)
    hh = heads * hidden
    eps = 1e-5

    ks = jax.random.split(key, 16)
    x_nchw = jax.random.normal(ks[0], (B, Cin, H, W), jnp.float32)

    # BN1 / BN2 folded into inference-mode scale/shift
    g1 = 1.0 + 0.1 * jax.random.normal(ks[1], (Cin,))
    be1 = 0.1 * jax.random.normal(ks[2], (Cin,))
    mu1 = 0.1 * jax.random.normal(ks[3], (Cin,))
    v1 = 1.0 + 0.1 * jax.random.uniform(ks[4], (Cin,))
    g2 = 1.0 + 0.1 * jax.random.normal(ks[5], (hidden,))
    be2 = 0.1 * jax.random.normal(ks[6], (hidden,))
    mu2 = 0.1 * jax.random.normal(ks[7], (hidden,))
    v2 = 1.0 + 0.1 * jax.random.uniform(ks[8], (hidden,))
    s1 = g1 / jnp.sqrt(v1 + eps)
    s2 = g2 / jnp.sqrt(v2 + eps)

    params = dict(
        bn1_scale=s1, bn1_shift=be1 - mu1 * s1,
        bn2_scale=s2, bn2_shift=be2 - mu2 * s2,
        w1=0.1 * jax.random.normal(ks[9], (hidden, Cin), jnp.float32),             # conv1 1x1
        w2=0.05 * jax.random.normal(ks[10], (growth, hidden, 3, 3), jnp.float32),  # grouped 3x3
        mg1_w1=0.2 * jax.random.normal(ks[11], (squeeze, Cin)),
        mg1_b1=jnp.zeros((squeeze,)),
        mg1_w2=0.2 * jax.random.normal(ks[12], (Cin, squeeze)),
        mg1_b2=jnp.zeros((Cin,)),
        mg2_w1=0.2 * jax.random.normal(ks[13], (squeeze, Cin)),
        mg2_b1=jnp.zeros((squeeze,)),
        mg2_w2=0.2 * jax.random.normal(ks[14], (hh, squeeze)),
        mg2_b2=jnp.zeros((hh,)),
        flops_dgc1=float(Cin * hidden * H * W),
        flops_dgc2=float(hidden * (9 * growth + 1) * H * W),  # attention=False branch
    )

    others_in = (jnp.float32(0.0), jnp.float32(0.0))
    fwd = jax.jit(functools.partial(dy_dense_layer_forward, heads=heads))
    out, (flops_dgc, bonus) = fwd(x_nchw, others_in, params)
    jax.block_until_ready((out, flops_dgc, bonus))
    assert out.shape == (B, Cin + growth, H, W)

    # sanity-check the fused kernel against a pure-XLA reference
    ref_out, ref_mask1, ref_mask2 = reference_forward(x_nchw, params, heads)
    ref_flops, ref_bonus = get_others(ref_mask1.reshape(B, 1, Cin), ref_mask2, others_in,
                                      params["flops_dgc1"], params["flops_dgc2"])
    np.testing.assert_allclose(np.asarray(out), np.asarray(ref_out), rtol=2e-2, atol=1e-2)
    np.testing.assert_allclose(float(flops_dgc), float(ref_flops), rtol=2e-2)
    np.testing.assert_allclose(float(bonus), float(ref_bonus), rtol=2e-2)
    print("KERNEL_OK")
</pallas_src>

<mosaic_0001>
module attributes {stable_mosaic.version = 11 : i64} {
  func.func @_dy_dense_kernel(%arg0: i32, %arg1: memref<2x8x256xf32, #tpu.memory_space<vmem>>, %arg2: memref<220x1xf32, #tpu.memory_space<vmem>>, %arg3: memref<2x8xf32, #tpu.memory_space<vmem>>, %arg4: memref<8x2xf32, #tpu.memory_space<vmem>>, %arg5: memref<2x8xf32, #tpu.memory_space<vmem>>, %arg6: memref<128x2xf32, #tpu.memory_space<vmem>>, %arg7: memref<32x8xbf16, #tpu.memory_space<vmem>>, %arg8: memref<4x18x32xbf16, #tpu.memory_space<vmem>>, %arg9: memref<9x256xf32, #tpu.memory_space<vmem>>, %arg10: memref<2x16x256xf32, #tpu.memory_space<vmem>>, %arg11: memref<2x136x1xf32, #tpu.memory_space<vmem>>, %arg12: memref<!tpu.dma_semaphore, #tpu.memory_space<semaphore_mem>>) attributes {dimension_semantics = [#tpu.dimension_semantics<parallel>], iteration_bounds = array<i64: 1>, scalar_prefetch = 0 : i64, scratch_operands = 1 : i64, tpu.core_type = #tpu.core_type<tc>, window_params = [{transform_indices = @transform_0, window_bounds = array<i64: 2, 8, 256>}, {pipeline_mode = #tpu.pipeline_mode<synchronous>, transform_indices = @transform_1, window_bounds = array<i64: 220, 1>}, {pipeline_mode = #tpu.pipeline_mode<synchronous>, transform_indices = @transform_2, window_bounds = array<i64: 2, 8>}, {pipeline_mode = #tpu.pipeline_mode<synchronous>, transform_indices = @transform_3, window_bounds = array<i64: 8, 2>}, {pipeline_mode = #tpu.pipeline_mode<synchronous>, transform_indices = @transform_4, window_bounds = array<i64: 2, 8>}, {pipeline_mode = #tpu.pipeline_mode<synchronous>, transform_indices = @transform_5, window_bounds = array<i64: 128, 2>}, {pipeline_mode = #tpu.pipeline_mode<synchronous>, transform_indices = @transform_6, window_bounds = array<i64: 32, 8>}, {pipeline_mode = #tpu.pipeline_mode<synchronous>, transform_indices = @transform_7, window_bounds = array<i64: 4, 18, 32>}, {pipeline_mode = #tpu.pipeline_mode<synchronous>, transform_indices = @transform_8, window_bounds = array<i64: 9, 256>}, {transform_indices = @transform_9, window_bounds = array<i64: 2, 16, 256>}, {transform_indices = @transform_10, window_bounds = array<i64: 2, 136, 1>}]} {
    %c0_i32 = arith.constant 0 : i32
    %c0_i32_0 = arith.constant 0 : i32
    %c0_i32_1 = arith.constant 0 : i32
    %0 = tpu.memref_slice %arg10[%c0_i32, %c0_i32_0, %c0_i32_1] : memref<2x16x256xf32, #tpu.memory_space<vmem>> -> memref<2x8x256xf32, #tpu.memory_space<vmem>>
    tpu.enqueue_dma source(%arg1 : memref<2x8x256xf32, #tpu.memory_space<vmem>>) target(%0 : memref<2x8x256xf32, #tpu.memory_space<vmem>>) target_semaphore(%arg12 : memref<!tpu.dma_semaphore, #tpu.memory_space<semaphore_mem>>)
    %c0 = arith.constant 0 : index
    %c0_2 = arith.constant 0 : index
    %1 = vector.load %arg2[%c0, %c0_2] : memref<220x1xf32, #tpu.memory_space<vmem>>, vector<220x1xf32>
    %2 = vector.extract_strided_slice %1 {offsets = [0, 0], sizes = [8, 1], strides = [1, 1]} : vector<220x1xf32> to vector<8x1xf32>
    %3 = vector.extract_strided_slice %1 {offsets = [8, 0], sizes = [8, 1], strides = [1, 1]} : vector<220x1xf32> to vector<8x1xf32>
    %4 = vector.extract_strided_slice %1 {offsets = [16, 0], sizes = [32, 1], strides = [1, 1]} : vector<220x1xf32> to vector<32x1xf32>
    %5 = vector.extract_strided_slice %1 {offsets = [48, 0], sizes = [32, 1], strides = [1, 1]} : vector<220x1xf32> to vector<32x1xf32>
    %6 = vector.extract_strided_slice %1 {offsets = [80, 0], sizes = [2, 1], strides = [1, 1]} : vector<220x1xf32> to vector<2x1xf32>
    %7 = vector.extract_strided_slice %1 {offsets = [82, 0], sizes = [8, 1], strides = [1, 1]} : vector<220x1xf32> to vector<8x1xf32>
    %8 = vector.extract_strided_slice %1 {offsets = [90, 0], sizes = [2, 1], strides = [1, 1]} : vector<220x1xf32> to vector<2x1xf32>
    %9 = vector.extract_strided_slice %1 {offsets = [92, 0], sizes = [128, 1], strides = [1, 1]} : vector<220x1xf32> to vector<128x1xf32>
    %c0_3 = arith.constant 0 : index
    %c0_4 = arith.constant 0 : index
    %10 = vector.load %arg3[%c0_3, %c0_4] : memref<2x8xf32, #tpu.memory_space<vmem>>, vector<2x8xf32>
    %c0_5 = arith.constant 0 : index
    %c0_6 = arith.constant 0 : index
    %11 = vector.load %arg4[%c0_5, %c0_6] : memref<8x2xf32, #tpu.memory_space<vmem>>, vector<8x2xf32>
    %c0_7 = arith.constant 0 : index
    %c0_8 = arith.constant 0 : index
    %12 = vector.load %arg5[%c0_7, %c0_8] : memref<2x8xf32, #tpu.memory_space<vmem>>, vector<2x8xf32>
    %c0_9 = arith.constant 0 : index
    %c0_10 = arith.constant 0 : index
    %13 = vector.load %arg6[%c0_9, %c0_10] : memref<128x2xf32, #tpu.memory_space<vmem>>, vector<128x2xf32>
    %c0_11 = arith.constant 0 : index
    %c0_12 = arith.constant 0 : index
    %14 = vector.load %arg7[%c0_11, %c0_12] : memref<32x8xbf16, #tpu.memory_space<vmem>>, vector<32x8xbf16>
    %c0_13 = arith.constant 0 : index
    %c0_14 = arith.constant 0 : index
    %15 = vector.load %arg9[%c0_13, %c0_14] : memref<9x256xf32, #tpu.memory_space<vmem>>, vector<9x256xf32>
    %c0_15 = arith.constant 0 : index
    %c0_16 = arith.constant 0 : index
    %c0_17 = arith.constant 0 : index
    %16 = vector.load %arg1[%c0_15, %c0_16, %c0_17] : memref<2x8x256xf32, #tpu.memory_space<vmem>>, vector<1x8x256xf32>
    %17 = vector.shape_cast %16 : vector<1x8x256xf32> to vector<8x256xf32>
    %18 = vector.broadcast %2 : vector<8x1xf32> to vector<8x256xf32>
    %19 = arith.mulf %17, %18 : vector<8x256xf32>
    %20 = vector.broadcast %3 : vector<8x1xf32> to vector<8x256xf32>
    %21 = arith.addf %19, %20 : vector<8x256xf32>
    %cst = arith.constant 0.000000e+00 : f32
    %22 = vector.broadcast %cst : f32 to vector<8x256xf32>
    %23 = arith.maximumf %21, %22 : vector<8x256xf32>
    %cst_18 = arith.constant dense<0.000000e+00> : vector<8xf32>
    %24 = vector.multi_reduction <add>, %23, %cst_18 [1] : vector<8x256xf32> to vector<8xf32>
    %25 = vector.shape_cast %24 : vector<8xf32> to vector<8x1xf32>
    %cst_19 = arith.constant 2.560000e+02 : f32
    %26 = vector.broadcast %cst_19 : f32 to vector<8x1xf32>
    %27 = arith.divf %25, %26 : vector<8x1xf32>
    %cst_20 = arith.constant dense<0.000000e+00> : vector<2x1xf32>
    %28 = tpu.matmul %10, %27, %cst_20 {dimension_numbers = #tpu.dot_dimension_numbers<[1], [0], [0], [1], [0, 0, 1, 1], [], []>} : vector<2x8xf32>, vector<8x1xf32>, vector<2x1xf32> -> vector<2x1xf32>
    %29 = arith.addf %28, %6 : vector<2x1xf32>
    %cst_21 = arith.constant 0.000000e+00 : f32
    %30 = vector.broadcast %cst_21 : f32 to vector<2x1xf32>
    %31 = arith.maximumf %29, %30 : vector<2x1xf32>
    %cst_22 = arith.constant dense<0.000000e+00> : vector<8x1xf32>
    %32 = tpu.matmul %11, %31, %cst_22 {dimension_numbers = #tpu.dot_dimension_numbers<[1], [0], [0], [1], [0, 0, 1, 1], [], []>} : vector<8x2xf32>, vector<2x1xf32>, vector<8x1xf32> -> vector<8x1xf32>
    %33 = arith.addf %32, %7 : vector<8x1xf32>
    %cst_23 = arith.constant 5.000000e-01 : f32
    %34 = vector.broadcast %cst_23 : f32 to vector<8x1xf32>
    %35 = arith.mulf %34, %33 : vector<8x1xf32>
    %36 = math.tanh %35 : vector<8x1xf32>
    %cst_24 = arith.constant 1.000000e+00 : f32
    %37 = vector.broadcast %cst_24 : f32 to vector<8x1xf32>
    %38 = arith.addf %36, %37 : vector<8x1xf32>
    %cst_25 = arith.constant 5.000000e-01 : f32
    %39 = vector.broadcast %cst_25 : f32 to vector<8x1xf32>
    %40 = arith.mulf %39, %38 : vector<8x1xf32>
    %cst_26 = arith.constant dense<0.000000e+00> : vector<2x1xf32>
    %41 = tpu.matmul %12, %27, %cst_26 {dimension_numbers = #tpu.dot_dimension_numbers<[1], [0], [0], [1], [0, 0, 1, 1], [], []>} : vector<2x8xf32>, vector<8x1xf32>, vector<2x1xf32> -> vector<2x1xf32>
    %42 = arith.addf %41, %8 : vector<2x1xf32>
    %cst_27 = arith.constant 0.000000e+00 : f32
    %43 = vector.broadcast %cst_27 : f32 to vector<2x1xf32>
    %44 = arith.maximumf %42, %43 : vector<2x1xf32>
    %cst_28 = arith.constant dense<0.000000e+00> : vector<128x1xf32>
    %45 = tpu.matmul %13, %44, %cst_28 {dimension_numbers = #tpu.dot_dimension_numbers<[1], [0], [0], [1], [0, 0, 1, 1], [], []>} : vector<128x2xf32>, vector<2x1xf32>, vector<128x1xf32> -> vector<128x1xf32>
    %46 = arith.addf %45, %9 : vector<128x1xf32>
    %cst_29 = arith.constant 5.000000e-01 : f32
    %47 = vector.broadcast %cst_29 : f32 to vector<128x1xf32>
    %48 = arith.mulf %47, %46 : vector<128x1xf32>
    %49 = math.tanh %48 : vector<128x1xf32>
    %cst_30 = arith.constant 1.000000e+00 : f32
    %50 = vector.broadcast %cst_30 : f32 to vector<128x1xf32>
    %51 = arith.addf %49, %50 : vector<128x1xf32>
    %cst_31 = arith.constant 5.000000e-01 : f32
    %52 = vector.broadcast %cst_31 : f32 to vector<128x1xf32>
    %53 = arith.mulf %52, %51 : vector<128x1xf32>
    %c0_32 = arith.constant 0 : index
    %c0_33 = arith.constant 0 : index
    %c0_34 = arith.constant 0 : index
    %54 = vector.load %arg11[%c0_32, %c0_33, %c0_34] : memref<2x136x1xf32, #tpu.memory_space<vmem>>, vector<1x8x1xf32>
    %55 = vector.shape_cast %54 : vector<1x8x1xf32> to vector<8x1xf32>
    %56 = vector.shape_cast %40 : vector<8x1xf32> to vector<1x8x1xf32>
    tpu.vector_store %arg11[%c0_32, %c0_33, %c0_34], %56 {strides = array<i32>} : memref<2x136x1xf32, #tpu.memory_space<vmem>>, vector<1x8x1xf32>,
    %c0_35 = arith.constant 0 : index
    %c8 = arith.constant 8 : index
    %c0_36 = arith.constant 0 : index
    %57 = vector.load %arg11[%c0_35, %c8, %c0_36] : memref<2x136x1xf32, #tpu.memory_space<vmem>>, vector<1x128x1xf32>
    %58 = vector.shape_cast %57 : vector<1x128x1xf32> to vector<128x1xf32>
    %59 = vector.shape_cast %53 : vector<128x1xf32> to vector<1x128x1xf32>
    tpu.vector_store %arg11[%c0_35, %c8, %c0_36], %59 {strides = array<i32>} : memref<2x136x1xf32, #tpu.memory_space<vmem>>, vector<1x128x1xf32>,
    %60 = vector.broadcast %40 : vector<8x1xf32> to vector<8x256xf32>
    %61 = arith.mulf %23, %60 : vector<8x256xf32>
    %62 = arith.truncf %61 : vector<8x256xf32> to vector<8x256xbf16>
    %cst_37 = arith.constant dense<0.000000e+00> : vector<32x256xf32>
    %63 = tpu.matmul %14, %62, %cst_37 {dimension_numbers = #tpu.dot_dimension_numbers<[1], [0], [0], [1], [0, 0, 1, 1], [], []>} : vector<32x8xbf16>, vector<8x256xbf16>, vector<32x256xf32> -> vector<32x256xf32>
    %64 = vector.broadcast %4 : vector<32x1xf32> to vector<32x256xf32>
    %65 = arith.mulf %63, %64 : vector<32x256xf32>
    %66 = vector.broadcast %5 : vector<32x1xf32> to vector<32x256xf32>
    %67 = arith.addf %65, %66 : vector<32x256xf32>
    %cst_38 = arith.constant 0.000000e+00 : f32
    %68 = vector.broadcast %cst_38 : f32 to vector<32x256xf32>
    %69 = arith.maximumf %67, %68 : vector<32x256xf32>
    %70 = vector.extract_strided_slice %53 {offsets = [0, 0], sizes = [32, 1], strides = [1, 1]} : vector<128x1xf32> to vector<32x1xf32>
    %71 = vector.broadcast %70 : vector<32x1xf32> to vector<32x256xf32>
    %72 = arith.mulf %69, %71 : vector<32x256xf32>
    %73 = arith.truncf %72 : vector<32x256xf32> to vector<32x256xbf16>
    %c0_39 = arith.constant 0 : index
    %c0_40 = arith.constant 0 : index
    %c0_41 = arith.constant 0 : index
    %74 = vector.load %arg8[%c0_39, %c0_40, %c0_41] : memref<4x18x32xbf16, #tpu.memory_space<vmem>>, vector<1x18x32xbf16>
    %75 = vector.shape_cast %74 : vector<1x18x32xbf16> to vector<18x32xbf16>
    %cst_42 = arith.constant dense<0.000000e+00> : vector<18x256xf32>
    %76 = tpu.matmul %75, %73, %cst_42 {dimension_numbers = #tpu.dot_dimension_numbers<[1], [0], [0], [1], [0, 0, 1, 1], [], []>} : vector<18x32xbf16>, vector<32x256xbf16>, vector<18x256xf32> -> vector<18x256xf32>
    %cst_43 = arith.constant 0.000000e+00 : f32
    %77 = vector.broadcast %cst_43 : f32 to vector<2x256xf32>
    %78 = vector.extract_strided_slice %76 {offsets = [0, 0], sizes = [2, 256], strides = [1, 1]} : vector<18x256xf32> to vector<2x256xf32>
    %c17_i32 = arith.constant 17 : i32
    %79 = tpu.dynamic_rotate %78 by %c17_i32 dim 1 : vector<2x256xf32>, i32 -> vector<2x256xf32>
    %80 = vector.extract_strided_slice %15 {offsets = [0, 0], sizes = [1, 256], strides = [1, 1]} : vector<9x256xf32> to vector<1x256xf32>
    %81 = vector.broadcast %80 : vector<1x256xf32> to vector<2x256xf32>
    %82 = arith.mulf %79, %81 : vector<2x256xf32>
    %83 = arith.addf %77, %82 : vector<2x256xf32>
    %84 = vector.extract_strided_slice %76 {offsets = [2, 0], sizes = [2, 256], strides = [1, 1]} : vector<18x256xf32> to vector<2x256xf32>
    %c16_i32 = arith.constant 16 : i32
    %85 = tpu.dynamic_rotate %84 by %c16_i32 dim 1 : vector<2x256xf32>, i32 -> vector<2x256xf32>
    %86 = vector.extract_strided_slice %15 {offsets = [1, 0], sizes = [1, 256], strides = [1, 1]} : vector<9x256xf32> to vector<1x256xf32>
    %87 = vector.broadcast %86 : vector<1x256xf32> to vector<2x256xf32>
    %88 = arith.mulf %85, %87 : vector<2x256xf32>
    %89 = arith.addf %83, %88 : vector<2x256xf32>
    %90 = vector.extract_strided_slice %76 {offsets = [4, 0], sizes = [2, 256], strides = [1, 1]} : vector<18x256xf32> to vector<2x256xf32>
    %c15_i32 = arith.constant 15 : i32
    %91 = tpu.dynamic_rotate %90 by %c15_i32 dim 1 : vector<2x256xf32>, i32 -> vector<2x256xf32>
    %92 = vector.extract_strided_slice %15 {offsets = [2, 0], sizes = [1, 256], strides = [1, 1]} : vector<9x256xf32> to vector<1x256xf32>
    %93 = vector.broadcast %92 : vector<1x256xf32> to vector<2x256xf32>
    %94 = arith.mulf %91, %93 : vector<2x256xf32>
    %95 = arith.addf %89, %94 : vector<2x256xf32>
    %96 = vector.extract_strided_slice %76 {offsets = [6, 0], sizes = [2, 256], strides = [1, 1]} : vector<18x256xf32> to vector<2x256xf32>
    %c1_i32 = arith.constant 1 : i32
    %97 = tpu.dynamic_rotate %96 by %c1_i32 dim 1 : vector<2x256xf32>, i32 -> vector<2x256xf32>
    %98 = vector.extract_strided_slice %15 {offsets = [3, 0], sizes = [1, 256], strides = [1, 1]} : vector<9x256xf32> to vector<1x256xf32>
    %99 = vector.broadcast %98 : vector<1x256xf32> to vector<2x256xf32>
    %100 = arith.mulf %97, %99 : vector<2x256xf32>
    %101 = arith.addf %95, %100 : vector<2x256xf32>
    %102 = vector.extract_strided_slice %76 {offsets = [8, 0], sizes = [2, 256], strides = [1, 1]} : vector<18x256xf32> to vector<2x256xf32>
    %103 = arith.addf %101, %102 : vector<2x256xf32>
    %104 = vector.extract_strided_slice %76 {offsets = [10, 0], sizes = [2, 256], strides = [1, 1]} : vector<18x256xf32> to vector<2x256xf32>
    %c255_i32 = arith.constant 255 : i32
    %105 = tpu.dynamic_rotate %104 by %c255_i32 dim 1 : vector<2x256xf32>, i32 -> vector<2x256xf32>
    %106 = vector.extract_strided_slice %15 {offsets = [5, 0], sizes = [1, 256], strides = [1, 1]} : vector<9x256xf32> to vector<1x256xf32>
    %107 = vector.broadcast %106 : vector<1x256xf32> to vector<2x256xf32>
    %108 = arith.mulf %105, %107 : vector<2x256xf32>
    %109 = arith.addf %103, %108 : vector<2x256xf32>
    %110 = vector.extract_strided_slice %76 {offsets = [12, 0], sizes = [2, 256], strides = [1, 1]} : vector<18x256xf32> to vector<2x256xf32>
    %c241_i32 = arith.constant 241 : i32
    %111 = tpu.dynamic_rotate %110 by %c241_i32 dim 1 : vector<2x256xf32>, i32 -> vector<2x256xf32>
    %112 = vector.extract_strided_slice %15 {offsets = [6, 0], sizes = [1, 256], strides = [1, 1]} : vector<9x256xf32> to vector<1x256xf32>
    %113 = vector.broadcast %112 : vector<1x256xf32> to vector<2x256xf32>
    %114 = arith.mulf %111, %113 : vector<2x256xf32>
    %115 = arith.addf %109, %114 : vector<2x256xf32>
    %116 = vector.extract_strided_slice %76 {offsets = [14, 0], sizes = [2, 256], strides = [1, 1]} : vector<18x256xf32> to vector<2x256xf32>
    %c240_i32 = arith.constant 240 : i32
    %117 = tpu.dynamic_rotate %116 by %c240_i32 dim 1 : vector<2x256xf32>, i32 -> vector<2x256xf32>
    %118 = vector.extract_strided_slice %15 {offsets = [7, 0], sizes = [1, 256], strides = [1, 1]} : vector<9x256xf32> to vector<1x256xf32>
    %119 = vector.broadcast %118 : vector<1x256xf32> to vector<2x256xf32>
    %120 = arith.mulf %117, %119 : vector<2x256xf32>
    %121 = arith.addf %115, %120 : vector<2x256xf32>
    %122 = vector.extract_strided_slice %76 {offsets = [16, 0], sizes = [2, 256], strides = [1, 1]} : vector<18x256xf32> to vector<2x256xf32>
    %c239_i32 = arith.constant 239 : i32
    %123 = tpu.dynamic_rotate %122 by %c239_i32 dim 1 : vector<2x256xf32>, i32 -> vector<2x256xf32>
    %124 = vector.extract_strided_slice %15 {offsets = [8, 0], sizes = [1, 256], strides = [1, 1]} : vector<9x256xf32> to vector<1x256xf32>
    %125 = vector.broadcast %124 : vector<1x256xf32> to vector<2x256xf32>
    %126 = arith.mulf %123, %125 : vector<2x256xf32>
    %127 = arith.addf %121, %126 : vector<2x256xf32>
    %c0_44 = arith.constant 0 : index
    %c8_45 = arith.constant 8 : index
    %c0_46 = arith.constant 0 : index
    %128 = vector.load %arg10[%c0_44, %c8_45, %c0_46] : memref<2x16x256xf32, #tpu.memory_space<vmem>>, vector<1x2x256xf32>
    %129 = vector.shape_cast %128 : vector<1x2x256xf32> to vector<2x256xf32>
    %130 = vector.shape_cast %127 : vector<2x256xf32> to vector<1x2x256xf32>
    tpu.vector_store %arg10[%c0_44, %c8_45, %c0_46], %130 {strides = array<i32>} : memref<2x16x256xf32, #tpu.memory_space<vmem>>, vector<1x2x256xf32>,
    %131 = vector.extract_strided_slice %53 {offsets = [32, 0], sizes = [32, 1], strides = [1, 1]} : vector<128x1xf32> to vector<32x1xf32>
    %132 = vector.broadcast %131 : vector<32x1xf32> to vector<32x256xf32>
    %133 = arith.mulf %69, %132 : vector<32x256xf32>
    %134 = arith.truncf %133 : vector<32x256xf32> to vector<32x256xbf16>
    %c1 = arith.constant 1 : index
    %c0_47 = arith.constant 0 : index
    %c0_48 = arith.constant 0 : index
    %135 = vector.load %arg8[%c1, %c0_47, %c0_48] : memref<4x18x32xbf16, #tpu.memory_space<vmem>>, vector<1x18x32xbf16>
    %136 = vector.shape_cast %135 : vector<1x18x32xbf16> to vector<18x32xbf16>
    %cst_49 = arith.constant dense<0.000000e+00> : vector<18x256xf32>
    %137 = tpu.matmul %136, %134, %cst_49 {dimension_numbers = #tpu.dot_dimension_numbers<[1], [0], [0], [1], [0, 0, 1, 1], [], []>} : vector<18x32xbf16>, vector<32x256xbf16>, vector<18x256xf32> -> vector<18x256xf32>
    %cst_50 = arith.constant 0.000000e+00 : f32
    %138 = vector.broadcast %cst_50 : f32 to vector<2x256xf32>
    %139 = vector.extract_strided_slice %137 {offsets = [0, 0], sizes = [2, 256], strides = [1, 1]} : vector<18x256xf32> to vector<2x256xf32>
    %c17_i32_51 = arith.constant 17 : i32
    %140 = tpu.dynamic_rotate %139 by %c17_i32_51 dim 1 : vector<2x256xf32>, i32 -> vector<2x256xf32>
    %141 = vector.extract_strided_slice %15 {offsets = [0, 0], sizes = [1, 256], strides = [1, 1]} : vector<9x256xf32> to vector<1x256xf32>
    %142 = vector.broadcast %141 : vector<1x256xf32> to vector<2x256xf32>
    %143 = arith.mulf %140, %142 : vector<2x256xf32>
    %144 = arith.addf %138, %143 : vector<2x256xf32>
    %145 = vector.extract_strided_slice %137 {offsets = [2, 0], sizes = [2, 256], strides = [1, 1]} : vector<18x256xf32> to vector<2x256xf32>
    %c16_i32_52 = arith.constant 16 : i32
    %146 = tpu.dynamic_rotate %145 by %c16_i32_52 dim 1 : vector<2x256xf32>, i32 -> vector<2x256xf32>
    %147 = vector.extract_strided_slice %15 {offsets = [1, 0], sizes = [1, 256], strides = [1, 1]} : vector<9x256xf32> to vector<1x256xf32>
    %148 = vector.broadcast %147 : vector<1x256xf32> to vector<2x256xf32>
    %149 = arith.mulf %146, %148 : vector<2x256xf32>
    %150 = arith.addf %144, %149 : vector<2x256xf32>
    %151 = vector.extract_strided_slice %137 {offsets = [4, 0], sizes = [2, 256], strides = [1, 1]} : vector<18x256xf32> to vector<2x256xf32>
    %c15_i32_53 = arith.constant 15 : i32
    %152 = tpu.dynamic_rotate %151 by %c15_i32_53 dim 1 : vector<2x256xf32>, i32 -> vector<2x256xf32>
    %153 = vector.extract_strided_slice %15 {offsets = [2, 0], sizes = [1, 256], strides = [1, 1]} : vector<9x256xf32> to vector<1x256xf32>
    %154 = vector.broadcast %153 : vector<1x256xf32> to vector<2x256xf32>
    %155 = arith.mulf %152, %154 : vector<2x256xf32>
    %156 = arith.addf %150, %155 : vector<2x256xf32>
    %157 = vector.extract_strided_slice %137 {offsets = [6, 0], sizes = [2, 256], strides = [1, 1]} : vector<18x256xf32> to vector<2x256xf32>
    %c1_i32_54 = arith.constant 1 : i32
    %158 = tpu.dynamic_rotate %157 by %c1_i32_54 dim 1 : vector<2x256xf32>, i32 -> vector<2x256xf32>
    %159 = vector.extract_strided_slice %15 {offsets = [3, 0], sizes = [1, 256], strides = [1, 1]} : vector<9x256xf32> to vector<1x256xf32>
    %160 = vector.broadcast %159 : vector<1x256xf32> to vector<2x256xf32>
    %161 = arith.mulf %158, %160 : vector<2x256xf32>
    %162 = arith.addf %156, %161 : vector<2x256xf32>
    %163 = vector.extract_strided_slice %137 {offsets = [8, 0], sizes = [2, 256], strides = [1, 1]} : vector<18x256xf32> to vector<2x256xf32>
    %164 = arith.addf %162, %163 : vector<2x256xf32>
    %165 = vector.extract_strided_slice %137 {offsets = [10, 0], sizes = [2, 256], strides = [1, 1]} : vector<18x256xf32> to vector<2x256xf32>
    %c255_i32_55 = arith.constant 255 : i32
    %166 = tpu.dynamic_rotate %165 by %c255_i32_55 dim 1 : vector<2x256xf32>, i32 -> vector<2x256xf32>
    %167 = vector.extract_strided_slice %15 {offsets = [5, 0], sizes = [1, 256], strides = [1, 1]} : vector<9x256xf32> to vector<1x256xf32>
    %168 = vector.broadcast %167 : vector<1x256xf32> to vector<2x256xf32>
    %169 = arith.mulf %166, %168 : vector<2x256xf32>
    %170 = arith.addf %164, %169 : vector<2x256xf32>
    %171 = vector.extract_strided_slice %137 {offsets = [12, 0], sizes = [2, 256], strides = [1, 1]} : vector<18x256xf32> to vector<2x256xf32>
    %c241_i32_56 = arith.constant 241 : i32
    %172 = tpu.dynamic_rotate %171 by %c241_i32_56 dim 1 : vector<2x256xf32>, i32 -> vector<2x256xf32>
    %173 = vector.extract_strided_slice %15 {offsets = [6, 0], sizes = [1, 256], strides = [1, 1]} : vector<9x256xf32> to vector<1x256xf32>
    %174 = vector.broadcast %173 : vector<1x256xf32> to vector<2x256xf32>
    %175 = arith.mulf %172, %174 : vector<2x256xf32>
    %176 = arith.addf %170, %175 : vector<2x256xf32>
    %177 = vector.extract_strided_slice %137 {offsets = [14, 0], sizes = [2, 256], strides = [1, 1]} : vector<18x256xf32> to vector<2x256xf32>
    %c240_i32_57 = arith.constant 240 : i32
    %178 = tpu.dynamic_rotate %177 by %c240_i32_57 dim 1 : vector<2x256xf32>, i32 -> vector<2x256xf32>
    %179 = vector.extract_strided_slice %15 {offsets = [7, 0], sizes = [1, 256], strides = [1, 1]} : vector<9x256xf32> to vector<1x256xf32>
    %180 = vector.broadcast %179 : vector<1x256xf32> to vector<2x256xf32>
    %181 = arith.mulf %178, %180 : vector<2x256xf32>
    %182 = arith.addf %176, %181 : vector<2x256xf32>
    %183 = vector.extract_strided_slice %137 {offsets = [16, 0], sizes = [2, 256], strides = [1, 1]} : vector<18x256xf32> to vector<2x256xf32>
    %c239_i32_58 = arith.constant 239 : i32
    %184 = tpu.dynamic_rotate %183 by %c239_i32_58 dim 1 : vector<2x256xf32>, i32 -> vector<2x256xf32>
    %185 = vector.extract_strided_slice %15 {offsets = [8, 0], sizes = [1, 256], strides = [1, 1]} : vector<9x256xf32> to vector<1x256xf32>
    %186 = vector.broadcast %185 : vector<1x256xf32> to vector<2x256xf32>
    %187 = arith.mulf %184, %186 : vector<2x256xf32>
    %188 = arith.addf %182, %187 : vector<2x256xf32>
    %c0_59 = arith.constant 0 : index
    %c10 = arith.constant 10 : index
    %c0_60 = arith.constant 0 : index
    %189 = vector.load %arg10[%c0_59, %c10, %c0_60] : memref<2x16x256xf32, #tpu.memory_space<vmem>>, vector<1x2x256xf32>
    %190 = vector.shape_cast %189 : vector<1x2x256xf32> to vector<2x256xf32>
    %191 = vector.shape_cast %188 : vector<2x256xf32> to vector<1x2x256xf32>
    tpu.vector_store %arg10[%c0_59, %c10, %c0_60], %191 {strides = array<i32>} : memref<2x16x256xf32, #tpu.memory_space<vmem>>, vector<1x2x256xf32>,
    %192 = vector.extract_strided_slice %53 {offsets = [64, 0], sizes = [32, 1], strides = [1, 1]} : vector<128x1xf32> to vector<32x1xf32>
    %193 = vector.broadcast %192 : vector<32x1xf32> to vector<32x256xf32>
    %194 = arith.mulf %69, %193 : vector<32x256xf32>
    %195 = arith.truncf %194 : vector<32x256xf32> to vector<32x256xbf16>
    %c2 = arith.constant 2 : index
    %c0_61 = arith.constant 0 : index
    %c0_62 = arith.constant 0 : index
    %196 = vector.load %arg8[%c2, %c0_61, %c0_62] : memref<4x18x32xbf16, #tpu.memory_space<vmem>>, vector<1x18x32xbf16>
    %197 = vector.shape_cast %196 : vector<1x18x32xbf16> to vector<18x32xbf16>
    %cst_63 = arith.constant dense<0.000000e+00> : vector<18x256xf32>
    %198 = tpu.matmul %197, %195, %cst_63 {dimension_numbers = #tpu.dot_dimension_numbers<[1], [0], [0], [1], [0, 0, 1, 1], [], []>} : vector<18x32xbf16>, vector<32x256xbf16>, vector<18x256xf32> -> vector<18x256xf32>
    %cst_64 = arith.constant 0.000000e+00 : f32
    %199 = vector.broadcast %cst_64 : f32 to vector<2x256xf32>
    %200 = vector.extract_strided_slice %198 {offsets = [0, 0], sizes = [2, 256], strides = [1, 1]} : vector<18x256xf32> to vector<2x256xf32>
    %c17_i32_65 = arith.constant 17 : i32
    %201 = tpu.dynamic_rotate %200 by %c17_i32_65 dim 1 : vector<2x256xf32>, i32 -> vector<2x256xf32>
    %202 = vector.extract_strided_slice %15 {offsets = [0, 0], sizes = [1, 256], strides = [1, 1]} : vector<9x256xf32> to vector<1x256xf32>
    %203 = vector.broadcast %202 : vector<1x256xf32> to vector<2x256xf32>
    %204 = arith.mulf %201, %203 : vector<2x256xf32>
    %205 = arith.addf %199, %204 : vector<2x256xf32>
    %206 = vector.extract_strided_slice %198 {offsets = [2, 0], sizes = [2, 256], strides = [1, 1]} : vector<18x256xf32> to vector<2x256xf32>
    %c16_i32_66 = arith.constant 16 : i32
    %207 = tpu.dynamic_rotate %206 by %c16_i32_66 dim 1 : vector<2x256xf32>, i32 -> vector<2x256xf32>
    %208 = vector.extract_strided_slice %15 {offsets = [1, 0], sizes = [1, 256], strides = [1, 1]} : vector<9x256xf32> to vector<1x256xf32>
    %209 = vector.broadcast %208 : vector<1x256xf32> to vector<2x256xf32>
    %210 = arith.mulf %207, %209 : vector<2x256xf32>
    %211 = arith.addf %205, %210 : vector<2x256xf32>
    %212 = vector.extract_strided_slice %198 {offsets = [4, 0], sizes = [2, 256], strides = [1, 1]} : vector<18x256xf32> to vector<2x256xf32>
    %c15_i32_67 = arith.constant 15 : i32
    %213 = tpu.dynamic_rotate %212 by %c15_i32_67 dim 1 : vector<2x256xf32>, i32 -> vector<2x256xf32>
    %214 = vector.extract_strided_slice %15 {offsets = [2, 0], sizes = [1, 256], strides = [1, 1]} : vector<9x256xf32> to vector<1x256xf32>
    %215 = vector.broadcast %214 : vector<1x256xf32> to vector<2x256xf32>
    %216 = arith.mulf %213, %215 : vector<2x256xf32>
    %217 = arith.addf %211, %216 : vector<2x256xf32>
    %218 = vector.extract_strided_slice %198 {offsets = [6, 0], sizes = [2, 256], strides = [1, 1]} : vector<18x256xf32> to vector<2x256xf32>
    %c1_i32_68 = arith.constant 1 : i32
    %219 = tpu.dynamic_rotate %218 by %c1_i32_68 dim 1 : vector<2x256xf32>, i32 -> vector<2x256xf32>
    %220 = vector.extract_strided_slice %15 {offsets = [3, 0], sizes = [1, 256], strides = [1, 1]} : vector<9x256xf32> to vector<1x256xf32>
    %221 = vector.broadcast %220 : vector<1x256xf32> to vector<2x256xf32>
    %222 = arith.mulf %219, %221 : vector<2x256xf32>
    %223 = arith.addf %217, %222 : vector<2x256xf32>
    %224 = vector.extract_strided_slice %198 {offsets = [8, 0], sizes = [2, 256], strides = [1, 1]} : vector<18x256xf32> to vector<2x256xf32>
    %225 = arith.addf %223, %224 : vector<2x256xf32>
    %226 = vector.extract_strided_slice %198 {offsets = [10, 0], sizes = [2, 256], strides = [1, 1]} : vector<18x256xf32> to vector<2x256xf32>
    %c255_i32_69 = arith.constant 255 : i32
    %227 = tpu.dynamic_rotate %226 by %c255_i32_69 dim 1 : vector<2x256xf32>, i32 -> vector<2x256xf32>
    %228 = vector.extract_strided_slice %15 {offsets = [5, 0], sizes = [1, 256], strides = [1, 1]} : vector<9x256xf32> to vector<1x256xf32>
    %229 = vector.broadcast %228 : vector<1x256xf32> to vector<2x256xf32>
    %230 = arith.mulf %227, %229 : vector<2x256xf32>
    %231 = arith.addf %225, %230 : vector<2x256xf32>
    %232 = vector.extract_strided_slice %198 {offsets = [12, 0], sizes = [2, 256], strides = [1, 1]} : vector<18x256xf32> to vector<2x256xf32>
    %c241_i32_70 = arith.constant 241 : i32
    %233 = tpu.dynamic_rotate %232 by %c241_i32_70 dim 1 : vector<2x256xf32>, i32 -> vector<2x256xf32>
    %234 = vector.extract_strided_slice %15 {offsets = [6, 0], sizes = [1, 256], strides = [1, 1]} : vector<9x256xf32> to vector<1x256xf32>
    %235 = vector.broadcast %234 : vector<1x256xf32> to vector<2x256xf32>
    %236 = arith.mulf %233, %235 : vector<2x256xf32>
    %237 = arith.addf %231, %236 : vector<2x256xf32>
    %238 = vector.extract_strided_slice %198 {offsets = [14, 0], sizes = [2, 256], strides = [1, 1]} : vector<18x256xf32> to vector<2x256xf32>
    %c240_i32_71 = arith.constant 240 : i32
    %239 = tpu.dynamic_rotate %238 by %c240_i32_71 dim 1 : vector<2x256xf32>, i32 -> vector<2x256xf32>
    %240 = vector.extract_strided_slice %15 {offsets = [7, 0], sizes = [1, 256], strides = [1, 1]} : vector<9x256xf32> to vector<1x256xf32>
    %241 = vector.broadcast %240 : vector<1x256xf32> to vector<2x256xf32>
    %242 = arith.mulf %239, %241 : vector<2x256xf32>
    %243 = arith.addf %237, %242 : vector<2x256xf32>
    %244 = vector.extract_strided_slice %198 {offsets = [16, 0], sizes = [2, 256], strides = [1, 1]} : vector<18x256xf32> to vector<2x256xf32>
    %c239_i32_72 = arith.constant 239 : i32
    %245 = tpu.dynamic_rotate %244 by %c239_i32_72 dim 1 : vector<2x256xf32>, i32 -> vector<2x256xf32>
    %246 = vector.extract_strided_slice %15 {offsets = [8, 0], sizes = [1, 256], strides = [1, 1]} : vector<9x256xf32> to vector<1x256xf32>
    %247 = vector.broadcast %246 : vector<1x256xf32> to vector<2x256xf32>
    %248 = arith.mulf %245, %247 : vector<2x256xf32>
    %249 = arith.addf %243, %248 : vector<2x256xf32>
    %c0_73 = arith.constant 0 : index
    %c12 = arith.constant 12 : index
    %c0_74 = arith.constant 0 : index
    %250 = vector.load %arg10[%c0_73, %c12, %c0_74] : memref<2x16x256xf32, #tpu.memory_space<vmem>>, vector<1x2x256xf32>
    %251 = vector.shape_cast %250 : vector<1x2x256xf32> to vector<2x256xf32>
    %252 = vector.shape_cast %249 : vector<2x256xf32> to vector<1x2x256xf32>
    tpu.vector_store %arg10[%c0_73, %c12, %c0_74], %252 {strides = array<i32>} : memref<2x16x256xf32, #tpu.memory_space<vmem>>, vector<1x2x256xf32>,
    %253 = vector.extract_strided_slice %53 {offsets = [96, 0], sizes = [32, 1], strides = [1, 1]} : vector<128x1xf32> to vector<32x1xf32>
    %254 = vector.broadcast %253 : vector<32x1xf32> to vector<32x256xf32>
    %255 = arith.mulf %69, %254 : vector<32x256xf32>
    %256 = arith.truncf %255 : vector<32x256xf32> to vector<32x256xbf16>
    %c3 = arith.constant 3 : index
    %c0_75 = arith.constant 0 : index
    %c0_76 = arith.constant 0 : index
    %257 = vector.load %arg8[%c3, %c0_75, %c0_76] : memref<4x18x32xbf16, #tpu.memory_space<vmem>>, vector<1x18x32xbf16>
    %258 = vector.shape_cast %257 : vector<1x18x32xbf16> to vector<18x32xbf16>
    %cst_77 = arith.constant dense<0.000000e+00> : vector<18x256xf32>
    %259 = tpu.matmul %258, %256, %cst_77 {dimension_numbers = #tpu.dot_dimension_numbers<[1], [0], [0], [1], [0, 0, 1, 1], [], []>} : vector<18x32xbf16>, vector<32x256xbf16>, vector<18x256xf32> -> vector<18x256xf32>
    %cst_78 = arith.constant 0.000000e+00 : f32
    %260 = vector.broadcast %cst_78 : f32 to vector<2x256xf32>
    %261 = vector.extract_strided_slice %259 {offsets = [0, 0], sizes = [2, 256], strides = [1, 1]} : vector<18x256xf32> to vector<2x256xf32>
    %c17_i32_79 = arith.constant 17 : i32
    %262 = tpu.dynamic_rotate %261 by %c17_i32_79 dim 1 : vector<2x256xf32>, i32 -> vector<2x256xf32>
    %263 = vector.extract_strided_slice %15 {offsets = [0, 0], sizes = [1, 256], strides = [1, 1]} : vector<9x256xf32> to vector<1x256xf32>
    %264 = vector.broadcast %263 : vector<1x256xf32> to vector<2x256xf32>
    %265 = arith.mulf %262, %264 : vector<2x256xf32>
    %266 = arith.addf %260, %265 : vector<2x256xf32>
    %267 = vector.extract_strided_slice %259 {offsets = [2, 0], sizes = [2, 256], strides = [1, 1]} : vector<18x256xf32> to vector<2x256xf32>
    %c16_i32_80 = arith.constant 16 : i32
    %268 = tpu.dynamic_rotate %267 by %c16_i32_80 dim 1 : vector<2x256xf32>, i32 -> vector<2x256xf32>
    %269 = vector.extract_strided_slice %15 {offsets = [1, 0], sizes = [1, 256], strides = [1, 1]} : vector<9x256xf32> to vector<1x256xf32>
    %270 = vector.broadcast %269 : vector<1x256xf32> to vector<2x256xf32>
    %271 = arith.mulf %268, %270 : vector<2x256xf32>
    %272 = arith.addf %266, %271 : vector<2x256xf32>
    %273 = vector.extract_strided_slice %259 {offsets = [4, 0], sizes = [2, 256], strides = [1, 1]} : vector<18x256xf32> to vector<2x256xf32>
    %c15_i32_81 = arith.constant 15 : i32
    %274 = tpu.dynamic_rotate %273 by %c15_i32_81 dim 1 : vector<2x256xf32>, i32 -> vector<2x256xf32>
    %275 = vector.extract_strided_slice %15 {offsets = [2, 0], sizes = [1, 256], strides = [1, 1]} : vector<9x256xf32> to vector<1x256xf32>
    %276 = vector.broadcast %275 : vector<1x256xf32> to vector<2x256xf32>
    %277 = arith.mulf %274, %276 : vector<2x256xf32>
    %278 = arith.addf %272, %277 : vector<2x256xf32>
    %279 = vector.extract_strided_slice %259 {offsets = [6, 0], sizes = [2, 256], strides = [1, 1]} : vector<18x256xf32> to vector<2x256xf32>
    %c1_i32_82 = arith.constant 1 : i32
    %280 = tpu.dynamic_rotate %279 by %c1_i32_82 dim 1 : vector<2x256xf32>, i32 -> vector<2x256xf32>
    %281 = vector.extract_strided_slice %15 {offsets = [3, 0], sizes = [1, 256], strides = [1, 1]} : vector<9x256xf32> to vector<1x256xf32>
    %282 = vector.broadcast %281 : vector<1x256xf32> to vector<2x256xf32>
    %283 = arith.mulf %280, %282 : vector<2x256xf32>
    %284 = arith.addf %278, %283 : vector<2x256xf32>
    %285 = vector.extract_strided_slice %259 {offsets = [8, 0], sizes = [2, 256], strides = [1, 1]} : vector<18x256xf32> to vector<2x256xf32>
    %286 = arith.addf %284, %285 : vector<2x256xf32>
    %287 = vector.extract_strided_slice %259 {offsets = [10, 0], sizes = [2, 256], strides = [1, 1]} : vector<18x256xf32> to vector<2x256xf32>
    %c255_i32_83 = arith.constant 255 : i32
    %288 = tpu.dynamic_rotate %287 by %c255_i32_83 dim 1 : vector<2x256xf32>, i32 -> vector<2x256xf32>
    %289 = vector.extract_strided_slice %15 {offsets = [5, 0], sizes = [1, 256], strides = [1, 1]} : vector<9x256xf32> to vector<1x256xf32>
    %290 = vector.broadcast %289 : vector<1x256xf32> to vector<2x256xf32>
    %291 = arith.mulf %288, %290 : vector<2x256xf32>
    %292 = arith.addf %286, %291 : vector<2x256xf32>
    %293 = vector.extract_strided_slice %259 {offsets = [12, 0], sizes = [2, 256], strides = [1, 1]} : vector<18x256xf32> to vector<2x256xf32>
    %c241_i32_84 = arith.constant 241 : i32
    %294 = tpu.dynamic_rotate %293 by %c241_i32_84 dim 1 : vector<2x256xf32>, i32 -> vector<2x256xf32>
    %295 = vector.extract_strided_slice %15 {offsets = [6, 0], sizes = [1, 256], strides = [1, 1]} : vector<9x256xf32> to vector<1x256xf32>
    %296 = vector.broadcast %295 : vector<1x256xf32> to vector<2x256xf32>
    %297 = arith.mulf %294, %296 : vector<2x256xf32>
    %298 = arith.addf %292, %297 : vector<2x256xf32>
    %299 = vector.extract_strided_slice %259 {offsets = [14, 0], sizes = [2, 256], strides = [1, 1]} : vector<18x256xf32> to vector<2x256xf32>
    %c240_i32_85 = arith.constant 240 : i32
    %300 = tpu.dynamic_rotate %299 by %c240_i32_85 dim 1 : vector<2x256xf32>, i32 -> vector<2x256xf32>
    %301 = vector.extract_strided_slice %15 {offsets = [7, 0], sizes = [1, 256], strides = [1, 1]} : vector<9x256xf32> to vector<1x256xf32>
    %302 = vector.broadcast %301 : vector<1x256xf32> to vector<2x256xf32>
    %303 = arith.mulf %300, %302 : vector<2x256xf32>
    %304 = arith.addf %298, %303 : vector<2x256xf32>
    %305 = vector.extract_strided_slice %259 {offsets = [16, 0], sizes = [2, 256], strides = [1, 1]} : vector<18x256xf32> to vector<2x256xf32>
    %c239_i32_86 = arith.constant 239 : i32
    %306 = tpu.dynamic_rotate %305 by %c239_i32_86 dim 1 : vector<2x256xf32>, i32 -> vector<2x256xf32>
    %307 = vector.extract_strided_slice %15 {offsets = [8, 0], sizes = [1, 256], strides = [1, 1]} : vector<9x256xf32> to vector<1x256xf32>
    %308 = vector.broadcast %307 : vector<1x256xf32> to vector<2x256xf32>
    %309 = arith.mulf %306, %308 : vector<2x256xf32>
    %310 = arith.addf %304, %309 : vector<2x256xf32>
    %c0_87 = arith.constant 0 : index
    %c14 = arith.constant 14 : index
    %c0_88 = arith.constant 0 : index
    %311 = vector.load %arg10[%c0_87, %c14, %c0_88] : memref<2x16x256xf32, #tpu.memory_space<vmem>>, vector<1x2x256xf32>
    %312 = vector.shape_cast %311 : vector<1x2x256xf32> to vector<2x256xf32>
    %313 = vector.shape_cast %310 : vector<2x256xf32> to vector<1x2x256xf32>
    tpu.vector_store %arg10[%c0_87, %c14, %c0_88], %313 {strides = array<i32>} : memref<2x16x256xf32, #tpu.memory_space<vmem>>, vector<1x2x256xf32>,
    %c1_89 = arith.constant 1 : index
    %c0_90 = arith.constant 0 : index
    %c0_91 = arith.constant 0 : index
    %314 = vector.load %arg1[%c1_89, %c0_90, %c0_91] : memref<2x8x256xf32, #tpu.memory_space<vmem>>, vector<1x8x256xf32>
    %315 = vector.shape_cast %314 : vector<1x8x256xf32> to vector<8x256xf32>
    %316 = vector.broadcast %2 : vector<8x1xf32> to vector<8x256xf32>
    %317 = arith.mulf %315, %316 : vector<8x256xf32>
    %318 = vector.broadcast %3 : vector<8x1xf32> to vector<8x256xf32>
    %319 = arith.addf %317, %318 : vector<8x256xf32>
    %cst_92 = arith.constant 0.000000e+00 : f32
    %320 = vector.broadcast %cst_92 : f32 to vector<8x256xf32>
    %321 = arith.maximumf %319, %320 : vector<8x256xf32>
    %cst_93 = arith.constant dense<0.000000e+00> : vector<8xf32>
    %322 = vector.multi_reduction <add>, %321, %cst_93 [1] : vector<8x256xf32> to vector<8xf32>
    %323 = vector.shape_cast %322 : vector<8xf32> to vector<8x1xf32>
    %cst_94 = arith.constant 2.560000e+02 : f32
    %324 = vector.broadcast %cst_94 : f32 to vector<8x1xf32>
    %325 = arith.divf %323, %324 : vector<8x1xf32>
    %cst_95 = arith.constant dense<0.000000e+00> : vector<2x1xf32>
    %326 = tpu.matmul %10, %325, %cst_95 {dimension_numbers = #tpu.dot_dimension_numbers<[1], [0], [0], [1], [0, 0, 1, 1], [], []>} : vector<2x8xf32>, vector<8x1xf32>, vector<2x1xf32> -> vector<2x1xf32>
    %327 = arith.addf %326, %6 : vector<2x1xf32>
    %cst_96 = arith.constant 0.000000e+00 : f32
    %328 = vector.broadcast %cst_96 : f32 to vector<2x1xf32>
    %329 = arith.maximumf %327, %328 : vector<2x1xf32>
    %cst_97 = arith.constant dense<0.000000e+00> : vector<8x1xf32>
    %330 = tpu.matmul %11, %329, %cst_97 {dimension_numbers = #tpu.dot_dimension_numbers<[1], [0], [0], [1], [0, 0, 1, 1], [], []>} : vector<8x2xf32>, vector<2x1xf32>, vector<8x1xf32> -> vector<8x1xf32>
    %331 = arith.addf %330, %7 : vector<8x1xf32>
    %cst_98 = arith.constant 5.000000e-01 : f32
    %332 = vector.broadcast %cst_98 : f32 to vector<8x1xf32>
    %333 = arith.mulf %332, %331 : vector<8x1xf32>
    %334 = math.tanh %333 : vector<8x1xf32>
    %cst_99 = arith.constant 1.000000e+00 : f32
    %335 = vector.broadcast %cst_99 : f32 to vector<8x1xf32>
    %336 = arith.addf %334, %335 : vector<8x1xf32>
    %cst_100 = arith.constant 5.000000e-01 : f32
    %337 = vector.broadcast %cst_100 : f32 to vector<8x1xf32>
    %338 = arith.mulf %337, %336 : vector<8x1xf32>
    %cst_101 = arith.constant dense<0.000000e+00> : vector<2x1xf32>
    %339 = tpu.matmul %12, %325, %cst_101 {dimension_numbers = #tpu.dot_dimension_numbers<[1], [0], [0], [1], [0, 0, 1, 1], [], []>} : vector<2x8xf32>, vector<8x1xf32>, vector<2x1xf32> -> vector<2x1xf32>
    %340 = arith.addf %339, %8 : vector<2x1xf32>
    %cst_102 = arith.constant 0.000000e+00 : f32
    %341 = vector.broadcast %cst_102 : f32 to vector<2x1xf32>
    %342 = arith.maximumf %340, %341 : vector<2x1xf32>
    %cst_103 = arith.constant dense<0.000000e+00> : vector<128x1xf32>
    %343 = tpu.matmul %13, %342, %cst_103 {dimension_numbers = #tpu.dot_dimension_numbers<[1], [0], [0], [1], [0, 0, 1, 1], [], []>} : vector<128x2xf32>, vector<2x1xf32>, vector<128x1xf32> -> vector<128x1xf32>
    %344 = arith.addf %343, %9 : vector<128x1xf32>
    %cst_104 = arith.constant 5.000000e-01 : f32
    %345 = vector.broadcast %cst_104 : f32 to vector<128x1xf32>
    %346 = arith.mulf %345, %344 : vector<128x1xf32>
    %347 = math.tanh %346 : vector<128x1xf32>
    %cst_105 = arith.constant 1.000000e+00 : f32
    %348 = vector.broadcast %cst_105 : f32 to vector<128x1xf32>
    %349 = arith.addf %347, %348 : vector<128x1xf32>
    %cst_106 = arith.constant 5.000000e-01 : f32
    %350 = vector.broadcast %cst_106 : f32 to vector<128x1xf32>
    %351 = arith.mulf %350, %349 : vector<128x1xf32>
    %c1_107 = arith.constant 1 : index
    %c0_108 = arith.constant 0 : index
    %c0_109 = arith.constant 0 : index
    %352 = vector.load %arg11[%c1_107, %c0_108, %c0_109] : memref<2x136x1xf32, #tpu.memory_space<vmem>>, vector<1x8x1xf32>
    %353 = vector.shape_cast %352 : vector<1x8x1xf32> to vector<8x1xf32>
    %354 = vector.shape_cast %338 : vector<8x1xf32> to vector<1x8x1xf32>
    tpu.vector_store %arg11[%c1_107, %c0_108, %c0_109], %354 {strides = array<i32>} : memref<2x136x1xf32, #tpu.memory_space<vmem>>, vector<1x8x1xf32>,
    %c1_110 = arith.constant 1 : index
    %c8_111 = arith.constant 8 : index
    %c0_112 = arith.constant 0 : index
    %355 = vector.load %arg11[%c1_110, %c8_111, %c0_112] : memref<2x136x1xf32, #tpu.memory_space<vmem>>, vector<1x128x1xf32>
    %356 = vector.shape_cast %355 : vector<1x128x1xf32> to vector<128x1xf32>
    %357 = vector.shape_cast %351 : vector<128x1xf32> to vector<1x128x1xf32>
    tpu.vector_store %arg11[%c1_110, %c8_111, %c0_112], %357 {strides = array<i32>} : memref<2x136x1xf32, #tpu.memory_space<vmem>>, vector<1x128x1xf32>,
    %358 = vector.broadcast %338 : vector<8x1xf32> to vector<8x256xf32>
    %359 = arith.mulf %321, %358 : vector<8x256xf32>
    %360 = arith.truncf %359 : vector<8x256xf32> to vector<8x256xbf16>
    %cst_113 = arith.constant dense<0.000000e+00> : vector<32x256xf32>
    %361 = tpu.matmul %14, %360, %cst_113 {dimension_numbers = #tpu.dot_dimension_numbers<[1], [0], [0], [1], [0, 0, 1, 1], [], []>} : vector<32x8xbf16>, vector<8x256xbf16>, vector<32x256xf32> -> vector<32x256xf32>
    %362 = vector.broadcast %4 : vector<32x1xf32> to vector<32x256xf32>
    %363 = arith.mulf %361, %362 : vector<32x256xf32>
    %364 = vector.broadcast %5 : vector<32x1xf32> to vector<32x256xf32>
    %365 = arith.addf %363, %364 : vector<32x256xf32>
    %cst_114 = arith.constant 0.000000e+00 : f32
    %366 = vector.broadcast %cst_114 : f32 to vector<32x256xf32>
    %367 = arith.maximumf %365, %366 : vector<32x256xf32>
    %368 = vector.extract_strided_slice %351 {offsets = [0, 0], sizes = [32, 1], strides = [1, 1]} : vector<128x1xf32> to vector<32x1xf32>
    %369 = vector.broadcast %368 : vector<32x1xf32> to vector<32x256xf32>
    %370 = arith.mulf %367, %369 : vector<32x256xf32>
    %371 = arith.truncf %370 : vector<32x256xf32> to vector<32x256xbf16>
    %c0_115 = arith.constant 0 : index
    %c0_116 = arith.constant 0 : index
    %c0_117 = arith.constant 0 : index
    %372 = vector.load %arg8[%c0_115, %c0_116, %c0_117] : memref<4x18x32xbf16, #tpu.memory_space<vmem>>, vector<1x18x32xbf16>
    %373 = vector.shape_cast %372 : vector<1x18x32xbf16> to vector<18x32xbf16>
    %cst_118 = arith.constant dense<0.000000e+00> : vector<18x256xf32>
    %374 = tpu.matmul %373, %371, %cst_118 {dimension_numbers = #tpu.dot_dimension_numbers<[1], [0], [0], [1], [0, 0, 1, 1], [], []>} : vector<18x32xbf16>, vector<32x256xbf16>, vector<18x256xf32> -> vector<18x256xf32>
    %cst_119 = arith.constant 0.000000e+00 : f32
    %375 = vector.broadcast %cst_119 : f32 to vector<2x256xf32>
    %376 = vector.extract_strided_slice %374 {offsets = [0, 0], sizes = [2, 256], strides = [1, 1]} : vector<18x256xf32> to vector<2x256xf32>
    %c17_i32_120 = arith.constant 17 : i32
    %377 = tpu.dynamic_rotate %376 by %c17_i32_120 dim 1 : vector<2x256xf32>, i32 -> vector<2x256xf32>
    %378 = vector.extract_strided_slice %15 {offsets = [0, 0], sizes = [1, 256], strides = [1, 1]} : vector<9x256xf32> to vector<1x256xf32>
    %379 = vector.broadcast %378 : vector<1x256xf32> to vector<2x256xf32>
    %380 = arith.mulf %377, %379 : vector<2x256xf32>
    %381 = arith.addf %375, %380 : vector<2x256xf32>
    %382 = vector.extract_strided_slice %374 {offsets = [2, 0], sizes = [2, 256], strides = [1, 1]} : vector<18x256xf32> to vector<2x256xf32>
    %c16_i32_121 = arith.constant 16 : i32
    %383 = tpu.dynamic_rotate %382 by %c16_i32_121 dim 1 : vector<2x256xf32>, i32 -> vector<2x256xf32>
    %384 = vector.extract_strided_slice %15 {offsets = [1, 0], sizes = [1, 256], strides = [1, 1]} : vector<9x256xf32> to vector<1x256xf32>
    %385 = vector.broadcast %384 : vector<1x256xf32> to vector<2x256xf32>
    %386 = arith.mulf %383, %385 : vector<2x256xf32>
    %387 = arith.addf %381, %386 : vector<2x256xf32>
    %388 = vector.extract_strided_slice %374 {offsets = [4, 0], sizes = [2, 256], strides = [1, 1]} : vector<18x256xf32> to vector<2x256xf32>
    %c15_i32_122 = arith.constant 15 : i32
    %389 = tpu.dynamic_rotate %388 by %c15_i32_122 dim 1 : vector<2x256xf32>, i32 -> vector<2x256xf32>
    %390 = vector.extract_strided_slice %15 {offsets = [2, 0], sizes = [1, 256], strides = [1, 1]} : vector<9x256xf32> to vector<1x256xf32>
    %391 = vector.broadcast %390 : vector<1x256xf32> to vector<2x256xf32>
    %392 = arith.mulf %389, %391 : vector<2x256xf32>
    %393 = arith.addf %387, %392 : vector<2x256xf32>
    %394 = vector.extract_strided_slice %374 {offsets = [6, 0], sizes = [2, 256], strides = [1, 1]} : vector<18x256xf32> to vector<2x256xf32>
    %c1_i32_123 = arith.constant 1 : i32
    %395 = tpu.dynamic_rotate %394 by %c1_i32_123 dim 1 : vector<2x256xf32>, i32 -> vector<2x256xf32>
    %396 = vector.extract_strided_slice %15 {offsets = [3, 0], sizes = [1, 256], strides = [1, 1]} : vector<9x256xf32> to vector<1x256xf32>
    %397 = vector.broadcast %396 : vector<1x256xf32> to vector<2x256xf32>
    %398 = arith.mulf %395, %397 : vector<2x256xf32>
    %399 = arith.addf %393, %398 : vector<2x256xf32>
    %400 = vector.extract_strided_slice %374 {offsets = [8, 0], sizes = [2, 256], strides = [1, 1]} : vector<18x256xf32> to vector<2x256xf32>
    %401 = arith.addf %399, %400 : vector<2x256xf32>
    %402 = vector.extract_strided_slice %374 {offsets = [10, 0], sizes = [2, 256], strides = [1, 1]} : vector<18x256xf32> to vector<2x256xf32>
    %c255_i32_124 = arith.constant 255 : i32
    %403 = tpu.dynamic_rotate %402 by %c255_i32_124 dim 1 : vector<2x256xf32>, i32 -> vector<2x256xf32>
    %404 = vector.extract_strided_slice %15 {offsets = [5, 0], sizes = [1, 256], strides = [1, 1]} : vector<9x256xf32> to vector<1x256xf32>
    %405 = vector.broadcast %404 : vector<1x256xf32> to vector<2x256xf32>
    %406 = arith.mulf %403, %405 : vector<2x256xf32>
    %407 = arith.addf %401, %406 : vector<2x256xf32>
    %408 = vector.extract_strided_slice %374 {offsets = [12, 0], sizes = [2, 256], strides = [1, 1]} : vector<18x256xf32> to vector<2x256xf32>
    %c241_i32_125 = arith.constant 241 : i32
    %409 = tpu.dynamic_rotate %408 by %c241_i32_125 dim 1 : vector<2x256xf32>, i32 -> vector<2x256xf32>
    %410 = vector.extract_strided_slice %15 {offsets = [6, 0], sizes = [1, 256], strides = [1, 1]} : vector<9x256xf32> to vector<1x256xf32>
    %411 = vector.broadcast %410 : vector<1x256xf32> to vector<2x256xf32>
    %412 = arith.mulf %409, %411 : vector<2x256xf32>
    %413 = arith.addf %407, %412 : vector<2x256xf32>
    %414 = vector.extract_strided_slice %374 {offsets = [14, 0], sizes = [2, 256], strides = [1, 1]} : vector<18x256xf32> to vector<2x256xf32>
    %c240_i32_126 = arith.constant 240 : i32
    %415 = tpu.dynamic_rotate %414 by %c240_i32_126 dim 1 : vector<2x256xf32>, i32 -> vector<2x256xf32>
    %416 = vector.extract_strided_slice %15 {offsets = [7, 0], sizes = [1, 256], strides = [1, 1]} : vector<9x256xf32> to vector<1x256xf32>
    %417 = vector.broadcast %416 : vector<1x256xf32> to vector<2x256xf32>
    %418 = arith.mulf %415, %417 : vector<2x256xf32>
    %419 = arith.addf %413, %418 : vector<2x256xf32>
    %420 = vector.extract_strided_slice %374 {offsets = [16, 0], sizes = [2, 256], strides = [1, 1]} : vector<18x256xf32> to vector<2x256xf32>
    %c239_i32_127 = arith.constant 239 : i32
    %421 = tpu.dynamic_rotate %420 by %c239_i32_127 dim 1 : vector<2x256xf32>, i32 -> vector<2x256xf32>
    %422 = vector.extract_strided_slice %15 {offsets = [8, 0], sizes = [1, 256], strides = [1, 1]} : vector<9x256xf32> to vector<1x256xf32>
    %423 = vector.broadcast %422 : vector<1x256xf32> to vector<2x256xf32>
    %424 = arith.mulf %421, %423 : vector<2x256xf32>
    %425 = arith.addf %419, %424 : vector<2x256xf32>
    %c1_128 = arith.constant 1 : index
    %c8_129 = arith.constant 8 : index
    %c0_130 = arith.constant 0 : index
    %426 = vector.load %arg10[%c1_128, %c8_129, %c0_130] : memref<2x16x256xf32, #tpu.memory_space<vmem>>, vector<1x2x256xf32>
    %427 = vector.shape_cast %426 : vector<1x2x256xf32> to vector<2x256xf32>
    %428 = vector.shape_cast %425 : vector<2x256xf32> to vector<1x2x256xf32>
    tpu.vector_store %arg10[%c1_128, %c8_129, %c0_130], %428 {strides = array<i32>} : memref<2x16x256xf32, #tpu.memory_space<vmem>>, vector<1x2x256xf32>,
    %429 = vector.extract_strided_slice %351 {offsets = [32, 0], sizes = [32, 1], strides = [1, 1]} : vector<128x1xf32> to vector<32x1xf32>
    %430 = vector.broadcast %429 : vector<32x1xf32> to vector<32x256xf32>
    %431 = arith.mulf %367, %430 : vector<32x256xf32>
    %432 = arith.truncf %431 : vector<32x256xf32> to vector<32x256xbf16>
    %c1_131 = arith.constant 1 : index
    %c0_132 = arith.constant 0 : index
    %c0_133 = arith.constant 0 : index
    %433 = vector.load %arg8[%c1_131, %c0_132, %c0_133] : memref<4x18x32xbf16, #tpu.memory_space<vmem>>, vector<1x18x32xbf16>
    %434 = vector.shape_cast %433 : vector<1x18x32xbf16> to vector<18x32xbf16>
    %cst_134 = arith.constant dense<0.000000e+00> : vector<18x256xf32>
    %435 = tpu.matmul %434, %432, %cst_134 {dimension_numbers = #tpu.dot_dimension_numbers<[1], [0], [0], [1], [0, 0, 1, 1], [], []>} : vector<18x32xbf16>, vector<32x256xbf16>, vector<18x256xf32> -> vector<18x256xf32>
    %cst_135 = arith.constant 0.000000e+00 : f32
    %436 = vector.broadcast %cst_135 : f32 to vector<2x256xf32>
    %437 = vector.extract_strided_slice %435 {offsets = [0, 0], sizes = [2, 256], strides = [1, 1]} : vector<18x256xf32> to vector<2x256xf32>
    %c17_i32_136 = arith.constant 17 : i32
    %438 = tpu.dynamic_rotate %437 by %c17_i32_136 dim 1 : vector<2x256xf32>, i32 -> vector<2x256xf32>
    %439 = vector.extract_strided_slice %15 {offsets = [0, 0], sizes = [1, 256], strides = [1, 1]} : vector<9x256xf32> to vector<1x256xf32>
    %440 = vector.broadcast %439 : vector<1x256xf32> to vector<2x256xf32>
    %441 = arith.mulf %438, %440 : vector<2x256xf32>
    %442 = arith.addf %436, %441 : vector<2x256xf32>
    %443 = vector.extract_strided_slice %435 {offsets = [2, 0], sizes = [2, 256], strides = [1, 1]} : vector<18x256xf32> to vector<2x256xf32>
    %c16_i32_137 = arith.constant 16 : i32
    %444 = tpu.dynamic_rotate %443 by %c16_i32_137 dim 1 : vector<2x256xf32>, i32 -> vector<2x256xf32>
    %445 = vector.extract_strided_slice %15 {offsets = [1, 0], sizes = [1, 256], strides = [1, 1]} : vector<9x256xf32> to vector<1x256xf32>
    %446 = vector.broadcast %445 : vector<1x256xf32> to vector<2x256xf32>
    %447 = arith.mulf %444, %446 : vector<2x256xf32>
    %448 = arith.addf %442, %447 : vector<2x256xf32>
    %449 = vector.extract_strided_slice %435 {offsets = [4, 0], sizes = [2, 256], strides = [1, 1]} : vector<18x256xf32> to vector<2x256xf32>
    %c15_i32_138 = arith.constant 15 : i32
    %450 = tpu.dynamic_rotate %449 by %c15_i32_138 dim 1 : vector<2x256xf32>, i32 -> vector<2x256xf32>
    %451 = vector.extract_strided_slice %15 {offsets = [2, 0], sizes = [1, 256], strides = [1, 1]} : vector<9x256xf32> to vector<1x256xf32>
    %452 = vector.broadcast %451 : vector<1x256xf32> to vector<2x256xf32>
    %453 = arith.mulf %450, %452 : vector<2x256xf32>
    %454 = arith.addf %448, %453 : vector<2x256xf32>
    %455 = vector.extract_strided_slice %435 {offsets = [6, 0], sizes = [2, 256], strides = [1, 1]} : vector<18x256xf32> to vector<2x256xf32>
    %c1_i32_139 = arith.constant 1 : i32
    %456 = tpu.dynamic_rotate %455 by %c1_i32_139 dim 1 : vector<2x256xf32>, i32 -> vector<2x256xf32>
    %457 = vector.extract_strided_slice %15 {offsets = [3, 0], sizes = [1, 256], strides = [1, 1]} : vector<9x256xf32> to vector<1x256xf32>
    %458 = vector.broadcast %457 : vector<1x256xf32> to vector<2x256xf32>
    %459 = arith.mulf %456, %458 : vector<2x256xf32>
    %460 = arith.addf %454, %459 : vector<2x256xf32>
    %461 = vector.extract_strided_slice %435 {offsets = [8, 0], sizes = [2, 256], strides = [1, 1]} : vector<18x256xf32> to vector<2x256xf32>
    %462 = arith.addf %460, %461 : vector<2x256xf32>
    %463 = vector.extract_strided_slice %435 {offsets = [10, 0], sizes = [2, 256], strides = [1, 1]} : vector<18x256xf32> to vector<2x256xf32>
    %c255_i32_140 = arith.constant 255 : i32
    %464 = tpu.dynamic_rotate %463 by %c255_i32_140 dim 1 : vector<2x256xf32>, i32 -> vector<2x256xf32>
    %465 = vector.extract_strided_slice %15 {offsets = [5, 0], sizes = [1, 256], strides = [1, 1]} : vector<9x256xf32> to vector<1x256xf32>
    %466 = vector.broadcast %465 : vector<1x256xf32> to vector<2x256xf32>
    %467 = arith.mulf %464, %466 : vector<2x256xf32>
    %468 = arith.addf %462, %467 : vector<2x256xf32>
    %469 = vector.extract_strided_slice %435 {offsets = [12, 0], sizes = [2, 256], strides = [1, 1]} : vector<18x256xf32> to vector<2x256xf32>
    %c241_i32_141 = arith.constant 241 : i32
    %470 = tpu.dynamic_rotate %469 by %c241_i32_141 dim 1 : vector<2x256xf32>, i32 -> vector<2x256xf32>
    %471 = vector.extract_strided_slice %15 {offsets = [6, 0], sizes = [1, 256], strides = [1, 1]} : vector<9x256xf32> to vector<1x256xf32>
    %472 = vector.broadcast %471 : vector<1x256xf32> to vector<2x256xf32>
    %473 = arith.mulf %470, %472 : vector<2x256xf32>
    %474 = arith.addf %468, %473 : vector<2x256xf32>
    %475 = vector.extract_strided_slice %435 {offsets = [14, 0], sizes = [2, 256], strides = [1, 1]} : vector<18x256xf32> to vector<2x256xf32>
    %c240_i32_142 = arith.constant 240 : i32
    %476 = tpu.dynamic_rotate %475 by %c240_i32_142 dim 1 : vector<2x256xf32>, i32 -> vector<2x256xf32>
    %477 = vector.extract_strided_slice %15 {offsets = [7, 0], sizes = [1, 256], strides = [1, 1]} : vector<9x256xf32> to vector<1x256xf32>
    %478 = vector.broadcast %477 : vector<1x256xf32> to vector<2x256xf32>
    %479 = arith.mulf %476, %478 : vector<2x256xf32>
    %480 = arith.addf %474, %479 : vector<2x256xf32>
    %481 = vector.extract_strided_slice %435 {offsets = [16, 0], sizes = [2, 256], strides = [1, 1]} : vector<18x256xf32> to vector<2x256xf32>
    %c239_i32_143 = arith.constant 239 : i32
    %482 = tpu.dynamic_rotate %481 by %c239_i32_143 dim 1 : vector<2x256xf32>, i32 -> vector<2x256xf32>
    %483 = vector.extract_strided_slice %15 {offsets = [8, 0], sizes = [1, 256], strides = [1, 1]} : vector<9x256xf32> to vector<1x256xf32>
    %484 = vector.broadcast %483 : vector<1x256xf32> to vector<2x256xf32>
    %485 = arith.mulf %482, %484 : vector<2x256xf32>
    %486 = arith.addf %480, %485 : vector<2x256xf32>
    %c1_144 = arith.constant 1 : index
    %c10_145 = arith.constant 10 : index
    %c0_146 = arith.constant 0 : index
    %487 = vector.load %arg10[%c1_144, %c10_145, %c0_146] : memref<2x16x256xf32, #tpu.memory_space<vmem>>, vector<1x2x256xf32>
    %488 = vector.shape_cast %487 : vector<1x2x256xf32> to vector<2x256xf32>
    %489 = vector.shape_cast %486 : vector<2x256xf32> to vector<1x2x256xf32>
    tpu.vector_store %arg10[%c1_144, %c10_145, %c0_146], %489 {strides = array<i32>} : memref<2x16x256xf32, #tpu.memory_space<vmem>>, vector<1x2x256xf32>,
    %490 = vector.extract_strided_slice %351 {offsets = [64, 0], sizes = [32, 1], strides = [1, 1]} : vector<128x1xf32> to vector<32x1xf32>
    %491 = vector.broadcast %490 : vector<32x1xf32> to vector<32x256xf32>
    %492 = arith.mulf %367, %491 : vector<32x256xf32>
    %493 = arith.truncf %492 : vector<32x256xf32> to vector<32x256xbf16>
    %c2_147 = arith.constant 2 : index
    %c0_148 = arith.constant 0 : index
    %c0_149 = arith.constant 0 : index
    %494 = vector.load %arg8[%c2_147, %c0_148, %c0_149] : memref<4x18x32xbf16, #tpu.memory_space<vmem>>, vector<1x18x32xbf16>
    %495 = vector.shape_cast %494 : vector<1x18x32xbf16> to vector<18x32xbf16>
    %cst_150 = arith.constant dense<0.000000e+00> : vector<18x256xf32>
    %496 = tpu.matmul %495, %493, %cst_150 {dimension_numbers = #tpu.dot_dimension_numbers<[1], [0], [0], [1], [0, 0, 1, 1], [], []>} : vector<18x32xbf16>, vector<32x256xbf16>, vector<18x256xf32> -> vector<18x256xf32>
    %cst_151 = arith.constant 0.000000e+00 : f32
    %497 = vector.broadcast %cst_151 : f32 to vector<2x256xf32>
    %498 = vector.extract_strided_slice %496 {offsets = [0, 0], sizes = [2, 256], strides = [1, 1]} : vector<18x256xf32> to vector<2x256xf32>
    %c17_i32_152 = arith.constant 17 : i32
    %499 = tpu.dynamic_rotate %498 by %c17_i32_152 dim 1 : vector<2x256xf32>, i32 -> vector<2x256xf32>
    %500 = vector.extract_strided_slice %15 {offsets = [0, 0], sizes = [1, 256], strides = [1, 1]} : vector<9x256xf32> to vector<1x256xf32>
    %501 = vector.broadcast %500 : vector<1x256xf32> to vector<2x256xf32>
    %502 = arith.mulf %499, %501 : vector<2x256xf32>
    %503 = arith.addf %497, %502 : vector<2x256xf32>
    %504 = vector.extract_strided_slice %496 {offsets = [2, 0], sizes = [2, 256], strides = [1, 1]} : vector<18x256xf32> to vector<2x256xf32>
    %c16_i32_153 = arith.constant 16 : i32
    %505 = tpu.dynamic_rotate %504 by %c16_i32_153 dim 1 : vector<2x256xf32>, i32 -> vector<2x256xf32>
    %506 = vector.extract_strided_slice %15 {offsets = [1, 0], sizes = [1, 256], strides = [1, 1]} : vector<9x256xf32> to vector<1x256xf32>
    %507 = vector.broadcast %506 : vector<1x256xf32> to vector<2x256xf32>
    %508 = arith.mulf %505, %507 : vector<2x256xf32>
    %509 = arith.addf %503, %508 : vector<2x256xf32>
    %510 = vector.extract_strided_slice %496 {offsets = [4, 0], sizes = [2, 256], strides = [1, 1]} : vector<18x256xf32> to vector<2x256xf32>
    %c15_i32_154 = arith.constant 15 : i32
    %511 = tpu.dynamic_rotate %510 by %c15_i32_154 dim 1 : vector<2x256xf32>, i32 -> vector<2x256xf32>
    %512 = vector.extract_strided_slice %15 {offsets = [2, 0], sizes = [1, 256], strides = [1, 1]} : vector<9x256xf32> to vector<1x256xf32>
    %513 = vector.broadcast %512 : vector<1x256xf32> to vector<2x256xf32>
    %514 = arith.mulf %511, %513 : vector<2x256xf32>
    %515 = arith.addf %509, %514 : vector<2x256xf32>
    %516 = vector.extract_strided_slice %496 {offsets = [6, 0], sizes = [2, 256], strides = [1, 1]} : vector<18x256xf32> to vector<2x256xf32>
    %c1_i32_155 = arith.constant 1 : i32
    %517 = tpu.dynamic_rotate %516 by %c1_i32_155 dim 1 : vector<2x256xf32>, i32 -> vector<2x256xf32>
    %518 = vector.extract_strided_slice %15 {offsets = [3, 0], sizes = [1, 256], strides = [1, 1]} : vector<9x256xf32> to vector<1x256xf32>
    %519 = vector.broadcast %518 : vector<1x256xf32> to vector<2x256xf32>
    %520 = arith.mulf %517, %519 : vector<2x256xf32>
    %521 = arith.addf %515, %520 : vector<2x256xf32>
    %522 = vector.extract_strided_slice %496 {offsets = [8, 0], sizes = [2, 256], strides = [1, 1]} : vector<18x256xf32> to vector<2x256xf32>
    %523 = arith.addf %521, %522 : vector<2x256xf32>
    %524 = vector.extract_strided_slice %496 {offsets = [10, 0], sizes = [2, 256], strides = [1, 1]} : vector<18x256xf32> to vector<2x256xf32>
    %c255_i32_156 = arith.constant 255 : i32
    %525 = tpu.dynamic_rotate %524 by %c255_i32_156 dim 1 : vector<2x256xf32>, i32 -> vector<2x256xf32>
    %526 = vector.extract_strided_slice %15 {offsets = [5, 0], sizes = [1, 256], strides = [1, 1]} : vector<9x256xf32> to vector<1x256xf32>
    %527 = vector.broadcast %526 : vector<1x256xf32> to vector<2x256xf32>
    %528 = arith.mulf %525, %527 : vector<2x256xf32>
    %529 = arith.addf %523, %528 : vector<2x256xf32>
    %530 = vector.extract_strided_slice %496 {offsets = [12, 0], sizes = [2, 256], strides = [1, 1]} : vector<18x256xf32> to vector<2x256xf32>
    %c241_i32_157 = arith.constant 241 : i32
    %531 = tpu.dynamic_rotate %530 by %c241_i32_157 dim 1 : vector<2x256xf32>, i32 -> vector<2x256xf32>
    %532 = vector.extract_strided_slice %15 {offsets = [6, 0], sizes = [1, 256], strides = [1, 1]} : vector<9x256xf32> to vector<1x256xf32>
    %533 = vector.broadcast %532 : vector<1x256xf32> to vector<2x256xf32>
    %534 = arith.mulf %531, %533 : vector<2x256xf32>
    %535 = arith.addf %529, %534 : vector<2x256xf32>
    %536 = vector.extract_strided_slice %496 {offsets = [14, 0], sizes = [2, 256], strides = [1, 1]} : vector<18x256xf32> to vector<2x256xf32>
    %c240_i32_158 = arith.constant 240 : i32
    %537 = tpu.dynamic_rotate %536 by %c240_i32_158 dim 1 : vector<2x256xf32>, i32 -> vector<2x256xf32>
    %538 = vector.extract_strided_slice %15 {offsets = [7, 0], sizes = [1, 256], strides = [1, 1]} : vector<9x256xf32> to vector<1x256xf32>
    %539 = vector.broadcast %538 : vector<1x256xf32> to vector<2x256xf32>
    %540 = arith.mulf %537, %539 : vector<2x256xf32>
    %541 = arith.addf %535, %540 : vector<2x256xf32>
    %542 = vector.extract_strided_slice %496 {offsets = [16, 0], sizes = [2, 256], strides = [1, 1]} : vector<18x256xf32> to vector<2x256xf32>
    %c239_i32_159 = arith.constant 239 : i32
    %543 = tpu.dynamic_rotate %542 by %c239_i32_159 dim 1 : vector<2x256xf32>, i32 -> vector<2x256xf32>
    %544 = vector.extract_strided_slice %15 {offsets = [8, 0], sizes = [1, 256], strides = [1, 1]} : vector<9x256xf32> to vector<1x256xf32>
    %545 = vector.broadcast %544 : vector<1x256xf32> to vector<2x256xf32>
    %546 = arith.mulf %543, %545 : vector<2x256xf32>
    %547 = arith.addf %541, %546 : vector<2x256xf32>
    %c1_160 = arith.constant 1 : index
    %c12_161 = arith.constant 12 : index
    %c0_162 = arith.constant 0 : index
    %548 = vector.load %arg10[%c1_160, %c12_161, %c0_162] : memref<2x16x256xf32, #tpu.memory_space<vmem>>, vector<1x2x256xf32>
    %549 = vector.shape_cast %548 : vector<1x2x256xf32> to vector<2x256xf32>
    %550 = vector.shape_cast %547 : vector<2x256xf32> to vector<1x2x256xf32>
    tpu.vector_store %arg10[%c1_160, %c12_161, %c0_162], %550 {strides = array<i32>} : memref<2x16x256xf32, #tpu.memory_space<vmem>>, vector<1x2x256xf32>,
    %551 = vector.extract_strided_slice %351 {offsets = [96, 0], sizes = [32, 1], strides = [1, 1]} : vector<128x1xf32> to vector<32x1xf32>
    %552 = vector.broadcast %551 : vector<32x1xf32> to vector<32x256xf32>
    %553 = arith.mulf %367, %552 : vector<32x256xf32>
    %554 = arith.truncf %553 : vector<32x256xf32> to vector<32x256xbf16>
    %c3_163 = arith.constant 3 : index
    %c0_164 = arith.constant 0 : index
    %c0_165 = arith.constant 0 : index
    %555 = vector.load %arg8[%c3_163, %c0_164, %c0_165] : memref<4x18x32xbf16, #tpu.memory_space<vmem>>, vector<1x18x32xbf16>
    %556 = vector.shape_cast %555 : vector<1x18x32xbf16> to vector<18x32xbf16>
    %cst_166 = arith.constant dense<0.000000e+00> : vector<18x256xf32>
    %557 = tpu.matmul %556, %554, %cst_166 {dimension_numbers = #tpu.dot_dimension_numbers<[1], [0], [0], [1], [0, 0, 1, 1], [], []>} : vector<18x32xbf16>, vector<32x256xbf16>, vector<18x256xf32> -> vector<18x256xf32>
    %cst_167 = arith.constant 0.000000e+00 : f32
    %558 = vector.broadcast %cst_167 : f32 to vector<2x256xf32>
    %559 = vector.extract_strided_slice %557 {offsets = [0, 0], sizes = [2, 256], strides = [1, 1]} : vector<18x256xf32> to vector<2x256xf32>
    %c17_i32_168 = arith.constant 17 : i32
    %560 = tpu.dynamic_rotate %559 by %c17_i32_168 dim 1 : vector<2x256xf32>, i32 -> vector<2x256xf32>
    %561 = vector.extract_strided_slice %15 {offsets = [0, 0], sizes = [1, 256], strides = [1, 1]} : vector<9x256xf32> to vector<1x256xf32>
    %562 = vector.broadcast %561 : vector<1x256xf32> to vector<2x256xf32>
    %563 = arith.mulf %560, %562 : vector<2x256xf32>
    %564 = arith.addf %558, %563 : vector<2x256xf32>
    %565 = vector.extract_strided_slice %557 {offsets = [2, 0], sizes = [2, 256], strides = [1, 1]} : vector<18x256xf32> to vector<2x256xf32>
    %c16_i32_169 = arith.constant 16 : i32
    %566 = tpu.dynamic_rotate %565 by %c16_i32_169 dim 1 : vector<2x256xf32>, i32 -> vector<2x256xf32>
    %567 = vector.extract_strided_slice %15 {offsets = [1, 0], sizes = [1, 256], strides = [1, 1]} : vector<9x256xf32> to vector<1x256xf32>
    %568 = vector.broadcast %567 : vector<1x256xf32> to vector<2x256xf32>
    %569 = arith.mulf %566, %568 : vector<2x256xf32>
    %570 = arith.addf %564, %569 : vector<2x256xf32>
    %571 = vector.extract_strided_slice %557 {offsets = [4, 0], sizes = [2, 256], strides = [1, 1]} : vector<18x256xf32> to vector<2x256xf32>
    %c15_i32_170 = arith.constant 15 : i32
    %572 = tpu.dynamic_rotate %571 by %c15_i32_170 dim 1 : vector<2x256xf32>, i32 -> vector<2x256xf32>
    %573 = vector.extract_strided_slice %15 {offsets = [2, 0], sizes = [1, 256], strides = [1, 1]} : vector<9x256xf32> to vector<1x256xf32>
    %574 = vector.broadcast %573 : vector<1x256xf32> to vector<2x256xf32>
    %575 = arith.mulf %572, %574 : vector<2x256xf32>
    %576 = arith.addf %570, %575 : vector<2x256xf32>
    %577 = vector.extract_strided_slice %557 {offsets = [6, 0], sizes = [2, 256], strides = [1, 1]} : vector<18x256xf32> to vector<2x256xf32>
    %c1_i32_171 = arith.constant 1 : i32
    %578 = tpu.dynamic_rotate %577 by %c1_i32_171 dim 1 : vector<2x256xf32>, i32 -> vector<2x256xf32>
    %579 = vector.extract_strided_slice %15 {offsets = [3, 0], sizes = [1, 256], strides = [1, 1]} : vector<9x256xf32> to vector<1x256xf32>
    %580 = vector.broadcast %579 : vector<1x256xf32> to vector<2x256xf32>
    %581 = arith.mulf %578, %580 : vector<2x256xf32>
    %582 = arith.addf %576, %581 : vector<2x256xf32>
    %583 = vector.extract_strided_slice %557 {offsets = [8, 0], sizes = [2, 256], strides = [1, 1]} : vector<18x256xf32> to vector<2x256xf32>
    %584 = arith.addf %582, %583 : vector<2x256xf32>
    %585 = vector.extract_strided_slice %557 {offsets = [10, 0], sizes = [2, 256], strides = [1, 1]} : vector<18x256xf32> to vector<2x256xf32>
    %c255_i32_172 = arith.constant 255 : i32
    %586 = tpu.dynamic_rotate %585 by %c255_i32_172 dim 1 : vector<2x256xf32>, i32 -> vector<2x256xf32>
    %587 = vector.extract_strided_slice %15 {offsets = [5, 0], sizes = [1, 256], strides = [1, 1]} : vector<9x256xf32> to vector<1x256xf32>
    %588 = vector.broadcast %587 : vector<1x256xf32> to vector<2x256xf32>
    %589 = arith.mulf %586, %588 : vector<2x256xf32>
    %590 = arith.addf %584, %589 : vector<2x256xf32>
    %591 = vector.extract_strided_slice %557 {offsets = [12, 0], sizes = [2, 256], strides = [1, 1]} : vector<18x256xf32> to vector<2x256xf32>
    %c241_i32_173 = arith.constant 241 : i32
    %592 = tpu.dynamic_rotate %591 by %c241_i32_173 dim 1 : vector<2x256xf32>, i32 -> vector<2x256xf32>
    %593 = vector.extract_strided_slice %15 {offsets = [6, 0], sizes = [1, 256], strides = [1, 1]} : vector<9x256xf32> to vector<1x256xf32>
    %594 = vector.broadcast %593 : vector<1x256xf32> to vector<2x256xf32>
    %595 = arith.mulf %592, %594 : vector<2x256xf32>
    %596 = arith.addf %590, %595 : vector<2x256xf32>
    %597 = vector.extract_strided_slice %557 {offsets = [14, 0], sizes = [2, 256], strides = [1, 1]} : vector<18x256xf32> to vector<2x256xf32>
    %c240_i32_174 = arith.constant 240 : i32
    %598 = tpu.dynamic_rotate %597 by %c240_i32_174 dim 1 : vector<2x256xf32>, i32 -> vector<2x256xf32>
    %599 = vector.extract_strided_slice %15 {offsets = [7, 0], sizes = [1, 256], strides = [1, 1]} : vector<9x256xf32> to vector<1x256xf32>
    %600 = vector.broadcast %599 : vector<1x256xf32> to vector<2x256xf32>
    %601 = arith.mulf %598, %600 : vector<2x256xf32>
    %602 = arith.addf %596, %601 : vector<2x256xf32>
    %603 = vector.extract_strided_slice %557 {offsets = [16, 0], sizes = [2, 256], strides = [1, 1]} : vector<18x256xf32> to vector<2x256xf32>
    %c239_i32_175 = arith.constant 239 : i32
    %604 = tpu.dynamic_rotate %603 by %c239_i32_175 dim 1 : vector<2x256xf32>, i32 -> vector<2x256xf32>
    %605 = vector.extract_strided_slice %15 {offsets = [8, 0], sizes = [1, 256], strides = [1, 1]} : vector<9x256xf32> to vector<1x256xf32>
    %606 = vector.broadcast %605 : vector<1x256xf32> to vector<2x256xf32>
    %607 = arith.mulf %604, %606 : vector<2x256xf32>
    %608 = arith.addf %602, %607 : vector<2x256xf32>
    %c1_176 = arith.constant 1 : index
    %c14_177 = arith.constant 14 : index
    %c0_178 = arith.constant 0 : index
    %609 = vector.load %arg10[%c1_176, %c14_177, %c0_178] : memref<2x16x256xf32, #tpu.memory_space<vmem>>, vector<1x2x256xf32>
    %610 = vector.shape_cast %609 : vector<1x2x256xf32> to vector<2x256xf32>
    %611 = vector.shape_cast %608 : vector<2x256xf32> to vector<1x2x256xf32>
    tpu.vector_store %arg10[%c1_176, %c14_177, %c0_178], %611 {strides = array<i32>} : memref<2x16x256xf32, #tpu.memory_space<vmem>>, vector<1x2x256xf32>,
    %c0_i32_179 = arith.constant 0 : i32
    %c0_i32_180 = arith.constant 0 : i32
    %c0_i32_181 = arith.constant 0 : i32
    %612 = tpu.memref_slice %arg10[%c0_i32_179, %c0_i32_180, %c0_i32_181] : memref<2x16x256xf32, #tpu.memory_space<vmem>> -> memref<2x8x256xf32, #tpu.memory_space<vmem>>
    tpu.wait_dma2 semaphore(%arg12 : memref<!tpu.dma_semaphore, #tpu.memory_space<semaphore_mem>>) src(%arg1 : memref<2x8x256xf32, #tpu.memory_space<vmem>>) dst(%612 : memref<2x8x256xf32, #tpu.memory_space<vmem>>)
    return
  }
  func.func @transform_0(%arg0: i32) -> (i32, i32, i32) {
    %c0_i32 = arith.constant 0 : i32
    %c0_i32_0 = arith.constant 0 : i32
    %c0_i32_1 = arith.constant 0 : i32
    return %arg0, %c0_i32, %c0_i32_0 : i32, i32, i32
  }
  func.func @transform_1(%arg0: i32) -> (i32, i32) {
    %c0_i32 = arith.constant 0 : i32
    %c0_i32_0 = arith.constant 0 : i32
    %c0_i32_1 = arith.constant 0 : i32
    return %c0_i32, %c0_i32_0 : i32, i32
  }
  func.func @transform_2(%arg0: i32) -> (i32, i32) {
    %c0_i32 = arith.constant 0 : i32
    %c0_i32_0 = arith.constant 0 : i32
    %c0_i32_1 = arith.constant 0 : i32
    return %c0_i32, %c0_i32_0 : i32, i32
  }
  func.func @transform_3(%arg0: i32) -> (i32, i32) {
    %c0_i32 = arith.constant 0 : i32
    %c0_i32_0 = arith.constant 0 : i32
    %c0_i32_1 = arith.constant 0 : i32
    return %c0_i32, %c0_i32_0 : i32, i32
  }
  func.func @transform_4(%arg0: i32) -> (i32, i32) {
    %c0_i32 = arith.constant 0 : i32
    %c0_i32_0 = arith.constant 0 : i32
    %c0_i32_1 = arith.constant 0 : i32
    return %c0_i32, %c0_i32_0 : i32, i32
  }
  func.func @transform_5(%arg0: i32) -> (i32, i32) {
    %c0_i32 = arith.constant 0 : i32
    %c0_i32_0 = arith.constant 0 : i32
    %c0_i32_1 = arith.constant 0 : i32
    return %c0_i32, %c0_i32_0 : i32, i32
  }
  func.func @transform_6(%arg0: i32) -> (i32, i32) {
    %c0_i32 = arith.constant 0 : i32
    %c0_i32_0 = arith.constant 0 : i32
    %c0_i32_1 = arith.constant 0 : i32
    return %c0_i32, %c0_i32_0 : i32, i32
  }
  func.func @transform_7(%arg0: i32) -> (i32, i32, i32) {
    %c0_i32 = arith.constant 0 : i32
    %c0_i32_0 = arith.constant 0 : i32
    %c0_i32_1 = arith.constant 0 : i32
    %c0_i32_2 = arith.constant 0 : i32
    return %c0_i32, %c0_i32_0, %c0_i32_1 : i32, i32, i32
  }
  func.func @transform_8(%arg0: i32) -> (i32, i32) {
    %c0_i32 = arith.constant 0 : i32
    %c0_i32_0 = arith.constant 0 : i32
    %c0_i32_1 = arith.constant 0 : i32
    return %c0_i32, %c0_i32_0 : i32, i32
  }
  func.func @transform_9(%arg0: i32) -> (i32, i32, i32) {
    %c0_i32 = arith.constant 0 : i32
    %c0_i32_0 = arith.constant 0 : i32
    %c0_i32_1 = arith.constant 0 : i32
    return %arg0, %c0_i32, %c0_i32_0 : i32, i32, i32
  }
  func.func @transform_10(%arg0: i32) -> (i32, i32, i32) {
    %c0_i32 = arith.constant 0 : i32
    %c0_i32_0 = arith.constant 0 : i32
    %c0_i32_1 = arith.constant 0 : i32
    return %arg0, %c0_i32, %c0_i32_0 : i32, i32, i32
  }
}

</mosaic_0001>

<llo_original>
// kernel: squeeze.8
$region0: #{squeeze.8}
  %s0 = inlined_call_operand.vmem [shape: f32[2,128], index: 0, kind: input, shape index: {}]
  %s1 = inlined_call_operand.vmem [shape: f32[2,4,32], index: 1, kind: output, shape index: {}]
  $region1: #{squeeze.8} parent=0
    #allocation0 [shape = 'u8[8192]{0}', space=vmem, size = 0x2000, scoped, tag = 'scoped mem for output reshape']
    #allocation1 [shape = 'u8[4096]{0}', space=vmem, size = 0x1000, scoped, tag = 'scoped mem for input reshape']
    %s3 = sshllo.u32 0, 2
    %v4 = vld [vmem:[%s0] sm:%s3]
    %5 = vst [vmem:[#allocation1] sm:%s3] %v4
    %v6 = vld [vmem:[#allocation1] sm:$0x3]
    %vm7 = vcmask 261120
    %8 = vst.msk [vmem:[#allocation0] ss:$8 sm:$0x3] %vm7, %v6
    %v9 = vld [vmem:[#allocation1] sm:$0x3]
    %10 = vrot.lane.b32.xlu0 %v9, 96
    %v11 = vpop.permute.xlu0 %10
    %vm12 = vcmask 261120
    %s13 = scalar_lea.vmem [#allocation0], 1
    %14 = vst.msk [vmem:[%s13] ss:$8 sm:$0x3] %vm12, %v11
    %v15 = vld [vmem:[#allocation1] sm:$0x3]
    %16 = vrot.lane.b32.xlu0 %v15, 64
    %v17 = vpop.permute.xlu0 %16
    %vm18 = vcmask 261120
    %s19 = scalar_lea.vmem [#allocation0], 2
    %20 = vst.msk [vmem:[%s19] ss:$8 sm:$0x3] %vm18, %v17
    %v21 = vld [vmem:[#allocation1] sm:$0x3]
    %22 = vrot.lane.b32.xlu0 %v21, 32
    %v23 = vpop.permute.xlu0 %22
    %vm24 = vcmask 261120
    %s25 = scalar_lea.vmem [#allocation0], 3
    %26 = vst.msk [vmem:[%s25] ss:$8 sm:$0x3] %vm24, %v23
    %s28 = sshllo.u32 0, 4
    %v30 = vld [vmem:[#allocation0] sm:%s28]
    %s31 = sshllo.u32 0, 4
    %32 = vst [vmem:[%s1] sm:%s31] %v30
    %s33 = scalar_lea.vmem [#allocation0], 8
    %v34 = vld [vmem:[%s33] sm:%s28]
    %s35 = sshllo.u32 0, 4
    %s36 = scalar_lea.vmem %s1, 4
    %37 = vst [vmem:[%s36] sm:%s35] %v34

// kernel: dy_dense_layer_forward.1
$region0: #{dy_dense_layer_forward.1}
  #allocation0 [shape = 'u32[]', space=smem, size = 0x4, offset = 0x4, fixed_abs, tag = 'smem constant byte address 0x4 - core index']
  #allocation1 [shape = 'u32[144,128]{1,0:T(1,128)}', space=vmem, size = 0x12000, scoped, tag = 'internal scratch']
  #allocation2 [shape = 's32[1]{0}', space=sflag, size = 0x4, scoped, tag = 'scratch operand']
  #allocation21 [shape = 's32[]', space=sflag, size = 0x4, offset = 0, fixed_abs, tag = 'sflag constant byte address 0x0 - dummy sync flag']
  %s0 = inlined_call_operand.hbm [shape: f32[2,8,256], index: 0, kind: input, shape index: {}]
  %s1 = inlined_call_operand.hbm [shape: f32[220,1], index: 1, kind: input, shape index: {}]
  %s2 = inlined_call_operand.hbm [shape: f32[2,8], index: 2, kind: input, shape index: {}]
  %s3 = inlined_call_operand.hbm [shape: f32[8,2], index: 3, kind: input, shape index: {}]
  %s4 = inlined_call_operand.hbm [shape: f32[2,8], index: 4, kind: input, shape index: {}]
  %s5 = inlined_call_operand.hbm [shape: f32[128,2], index: 5, kind: input, shape index: {}]
  %s6 = inlined_call_operand.hbm [shape: bf16[32,8], index: 6, kind: input, shape index: {}]
  %s7 = inlined_call_operand.hbm [shape: bf16[4,18,32], index: 7, kind: input, shape index: {}]
  %s8 = inlined_call_operand.hbm [shape: f32[9,256], index: 8, kind: input, shape index: {}]
  %s9 = inlined_call_operand.hbm [shape: f32[2,16,256], index: 9, kind: output, shape index: {0}]
  %s10 = inlined_call_operand.hbm [shape: f32[2,136,1], index: 10, kind: output, shape index: {1}]
  %11 = xla_tuple %s9, %s10
  %s12 = sld [smem:[#allocation0]]
  $region124: #{dy_dense_layer_forward.1} parent=0
    _
  %s14 = ssub.s32 1, %s12
  %s15 = scalar_select 0, %s14, %s12
  $region1: #{dy_dense_layer_forward.1} parent=0
    #allocation3 [shape = 'u8[16384]{0}', space=vmem, size = 0x4000, scoped, tag = 'input window, operand 0, single buffered']
    #allocation4 [shape = 's32[1]{0}', space=sflag, size = 0x4, scoped, tag = 'scoped memory for dy_dense_layer_forward.1']
    #allocation5 [shape = 's32[1]{0}', space=sflag, size = 0x4, scoped, tag = 'scoped memory for dy_dense_layer_forward.1']
    #allocation6 [shape = 'u8[114688]{0}', space=vmem, size = 0x1c000, scoped, tag = 'input window, operand 1, single buffered']
    #allocation7 [shape = 's32[1]{0}', space=sflag, size = 0x4, scoped, tag = 'scoped memory for dy_dense_layer_forward.1']
    #allocation8 [shape = 'u8[1024]{0}', space=vmem, size = 0x400, scoped, tag = 'input window, operand 2, single buffered']
    #allocation9 [shape = 'u8[4096]{0}', space=vmem, size = 0x1000, scoped, tag = 'input window, operand 3, single buffered']
    #allocation10 [shape = 's32[1]{0}', space=sflag, size = 0x4, scoped, tag = 'scoped memory for dy_dense_layer_forward.1']
    #allocation11 [shape = 'u8[1024]{0}', space=vmem, size = 0x400, scoped, tag = 'input window, operand 4, single buffered']
    #allocation12 [shape = 'u8[65536]{0}', space=vmem, size = 0x10000, scoped, tag = 'input window, operand 5, single buffered']
    #allocation13 [shape = 's32[1]{0}', space=sflag, size = 0x4, scoped, tag = 'scoped memory for dy_dense_layer_forward.1']
    #allocation14 [shape = 'u8[8192]{0}', space=vmem, size = 0x2000, scoped, tag = 'input window, operand 6, single buffered']
    #allocation15 [shape = 'u8[24576]{0}', space=vmem, size = 0x6000, scoped, tag = 'input window, operand 7, single buffered']
    #allocation16 [shape = 's32[1]{0}', space=sflag, size = 0x4, scoped, tag = 'scoped memory for dy_dense_layer_forward.1']
    #allocation17 [shape = 'u8[16384]{0}', space=vmem, size = 0x4000, scoped, tag = 'input window, operand 8, single buffered']
    #allocation18 [shape = 'u8[32768]{0}', space=vmem, size = 0x8000, scoped, tag = 'output window, operand 0, single buffered']
    #allocation19 [shape = 'u8[139264]{0}', space=vmem, size = 0x22000, scoped, tag = 'output window, operand 1, single buffered']
    #allocation20 [shape = 's32[1]{0}', space=sflag, size = 0x4, scoped, tag = 'scoped memory for dy_dense_layer_forward.1']
    %16 = vsyncpa [#allocation4], 0
    %17 = vsyncpa [#allocation7], 0
    %18 = vsyncpa [#allocation10], 0
    %19 = vsyncpa [#allocation13], 0
    %20 = vsyncpa [#allocation16], 0
    %21 = vsyncpa [#allocation5], 0
    %22 = vsyncpa [#allocation20], 0
    // Predicated region
    $region2: #{dy_dense_layer_forward.1} parent=1 // pred_check
      _
    $region3: #{dy_dense_layer_forward.1} parent=1 // pred_check_branch
      %24 = sbr.rel (0) target = $region5
    $region4: #{dy_dense_layer_forward.1} parent=1 // pred_region
      %s26 = ssub.s32 512, 512
      %27 = vsyncadd [#allocation4], %s26
      %s28 = sshll.u32 [#allocation3], 4
      %s29 = int_to_ptr.vmem [resolvable:$true] %s28
      %34 = dma.hbm_to_vmem [thread:$0]  %s0, 512, %s29, [#allocation4], 256, 256, 16
    $region5: #{dy_dense_layer_forward.1} parent=1 // pred_fallthru
      _
    // Predicated region
    $region6: #{dy_dense_layer_forward.1} parent=1 // pred_check
      _
    $region7: #{dy_dense_layer_forward.1} parent=1 // pred_check_branch
      %36 = sbr.rel (0) target = $region9
    $region8: #{dy_dense_layer_forward.1} parent=1 // pred_region
      %s38 = ssub.s32 3584, 3584
      %39 = vsyncadd [#allocation7], %s38
      %s40 = sshll.u32 [#allocation6], 4
      %s41 = int_to_ptr.vmem [resolvable:$true] %s40
      %46 = dma.hbm_to_vmem [thread:$0]  %s1, 3584, %s41, [#allocation7], 128, 128, 8
    $region9: #{dy_dense_layer_forward.1} parent=1 // pred_fallthru
      _
    // Predicated region
    $region10: #{dy_dense_layer_forward.1} parent=1 // pred_check
      _
    $region11: #{dy_dense_layer_forward.1} parent=1 // pred_check_branch
      %48 = sbr.rel (0) target = $region13
    $region12: #{dy_dense_layer_forward.1} parent=1 // pred_region
      %s50 = ssub.s32 32, 32
      %51 = vsyncadd [#allocation7], %s50
      %s53 = sshll.u32 [#allocation8], 4
      %s54 = int_to_ptr.vmem [resolvable:$true] %s53
      %56 = dma.hbm_to_vmem [thread:$0]  %s2, 32, %s54, [#allocation7]
    $region13: #{dy_dense_layer_forward.1} parent=1 // pred_fallthru
      _
    // Predicated region
    $region14: #{dy_dense_layer_forward.1} parent=1 // pred_check
      _
    $region15: #{dy_dense_layer_forward.1} parent=1 // pred_check_branch
      %58 = sbr.rel (0) target = $region17
    $region16: #{dy_dense_layer_forward.1} parent=1 // pred_region
      %s60 = ssub.s32 128, 128
      %61 = vsyncadd [#allocation10], %s60
      %s63 = sshll.u32 [#allocation9], 4
      %s64 = int_to_ptr.vmem [resolvable:$true] %s63
      %66 = dma.hbm_to_vmem [thread:$0]  %s3, 128, %s64, [#allocation10]
    $region17: #{dy_dense_layer_forward.1} parent=1 // pred_fallthru
      _
    // Predicated region
    $region18: #{dy_dense_layer_forward.1} parent=1 // pred_check
      _
    $region19: #{dy_dense_layer_forward.1} parent=1 // pred_check_branch
      %68 = sbr.rel (0) target = $region21
    $region20: #{dy_dense_layer_forward.1} parent=1 // pred_region
      %s70 = ssub.s32 32, 32
      %71 = vsyncadd [#allocation10], %s70
      %s73 = sshll.u32 [#allocation11], 4
      %s74 = int_to_ptr.vmem [resolvable:$true] %s73
      %76 = dma.hbm_to_vmem [thread:$0]  %s4, 32, %s74, [#allocation10]
    $region21: #{dy_dense_layer_forward.1} parent=1 // pred_fallthru
      _
    // Predicated region
    $region22: #{dy_dense_layer_forward.1} parent=1 // pred_check
      _
    $region23: #{dy_dense_layer_forward.1} parent=1 // pred_check_branch
      %78 = sbr.rel (0) target = $region25
    $region24: #{dy_dense_layer_forward.1} parent=1 // pred_region
      %s80 = ssub.s32 2048, 2048
      %81 = vsyncadd [#allocation13], %s80
      %s82 = sshll.u32 [#allocation12], 4
      %s83 = int_to_ptr.vmem [resolvable:$true] %s82
      %88 = dma.hbm_to_vmem [thread:$0]  %s5, 2048, %s83, [#allocation13], 128, 128, 8
    $region25: #{dy_dense_layer_forward.1} parent=1 // pred_fallthru
      _
    // Predicated region
    $region26: #{dy_dense_layer_forward.1} parent=1 // pred_check
      _
    $region27: #{dy_dense_layer_forward.1} parent=1 // pred_check_branch
      %90 = sbr.rel (0) target = $region29
    $region28: #{dy_dense_layer_forward.1} parent=1 // pred_region
      %s92 = ssub.s32 256, 256
      %93 = vsyncadd [#allocation13], %s92
      %s94 = sshll.u32 [#allocation14], 4
      %s95 = int_to_ptr.vmem [resolvable:$true] %s94
      %100 = dma.hbm_to_vmem [thread:$0]  %s6, 256, %s95, [#allocation13], 64, 64, 4
    $region29: #{dy_dense_layer_forward.1} parent=1 // pred_fallthru
      _
    // Predicated region
    $region30: #{dy_dense_layer_forward.1} parent=1 // pred_check
      _
    $region31: #{dy_dense_layer_forward.1} parent=1 // pred_check_branch
      %102 = sbr.rel (0) target = $region33
    $region32: #{dy_dense_layer_forward.1} parent=1 // pred_region
      %s104 = ssub.s32 768, 768
      %105 = vsyncadd [#allocation16], %s104
      %s106 = sshll.u32 [#allocation15], 4
      %s107 = int_to_ptr.vmem [resolvable:$true] %s106
      %112 = dma.hbm_to_vmem [thread:$0]  %s7, 768, %s107, [#allocation16], 64, 64, 4
    $region33: #{dy_dense_layer_forward.1} parent=1 // pred_fallthru
      _
    // Predicated region
    $region34: #{dy_dense_layer_forward.1} parent=1 // pred_check
      _
    $region35: #{dy_dense_layer_forward.1} parent=1 // pred_check_branch
      %114 = sbr.rel (0) target = $region37
    $region36: #{dy_dense_layer_forward.1} parent=1 // pred_region
      %s116 = ssub.s32 512, 512
      %117 = vsyncadd [#allocation16], %s116
      %s118 = sshll.u32 [#allocation17], 4
      %s119 = int_to_ptr.vmem [resolvable:$true] %s118
      %124 = dma.hbm_to_vmem [thread:$0]  %s8, 512, %s119, [#allocation16], 256, 256, 16
    $region37: #{dy_dense_layer_forward.1} parent=1 // pred_fallthru
      _
    // Predicated region
    $region38: #{dy_dense_layer_forward.1} parent=1 // pred_check
      _
    $region39: #{dy_dense_layer_forward.1} parent=1 // pred_check_branch
      %126 = sbr.rel (0) target = $region41
    $region40: #{dy_dense_layer_forward.1} parent=1 // pred_region
      %127 = dma.done [#allocation4], 512
    $region41: #{dy_dense_layer_forward.1} parent=1 // pred_fallthru
      _
    // Predicated region
    $region42: #{dy_dense_layer_forward.1} parent=1 // pred_check
      _
    $region43: #{dy_dense_layer_forward.1} parent=1 // pred_check_branch
      %129 = sbr.rel (0) target = $region45
    $region44: #{dy_dense_layer_forward.1} parent=1 // pred_region
      %130 = dma.done [#allocation7], 3584
    $region45: #{dy_dense_layer_forward.1} parent=1 // pred_fallthru
      _
    // Predicated region
    $region46: #{dy_dense_layer_forward.1} parent=1 // pred_check
      _
    $region47: #{dy_dense_layer_forward.1} parent=1 // pred_check_branch
      %132 = sbr.rel (0) target = $region49
    $region48: #{dy_dense_layer_forward.1} parent=1 // pred_region
      %133 = dma.done [#allocation7], 32
    $region49: #{dy_dense_layer_forward.1} parent=1 // pred_fallthru
      _
    // Predicated region
    $region50: #{dy_dense_layer_forward.1} parent=1 // pred_check
      _
    $region51: #{dy_dense_layer_forward.1} parent=1 // pred_check_branch
      %135 = sbr.rel (0) target = $region53
    $region52: #{dy_dense_layer_forward.1} parent=1 // pred_region
      %136 = dma.done [#allocation10], 128
    $region53: #{dy_dense_layer_forward.1} parent=1 // pred_fallthru
      _
    // Predicated region
    $region54: #{dy_dense_layer_forward.1} parent=1 // pred_check
      _
    $region55: #{dy_dense_layer_forward.1} parent=1 // pred_check_branch
      %138 = sbr.rel (0) target = $region57
    $region56: #{dy_dense_layer_forward.1} parent=1 // pred_region
      %139 = dma.done [#allocation10], 32
    $region57: #{dy_dense_layer_forward.1} parent=1 // pred_fallthru
      _
    // Predicated region
    $region58: #{dy_dense_layer_forward.1} parent=1 // pred_check
      _
    $region59: #{dy_dense_layer_forward.1} parent=1 // pred_check_branch
      %141 = sbr.rel (0) target = $region61
    $region60: #{dy_dense_layer_forward.1} parent=1 // pred_region
      %142 = dma.done [#allocation13], 2048
    $region61: #{dy_dense_layer_forward.1} parent=1 // pred_fallthru
      _
    // Predicated region
    $region62: #{dy_dense_layer_forward.1} parent=1 // pred_check
      _
    $region63: #{dy_dense_layer_forward.1} parent=1 // pred_check_branch
      %144 = sbr.rel (0) target = $region65
    $region64: #{dy_dense_layer_forward.1} parent=1 // pred_region
      %145 = dma.done [#allocation13], 256
    $region65: #{dy_dense_layer_forward.1} parent=1 // pred_fallthru
      _
    // Predicated region
    $region66: #{dy_dense_layer_forward.1} parent=1 // pred_check
      _
    $region67: #{dy_dense_layer_forward.1} parent=1 // pred_check_branch
      %147 = sbr.rel (0) target = $region69
    $region68: #{dy_dense_layer_forward.1} parent=1 // pred_region
      %148 = dma.done [#allocation16], 768
    $region69: #{dy_dense_layer_forward.1} parent=1 // pred_fallthru
      _
    // Predicated region
    $region70: #{dy_dense_layer_forward.1} parent=1 // pred_check
      _
    $region71: #{dy_dense_layer_forward.1} parent=1 // pred_check_branch
      %150 = sbr.rel (0) target = $region73
    $region72: #{dy_dense_layer_forward.1} parent=1 // pred_region
      %151 = dma.done [#allocation16], 512
    $region73: #{dy_dense_layer_forward.1} parent=1 // pred_fallthru
      _
    %p154 = scmp.lt.u32.totalorder 16, 8
    %p155 = pneg %p154
    // Predicated region
    $region74: #{dy_dense_layer_forward.1} parent=1 // pred_check
      _
    $region75: #{dy_dense_layer_forward.1} parent=1 // pred_check_branch
      %157 = sbr.rel (%p154) target = $region77
    $region76: #{dy_dense_layer_forward.1} parent=1 // pred_region
      %s174 = sand.u32 16, 7
      %p175 = scmp.eq.s32.totalorder %s174, 0
      // Predicated region
      $region89: #{dy_dense_layer_forward.1} parent=76 // pred_check
        %p176 = pneg %p175
      $region90: #{dy_dense_layer_forward.1} parent=76 // pred_check_branch
        %178 = sbr.rel (%p176) target = $region92
      $region91: #{dy_dense_layer_forward.1} parent=76 // pred_region
        loop: start=0, step=1, limit=1
        $region93: #{dy_dense_layer_forward.1} parent=91 // loop_pre_header
          _
        $region94: #{dy_dense_layer_forward.1} parent=91 // loop_header
          %s180 = sphi 0, %s184
          %p181 = scmp.ge.s32.totalorder %s180, 1
          %s185 = sphi [#allocation3], [#allocation3]
          %s186 = sphi [#allocation18], [#allocation18]
        $region95: #{dy_dense_layer_forward.1} parent=91 // loop_header_branch
          %183 = sbr.rel (%p181) target = $region99
        $region96: #{dy_dense_layer_forward.1} parent=91 // loop_body
          %v187 = vld [vmem:[%s185] sm:$0xff]
          %188 = vst [vmem:[%s186] sm:$0xff] %v187
          %v189 = vld [vmem:[%s185 + $0x8] sm:$0xff]
          %190 = vst [vmem:[%s186 + $0x8] sm:$0xff] %v189
          %v191 = vld [vmem:[%s185 + $0x10] sm:$0xff]
          %192 = vst [vmem:[%s186 + $0x20] sm:$0xff] %v191
          %v193 = vld [vmem:[%s185 + $0x18] sm:$0xff]
          %194 = vst [vmem:[%s186 + $0x28] sm:$0xff] %v193
        $region97: #{dy_dense_layer_forward.1} parent=91 // loop_footer
          %s184 = sadd.s32 1, %s180
        $region98: #{dy_dense_layer_forward.1} parent=91 // loop_footer_branch
          %179 = sbr.rel target = $region94
        $region99: #{dy_dense_layer_forward.1} parent=91 // loop_exit
          _
      $region92: #{dy_dense_layer_forward.1} parent=76 // pred_fallthru
        _
      %p195 = pneg %p175
      // Predicated region
      $region100: #{dy_dense_layer_forward.1} parent=76 // pred_check
        _
      $region101: #{dy_dense_layer_forward.1} parent=76 // pred_check_branch
        %197 = sbr.rel (%p175) target = $region103
      $region102: #{dy_dense_layer_forward.1} parent=76 // pred_region
        %s198 = sand.u32 16, 7
      $region103: #{dy_dense_layer_forward.1} parent=76 // pred_fallthru
        _
    $region77: #{dy_dense_layer_forward.1} parent=1 // pred_fallthru
      _
    // Predicated region
    $region78: #{dy_dense_layer_forward.1} parent=1 // pred_check
      %p158 = pneg %p154
    $region79: #{dy_dense_layer_forward.1} parent=1 // pred_check_branch
      %160 = sbr.rel (%p158) target = $region81
    $region80: #{dy_dense_layer_forward.1} parent=1 // pred_region
      %s161 = sshllo.u32 0, 16
      loop: start=0, step=1, limit=1
      $region82: #{dy_dense_layer_forward.1} parent=80 // loop_pre_header
        _
      $region83: #{dy_dense_layer_forward.1} parent=80 // loop_header
        %s163 = sphi 0, %s167
        %p164 = scmp.ge.s32.totalorder %s163, 1
        %s168 = sphi [#allocation3], [#allocation3]
        %s169 = sphi [#allocation18], [#allocation18]
      $region84: #{dy_dense_layer_forward.1} parent=80 // loop_header_branch
        %166 = sbr.rel (%p164) target = $region88
      $region85: #{dy_dense_layer_forward.1} parent=80 // loop_body
        %v170 = vld [vmem:[%s168] sm:%s161]
        %171 = vst [vmem:[%s169] sm:%s161] %v170
        %v172 = vld [vmem:[%s168 + $0x10] sm:%s161]
        %173 = vst [vmem:[%s169 + $0x20] sm:%s161] %v172
      $region86: #{dy_dense_layer_forward.1} parent=80 // loop_footer
        %s167 = sadd.s32 1, %s163
      $region87: #{dy_dense_layer_forward.1} parent=80 // loop_footer_branch
        %162 = sbr.rel target = $region83
      $region88: #{dy_dense_layer_forward.1} parent=80 // loop_exit
        _
    $region81: #{dy_dense_layer_forward.1} parent=1 // pred_fallthru
      _
    // Predicated region
    $region104: #{dy_dense_layer_forward.1} parent=1 // pred_check
      _
    $region105: #{dy_dense_layer_forward.1} parent=1 // pred_check_branch
      %201 = sbr.rel (0) target = $region107
    $region106: #{dy_dense_layer_forward.1} parent=1 // pred_region
      %202 = vsyncadd [#allocation2], 512
    $region107: #{dy_dense_layer_forward.1} parent=1 // pred_fallthru
      _
    %v203 = vld [vmem:[#allocation6] sm:$0xff]
    %v204 = vld [vmem:[#allocation6 + $0x8] sm:$0xff]
    %v205 = vld [vmem:[#allocation6 + $0x10] sm:$0xff]
    %v206 = vld [vmem:[#allocation6 + $0x18] sm:$0xff]
    %v207 = vld [vmem:[#allocation6 + $0x20] sm:$0xff]
    %v208 = vld [vmem:[#allocation6 + $0x28] sm:$0xff]
    %v209 = vld [vmem:[#allocation6 + $0x30] sm:$0xff]
    %v210 = vld [vmem:[#allocation6 + $0x38] sm:$0xff]
    %v211 = vld [vmem:[#allocation6 + $0x40] sm:$0xff]
    %v212 = vld [vmem:[#allocation6 + $0x48] sm:$0xff]
    %v213 = vld [vmem:[#allocation6 + $0x50] sm:$0xff]
    %v214 = vld [vmem:[#allocation6 + $0x58] sm:$0xff]
    %v215 = vld [vmem:[#allocation6 + $0x60] sm:$0xff]
    %v216 = vld [vmem:[#allocation6 + $0x68] sm:$0xff]
    %v217 = vld [vmem:[#allocation6 + $0x70] sm:$0xff]
    %v218 = vld [vmem:[#allocation6 + $0x78] sm:$0xff]
    %v219 = vld [vmem:[#allocation6 + $0x80] sm:$0xff]
    %v220 = vld [vmem:[#allocation6 + $0x88] sm:$0xff]
    %v221 = vld [vmem:[#allocation6 + $0x90] sm:$0xff]
    %v222 = vld [vmem:[#allocation6 + $0x98] sm:$0xff]
    %v223 = vld [vmem:[#allocation6 + $0xa0] sm:$0xff]
    %v224 = vld [vmem:[#allocation6 + $0xa8] sm:$0xff]
    %v225 = vld [vmem:[#allocation6 + $0xb0] sm:$0xff]
    %v226 = vld [vmem:[#allocation6 + $0xb8] sm:$0xff]
    %v227 = vld [vmem:[#allocation6 + $0xc0] sm:$0xff]
    %v228 = vld [vmem:[#allocation6 + $0xc8] sm:$0xff]
    %v229 = vld [vmem:[#allocation6 + $0xd0] sm:$0xff]
    %v230 = vld [vmem:[#allocation6 + $0xd8] sm:$0xf]
    %v231 = vld [vmem:[#allocation8] sm:$0x3]
    %v232 = vld [vmem:[#allocation9] sm:$0xff]
    %v233 = vld [vmem:[#allocation11] sm:$0x3]
    %v234 = vld [vmem:[#allocation12] sm:$0xff]
    %v235 = vld [vmem:[#allocation12 + $0x8] sm:$0xff]
    %v236 = vld [vmem:[#allocation12 + $0x10] sm:$0xff]
    %v237 = vld [vmem:[#allocation12 + $0x18] sm:$0xff]
    %v238 = vld [vmem:[#allocation12 + $0x20] sm:$0xff]
    %v239 = vld [vmem:[#allocation12 + $0x28] sm:$0xff]
    %v240 = vld [vmem:[#allocation12 + $0x30] sm:$0xff]
    %v241 = vld [vmem:[#allocation12 + $0x38] sm:$0xff]
    %v242 = vld [vmem:[#allocation12 + $0x40] sm:$0xff]
    %v243 = vld [vmem:[#allocation12 + $0x48] sm:$0xff]
    %v244 = vld [vmem:[#allocation12 + $0x50] sm:$0xff]
    %v245 = vld [vmem:[#allocation12 + $0x58] sm:$0xff]
    %v246 = vld [vmem:[#allocation12 + $0x60] sm:$0xff]
    %v247 = vld [vmem:[#allocation12 + $0x68] sm:$0xff]
    %v248 = vld [vmem:[#allocation12 + $0x70] sm:$0xff]
    %v249 = vld [vmem:[#allocation12 + $0x78] sm:$0xff]
    %v250 = vld [vmem:[#allocation14] sm:$0xf]
    %v251 = vld [vmem:[#allocation14 + $0x4] sm:$0xf]
    %v252 = vld [vmem:[#allocation14 + $0x8] sm:$0xf]
    %v253 = vld [vmem:[#allocation14 + $0xc] sm:$0xf]
    %v254 = vld [vmem:[#allocation17] sm:$0xff]
    %v255 = vld [vmem:[#allocation17 + $0x8] sm:$0xff]
    %v256 = vld [vmem:[#allocation17 + $0x10] sm:$0x1]
    %v257 = vld [vmem:[#allocation17 + $0x18] sm:$0x1]
    %v258 = vld [vmem:[#allocation3] sm:$0xff]
    %v259 = vld [vmem:[#allocation3 + $0x8] sm:$0xff]
    %261 = vset.pattern.permute.xlu0 0
    %262 = vperm.xlu0 %261, %v203
    %v263 = vpop.permute.xlu0 %262
    %v265 = vmul.f32 %v258, %v263
    %v266 = vmul.f32 %v259, %v263
    %268 = vset.pattern.permute.xlu0 0
    %269 = vperm.xlu0 %268, %v204
    %v270 = vpop.permute.xlu0 %269
    %v272 = vadd.f32 %v265, %v270
    %v273 = vadd.f32 %v266, %v270
    %v274 = vmax.f32 %v272, 0.0
    %v275 = vmax.f32 %v273, 0.0
    %v276 = vadd.f32 %v274, %v275
    %277 = vadd.xlane.f32.xlu0 %v276
    %v278 = vpop.xlane.xlu0 %277
    %v279 = vrcp.pop 256.0
    %v280 = vmul.f32 %v278, %v279
    %vm281 = vcmask 64512
    %v283 = vsel %vm281, %v231, 0
    %285 = vmatprep.subr.mxu0 0.0
    %286 = vmatpush1.msra.mxu0 %v280
    %287 = vmatprep.subr.mxu0 0.0
    %288 = vmatpush1.msra.mxu0 0.0
    %289 = vmatprep.subr.mxu0 0.0
    %290 = vmatpush1.msra.mxu0 0.0
    %291 = vmatprep.subr.mxu0 0.0
    %292 = vmatpush1.msra.mxu0 0.0
    %293 = vmatprep.subr.mxu0 0.0
    %294 = vmatpush1.msra.mxu0 0.0
    %295 = vmatprep.subr.mxu0 0.0
    %296 = vmatpush1.msra.mxu0 0.0
    %297 = vmatprep.subr.mxu0 0.0
    %298 = vmatpush1.msra.mxu0 0.0
    %299 = vmatprep.subr.mxu0 0.0
    %300 = vmatpush1.msra.mxu0 0.0
    %301 = vmatprep.subr.mxu0 0.0
    %302 = vmatpush1.msra.mxu0 0.0
    %303 = vmatprep.subr.mxu0 0.0
    %304 = vmatpush1.msra.mxu0 0.0
    %305 = vmatprep.subr.mxu0 0.0
    %306 = vmatpush1.msra.mxu0 0.0
    %307 = vmatprep.subr.mxu0 0.0
    %308 = vmatpush1.msra.mxu0 0.0
    %309 = vmatprep.subr.mxu0 0.0
    %310 = vmatpush1.msra.mxu0 0.0
    %311 = vmatprep.subr.mxu0 0.0
    %312 = vmatpush1.msra.mxu0 0.0
    %313 = vmatprep.subr.mxu0 0.0
    %314 = vmatpush1.msra.mxu0 0.0
    %315 = vmatprep.subr.mxu0 0.0
    %316 = vmatpush1.msra.mxu0 0.0
    %317 = vmatprep.subr.mxu0 0.0
    %318 = vmatpush1.msra.mxu0 0.0
    %319 = vmatprep.subr.mxu0 0.0
    %320 = vmatpush1.msra.mxu0 0.0
    %321 = vmatprep.subr.mxu0 0.0
    %322 = vmatpush1.msra.mxu0 0.0
    %323 = vmatprep.subr.mxu0 0.0
    %324 = vmatpush1.msra.mxu0 0.0
    %325 = vmatprep.subr.mxu0 0.0
    %326 = vmatpush1.msra.mxu0 0.0
    %327 = vmatprep.subr.mxu0 0.0
    %328 = vmatpush1.msra.mxu0 0.0
    %329 = vmatprep.subr.mxu0 0.0
    %330 = vmatpush1.msra.mxu0 0.0
    %331 = vmatprep.subr.mxu0 0.0
    %332 = vmatpush1.msra.mxu0 0.0
    %333 = vmatprep.subr.mxu0 0.0
    %334 = vmatpush1.msra.mxu0 0.0
    %335 = vmatprep.subr.mxu0 0.0
    %336 = vmatpush1.msra.mxu0 0.0
    %337 = vmatprep.subr.mxu0 0.0
    %338 = vmatpush1.msra.mxu0 0.0
    %339 = vmatprep.subr.mxu0 0.0
    %340 = vmatpush1.msra.mxu0 0.0
    %341 = vmatprep.subr.mxu0 0.0
    %342 = vmatpush1.msra.mxu0 0.0
    %343 = vmatprep.subr.mxu0 0.0
    %344 = vmatpush1.msra.mxu0 0.0
    %345 = vmatprep.subr.mxu0 0.0
    %346 = vmatpush1.msra.mxu0 0.0
    %347 = vmatprep.subr.mxu0 0.0
    %348 = vmatpush1.msra.mxu0 0.0
    %349 = vmatprep.mubr.f32.mxu0 0.0
    %350 = vmatmul.mubr.f32.gmra.mrb[0].mxu0 %v283
    %v351 = vpop.f32.mrb[0].mxu0
    %v352 = vadd.f32 %v213, %v351
    %v353 = vpop.f32.mrb[0].mxu0
    %354 = vdwg.mxu0
    %v355 = vmax.f32 %v352, 0.0
    %vm358 = vcmask 1045504
    %v359 = vrot.slane %v213, 2
    %v360 = vrot.slane %v214, 2
    %v361 = vsel %vm358, %v359, %v360
    %vm363 = vcmask 15360
    %v365 = vsel %vm363, %v232, 0
    %vm367 = vcmask 1041408
    %v369 = vsel %vm367, %v355, 0
    %371 = vmatprep.subr.mxu0 0.0
    %372 = vmatpush1.msra.mxu0 %v369
    %373 = vmatprep.subr.mxu0 0.0
    %374 = vmatpush1.msra.mxu0 0.0
    %375 = vmatprep.subr.mxu0 0.0
    %376 = vmatpush1.msra.mxu0 0.0
    %377 = vmatprep.subr.mxu0 0.0
    %378 = vmatpush1.msra.mxu0 0.0
    %379 = vmatprep.subr.mxu0 0.0
    %380 = vmatpush1.msra.mxu0 0.0
    %381 = vmatprep.subr.mxu0 0.0
    %382 = vmatpush1.msra.mxu0 0.0
    %383 = vmatprep.subr.mxu0 0.0
    %384 = vmatpush1.msra.mxu0 0.0
    %385 = vmatprep.subr.mxu0 0.0
    %386 = vmatpush1.msra.mxu0 0.0
    %387 = vmatprep.subr.mxu0 0.0
    %388 = vmatpush1.msra.mxu0 0.0
    %389 = vmatprep.subr.mxu0 0.0
    %390 = vmatpush1.msra.mxu0 0.0
    %391 = vmatprep.subr.mxu0 0.0
    %392 = vmatpush1.msra.mxu0 0.0
    %393 = vmatprep.subr.mxu0 0.0
    %394 = vmatpush1.msra.mxu0 0.0
    %395 = vmatprep.subr.mxu0 0.0
    %396 = vmatpush1.msra.mxu0 0.0
    %397 = vmatprep.subr.mxu0 0.0
    %398 = vmatpush1.msra.mxu0 0.0
    %399 = vmatprep.subr.mxu0 0.0
    %400 = vmatpush1.msra.mxu0 0.0
    %401 = vmatprep.subr.mxu0 0.0
    %402 = vmatpush1.msra.mxu0 0.0
    %403 = vmatprep.subr.mxu0 0.0
    %404 = vmatpush1.msra.mxu0 0.0
    %405 = vmatprep.subr.mxu0 0.0
    %406 = vmatpush1.msra.mxu0 0.0
    %407 = vmatprep.subr.mxu0 0.0
    %408 = vmatpush1.msra.mxu0 0.0
    %409 = vmatprep.subr.mxu0 0.0
    %410 = vmatpush1.msra.mxu0 0.0
    %411 = vmatprep.subr.mxu0 0.0
    %412 = vmatpush1.msra.mxu0 0.0
    %413 = vmatprep.subr.mxu0 0.0
    %414 = vmatpush1.msra.mxu0 0.0
    %415 = vmatprep.subr.mxu0 0.0
    %416 = vmatpush1.msra.mxu0 0.0
    %417 = vmatprep.subr.mxu0 0.0
    %418 = vmatpush1.msra.mxu0 0.0
    %419 = vmatprep.subr.mxu0 0.0
    %420 = vmatpush1.msra.mxu0 0.0
    %421 = vmatprep.subr.mxu0 0.0
    %422 = vmatpush1.msra.mxu0 0.0
    %423 = vmatprep.subr.mxu0 0.0
    %424 = vmatpush1.msra.mxu0 0.0
    %425 = vmatprep.subr.mxu0 0.0
    %426 = vmatpush1.msra.mxu0 0.0
    %427 = vmatprep.subr.mxu0 0.0
    %428 = vmatpush1.msra.mxu0 0.0
    %429 = vmatprep.subr.mxu0 0.0
    %430 = vmatpush1.msra.mxu0 0.0
    %431 = vmatprep.subr.mxu0 0.0
    %432 = vmatpush1.msra.mxu0 0.0
    %433 = vmatprep.subr.mxu0 0.0
    %434 = vmatpush1.msra.mxu0 0.0
    %435 = vmatprep.mubr.f32.mxu0 0.0
    %436 = vmatmul.mubr.f32.gmra.mrb[0].mxu0 %v365
    %v437 = vpop.f32.mrb[0].mxu0
    %v438 = vadd.f32 %v361, %v437
    %v439 = vpop.f32.mrb[0].mxu0
    %440 = vdwg.mxu0
    %v441 = vmul.f32 %v438, 0.5
    %v442 = vtanh.pop %v441
    %v443 = vadd.f32 %v442, 1.0
    %v444 = vmul.f32 %v443, 0.5
    %v447 = vsel %vm281, %v233, 0
    %449 = vmatprep.subr.mxu0 0.0
    %450 = vmatpush1.msra.mxu0 %v280
    %451 = vmatprep.subr.mxu0 0.0
    %452 = vmatpush1.msra.mxu0 0.0
    %453 = vmatprep.subr.mxu0 0.0
    %454 = vmatpush1.msra.mxu0 0.0
    %455 = vmatprep.subr.mxu0 0.0
    %456 = vmatpush1.msra.mxu0 0.0
    %457 = vmatprep.subr.mxu0 0.0
    %458 = vmatpush1.msra.mxu0 0.0
    %459 = vmatprep.subr.mxu0 0.0
    %460 = vmatpush1.msra.mxu0 0.0
    %461 = vmatprep.subr.mxu0 0.0
    %462 = vmatpush1.msra.mxu0 0.0
    %463 = vmatprep.subr.mxu0 0.0
    %464 = vmatpush1.msra.mxu0 0.0
    %465 = vmatprep.subr.mxu0 0.0
    %466 = vmatpush1.msra.mxu0 0.0
    %467 = vmatprep.subr.mxu0 0.0
    %468 = vmatpush1.msra.mxu0 0.0
    %469 = vmatprep.subr.mxu0 0.0
    %470 = vmatpush1.msra.mxu0 0.0
    %471 = vmatprep.subr.mxu0 0.0
    %472 = vmatpush1.msra.mxu0 0.0
    %473 = vmatprep.subr.mxu0 0.0
    %474 = vmatpush1.msra.mxu0 0.0
    %475 = vmatprep.subr.mxu0 0.0
    %476 = vmatpush1.msra.mxu0 0.0
    %477 = vmatprep.subr.mxu0 0.0
    %478 = vmatpush1.msra.mxu0 0.0
    %479 = vmatprep.subr.mxu0 0.0
    %480 = vmatpush1.msra.mxu0 0.0
    %481 = vmatprep.subr.mxu0 0.0
    %482 = vmatpush1.msra.mxu0 0.0
    %483 = vmatprep.subr.mxu0 0.0
    %484 = vmatpush1.msra.mxu0 0.0
    %485 = vmatprep.subr.mxu0 0.0
    %486 = vmatpush1.msra.mxu0 0.0
    %487 = vmatprep.subr.mxu0 0.0
    %488 = vmatpush1.msra.mxu0 0.0
    %489 = vmatprep.subr.mxu0 0.0
    %490 = vmatpush1.msra.mxu0 0.0
    %491 = vmatprep.subr.mxu0 0.0
    %492 = vmatpush1.msra.mxu0 0.0
    %493 = vmatprep.subr.mxu0 0.0
    %494 = vmatpush1.msra.mxu0 0.0
    %495 = vmatprep.subr.mxu0 0.0
    %496 = vmatpush1.msra.mxu0 0.0
    %497 = vmatprep.subr.mxu0 0.0
    %498 = vmatpush1.msra.mxu0 0.0
    %499 = vmatprep.subr.mxu0 0.0
    %500 = vmatpush1.msra.mxu0 0.0
    %501 = vmatprep.subr.mxu0 0.0
    %502 = vmatpush1.msra.mxu0 0.0
    %503 = vmatprep.subr.mxu0 0.0
    %504 = vmatpush1.msra.mxu0 0.0
    %505 = vmatprep.subr.mxu0 0.0
    %506 = vmatpush1.msra.mxu0 0.0
    %507 = vmatprep.subr.mxu0 0.0
    %508 = vmatpush1.msra.mxu0 0.0
    %509 = vmatprep.subr.mxu0 0.0
    %510 = vmatpush1.msra.mxu0 0.0
    %511 = vmatprep.subr.mxu0 0.0
    %512 = vmatpush1.msra.mxu0 0.0
    %513 = vmatprep.mubr.f32.mxu0 0.0
    %514 = vmatmul.mubr.f32.gmra.mrb[0].mxu0 %v447
    %v515 = vpop.f32.mrb[0].mxu0
    %v516 = vadd.f32 %v360, %v515
    %v517 = vpop.f32.mrb[0].mxu0
    %518 = vdwg.mxu0
    %v519 = vmax.f32 %v516, 0.0
    %vm536 = vcmask 1043456
    %v537 = vrot.slane %v214, 4
    %v538 = vrot.slane %v215, 4
    %v539 = vsel %vm536, %v537, %v538
    %v540 = vrot.slane %v216, 4
    %v541 = vsel %vm536, %v538, %v540
    %v542 = vrot.slane %v217, 4
    %v543 = vsel %vm536, %v540, %v542
    %v544 = vrot.slane %v218, 4
    %v545 = vsel %vm536, %v542, %v544
    %v546 = vrot.slane %v219, 4
    %v547 = vsel %vm536, %v544, %v546
    %v548 = vrot.slane %v220, 4
    %v549 = vsel %vm536, %v546, %v548
    %v550 = vrot.slane %v221, 4
    %v551 = vsel %vm536, %v548, %v550
    %v552 = vrot.slane %v222, 4
    %v553 = vsel %vm536, %v550, %v552
    %v554 = vrot.slane %v223, 4
    %v555 = vsel %vm536, %v552, %v554
    %v556 = vrot.slane %v224, 4
    %v557 = vsel %vm536, %v554, %v556
    %v558 = vrot.slane %v225, 4
    %v559 = vsel %vm536, %v556, %v558
    %v560 = vrot.slane %v226, 4
    %v561 = vsel %vm536, %v558, %v560
    %v562 = vrot.slane %v227, 4
    %v563 = vsel %vm536, %v560, %v562
    %v564 = vrot.slane %v228, 4
    %v565 = vsel %vm536, %v562, %v564
    %v566 = vrot.slane %v229, 4
    %v567 = vsel %vm536, %v564, %v566
    %v568 = vrot.slane %v230, 4
    %v569 = vsel %vm536, %v566, %v568
    %v587 = vsel %vm363, %v234, 0
    %v590 = vsel %vm363, %v235, 0
    %v593 = vsel %vm363, %v236, 0
    %v596 = vsel %vm363, %v237, 0
    %v599 = vsel %vm363, %v238, 0
    %v602 = vsel %vm363, %v239, 0
    %v605 = vsel %vm363, %v240, 0
    %v608 = vsel %vm363, %v241, 0
    %v611 = vsel %vm363, %v242, 0
    %v614 = vsel %vm363, %v243, 0
    %v617 = vsel %vm363, %v244, 0
    %v620 = vsel %vm363, %v245, 0
    %v623 = vsel %vm363, %v246, 0
    %v626 = vsel %vm363, %v247, 0
    %v629 = vsel %vm363, %v248, 0
    %v632 = vsel %vm363, %v249, 0
    %v635 = vsel %vm367, %v519, 0
    %637 = vmatprep.subr.mxu0 0.0
    %638 = vmatpush1.msra.mxu0 %v635
    %639 = vmatprep.subr.mxu0 0.0
    %640 = vmatpush1.msra.mxu0 0.0
    %641 = vmatprep.subr.mxu0 0.0
    %642 = vmatpush1.msra.mxu0 0.0
    %643 = vmatprep.subr.mxu0 0.0
    %644 = vmatpush1.msra.mxu0 0.0
    %645 = vmatprep.subr.mxu0 0.0
    %646 = vmatpush1.msra.mxu0 0.0
    %647 = vmatprep.subr.mxu0 0.0
    %648 = vmatpush1.msra.mxu0 0.0
    %649 = vmatprep.subr.mxu0 0.0
    %650 = vmatpush1.msra.mxu0 0.0
    %651 = vmatprep.subr.mxu0 0.0
    %652 = vmatpush1.msra.mxu0 0.0
    %653 = vmatprep.subr.mxu0 0.0
    %654 = vmatpush1.msra.mxu0 0.0
    %655 = vmatprep.subr.mxu0 0.0
    %656 = vmatpush1.msra.mxu0 0.0
    %657 = vmatprep.subr.mxu0 0.0
    %658 = vmatpush1.msra.mxu0 0.0
    %659 = vmatprep.subr.mxu0 0.0
    %660 = vmatpush1.msra.mxu0 0.0
    %661 = vmatprep.subr.mxu0 0.0
    %662 = vmatpush1.msra.mxu0 0.0
    %663 = vmatprep.subr.mxu0 0.0
    %664 = vmatpush1.msra.mxu0 0.0
    %665 = vmatprep.subr.mxu0 0.0
    %666 = vmatpush1.msra.mxu0 0.0
    %667 = vmatprep.subr.mxu0 0.0
    %668 = vmatpush1.msra.mxu0 0.0
    %669 = vmatprep.subr.mxu0 0.0
    %670 = vmatpush1.msra.mxu0 0.0
    %671 = vmatprep.subr.mxu0 0.0
    %672 = vmatpush1.msra.mxu0 0.0
    %673 = vmatprep.subr.mxu0 0.0
    %674 = vmatpush1.msra.mxu0 0.0
    %675 = vmatprep.subr.mxu0 0.0
    %676 = vmatpush1.msra.mxu0 0.0
    %677 = vmatprep.subr.mxu0 0.0
    %678 = vmatpush1.msra.mxu0 0.0
    %679 = vmatprep.subr.mxu0 0.0
    %680 = vmatpush1.msra.mxu0 0.0
    %681 = vmatprep.subr.mxu0 0.0
    %682 = vmatpush1.msra.mxu0 0.0
    %683 = vmatprep.subr.mxu0 0.0
    %684 = vmatpush1.msra.mxu0 0.0
    %685 = vmatprep.subr.mxu0 0.0
    %686 = vmatpush1.msra.mxu0 0.0
    %687 = vmatprep.subr.mxu0 0.0
    %688 = vmatpush1.msra.mxu0 0.0
    %689 = vmatprep.subr.mxu0 0.0
    %690 = vmatpush1.msra.mxu0 0.0
    %691 = vmatprep.subr.mxu0 0.0
    %692 = vmatpush1.msra.mxu0 0.0
    %693 = vmatprep.subr.mxu0 0.0
    %694 = vmatpush1.msra.mxu0 0.0
    %695 = vmatprep.subr.mxu0 0.0
    %696 = vmatpush1.msra.mxu0 0.0
    %697 = vmatprep.subr.mxu0 0.0
    %698 = vmatpush1.msra.mxu0 0.0
    %699 = vmatprep.subr.mxu0 0.0
    %700 = vmatpush1.msra.mxu0 0.0
    %701 = vmatprep.mubr.f32.mxu0 0.0
    %702 = vmatmul.mubr.f32.gmra.mrb[0].mxu0 %v587
    %v703 = vpop.f32.mrb[0].mxu0
    %v704 = vadd.f32 %v539, %v703
    %v705 = vpop.f32.mrb[0].mxu0
    %706 = vmatprep.mubr.f32.mxu0 0.0
    %707 = vmatmul.mubr.f32.gmra.mrb[0].mxu0 %v590
    %v708 = vpop.f32.mrb[0].mxu0
    %v709 = vadd.f32 %v541, %v708
    %v710 = vpop.f32.mrb[0].mxu0
    %711 = vmatprep.mubr.f32.mxu0 0.0
    %712 = vmatmul.mubr.f32.gmra.mrb[0].mxu0 %v593
    %v713 = vpop.f32.mrb[0].mxu0
    %v714 = vadd.f32 %v543, %v713
    %v715 = vpop.f32.mrb[0].mxu0
    %716 = vmatprep.mubr.f32.mxu0 0.0
    %717 = vmatmul.mubr.f32.gmra.mrb[0].mxu0 %v596
    %v718 = vpop.f32.mrb[0].mxu0
    %v719 = vadd.f32 %v545, %v718
    %v720 = vpop.f32.mrb[0].mxu0
    %721 = vmatprep.mubr.f32.mxu0 0.0
    %722 = vmatmul.mubr.f32.gmra.mrb[0].mxu0 %v599
    %v723 = vpop.f32.mrb[0].mxu0
    %v724 = vadd.f32 %v547, %v723
    %v725 = vpop.f32.mrb[0].mxu0
    %726 = vmatprep.mubr.f32.mxu0 0.0
    %727 = vmatmul.mubr.f32.gmra.mrb[0].mxu0 %v602
    %v728 = vpop.f32.mrb[0].mxu0
    %v729 = vadd.f32 %v549, %v728
    %v730 = vpop.f32.mrb[0].mxu0
    %731 = vmatprep.mubr.f32.mxu0 0.0
    %732 = vmatmul.mubr.f32.gmra.mrb[0].mxu0 %v605
    %v733 = vpop.f32.mrb[0].mxu0
    %v734 = vadd.f32 %v551, %v733
    %v735 = vpop.f32.mrb[0].mxu0
    %736 = vmatprep.mubr.f32.mxu0 0.0
    %737 = vmatmul.mubr.f32.gmra.mrb[0].mxu0 %v608
    %v738 = vpop.f32.mrb[0].mxu0
    %v739 = vadd.f32 %v553, %v738
    %v740 = vpop.f32.mrb[0].mxu0
    %741 = vmatprep.mubr.f32.mxu0 0.0
    %742 = vmatmul.mubr.f32.gmra.mrb[0].mxu0 %v611
    %v743 = vpop.f32.mrb[0].mxu0
    %v744 = vadd.f32 %v555, %v743
    %v745 = vpop.f32.mrb[0].mxu0
    %746 = vmatprep.mubr.f32.mxu0 0.0
    %747 = vmatmul.mubr.f32.gmra.mrb[0].mxu0 %v614
    %v748 = vpop.f32.mrb[0].mxu0
    %v749 = vadd.f32 %v557, %v748
    %v750 = vpop.f32.mrb[0].mxu0
    %751 = vmatprep.mubr.f32.mxu0 0.0
    %752 = vmatmul.mubr.f32.gmra.mrb[0].mxu0 %v617
    %v753 = vpop.f32.mrb[0].mxu0
    %v754 = vadd.f32 %v559, %v753
    %v755 = vpop.f32.mrb[0].mxu0
    %756 = vmatprep.mubr.f32.mxu0 0.0
    %757 = vmatmul.mubr.f32.gmra.mrb[0].mxu0 %v620
    %v758 = vpop.f32.mrb[0].mxu0
    %v759 = vadd.f32 %v561, %v758
    %v760 = vpop.f32.mrb[0].mxu0
    %761 = vmatprep.mubr.f32.mxu0 0.0
    %762 = vmatmul.mubr.f32.gmra.mrb[0].mxu0 %v623
    %v763 = vpop.f32.mrb[0].mxu0
    %v764 = vadd.f32 %v563, %v763
    %v765 = vpop.f32.mrb[0].mxu0
    %766 = vmatprep.mubr.f32.mxu0 0.0
    %767 = vmatmul.mubr.f32.gmra.mrb[0].mxu0 %v626
    %v768 = vpop.f32.mrb[0].mxu0
    %v769 = vadd.f32 %v565, %v768
    %v770 = vpop.f32.mrb[0].mxu0
    %771 = vmatprep.mubr.f32.mxu0 0.0
    %772 = vmatmul.mubr.f32.gmra.mrb[0].mxu0 %v629
    %v773 = vpop.f32.mrb[0].mxu0
    %v774 = vadd.f32 %v567, %v773
    %v775 = vpop.f32.mrb[0].mxu0
    %776 = vmatprep.mubr.f32.mxu0 0.0
    %777 = vmatmul.mubr.f32.gmra.mrb[0].mxu0 %v632
    %v778 = vpop.f32.mrb[0].mxu0
    %v779 = vadd.f32 %v569, %v778
    %v780 = vpop.f32.mrb[0].mxu0
    %781 = vdwg.mxu0
    %v782 = vmul.f32 %v704, 0.5
    %v783 = vmul.f32 %v709, 0.5
    %v784 = vmul.f32 %v714, 0.5
    %v785 = vmul.f32 %v719, 0.5
    %v786 = vmul.f32 %v724, 0.5
    %v787 = vmul.f32 %v729, 0.5
    %v788 = vmul.f32 %v734, 0.5
    %v789 = vmul.f32 %v739, 0.5
    %v790 = vmul.f32 %v744, 0.5
    %v791 = vmul.f32 %v749, 0.5
    %v792 = vmul.f32 %v754, 0.5
    %v793 = vmul.f32 %v759, 0.5
    %v794 = vmul.f32 %v764, 0.5
    %v795 = vmul.f32 %v769, 0.5
    %v796 = vmul.f32 %v774, 0.5
    %v797 = vmul.f32 %v779, 0.5
    %v798 = vtanh.pop %v782
    %v799 = vtanh.pop %v783
    %v800 = vtanh.pop %v784
    %v801 = vtanh.pop %v785
    %v802 = vtanh.pop %v786
    %v803 = vtanh.pop %v787
    %v804 = vtanh.pop %v788
    %v805 = vtanh.pop %v789
    %v806 = vtanh.pop %v790
    %v807 = vtanh.pop %v791
    %v808 = vtanh.pop %v792
    %v809 = vtanh.pop %v793
    %v810 = vtanh.pop %v794
    %v811 = vtanh.pop %v795
    %v812 = vtanh.pop %v796
    %v813 = vtanh.pop %v797
    %v814 = vadd.f32 %v798, 1.0
    %v815 = vadd.f32 %v799, 1.0
    %v816 = vadd.f32 %v800, 1.0
    %v817 = vadd.f32 %v801, 1.0
    %v818 = vadd.f32 %v802, 1.0
    %v819 = vadd.f32 %v803, 1.0
    %v820 = vadd.f32 %v804, 1.0
    %v821 = vadd.f32 %v805, 1.0
    %v822 = vadd.f32 %v806, 1.0
    %v823 = vadd.f32 %v807, 1.0
    %v824 = vadd.f32 %v808, 1.0
    %v825 = vadd.f32 %v809, 1.0
    %v826 = vadd.f32 %v810, 1.0
    %v827 = vadd.f32 %v811, 1.0
    %v828 = vadd.f32 %v812, 1.0
    %v829 = vadd.f32 %v813, 1.0
    %v830 = vmul.f32 %v814, 0.5
    %v831 = vmul.f32 %v815, 0.5
    %v832 = vmul.f32 %v816, 0.5
    %v833 = vmul.f32 %v817, 0.5
    %v834 = vmul.f32 %v818, 0.5
    %v835 = vmul.f32 %v819, 0.5
    %v836 = vmul.f32 %v820, 0.5
    %v837 = vmul.f32 %v821, 0.5
    %v838 = vmul.f32 %v822, 0.5
    %v839 = vmul.f32 %v823, 0.5
    %v840 = vmul.f32 %v824, 0.5
    %v841 = vmul.f32 %v825, 0.5
    %v842 = vmul.f32 %v826, 0.5
    %v843 = vmul.f32 %v827, 0.5
    %v844 = vmul.f32 %v828, 0.5
    %v845 = vmul.f32 %v829, 0.5
    %vm846 = vcmask 7168
    %847 = vst.msk [vmem:[#allocation19] sm:$0xff] %vm846, %v444
    %848 = vst.msk [vmem:[#allocation19 + $0x8] sm:$0xff] %vm846, %v830
    %849 = vst.msk [vmem:[#allocation19 + $0x10] sm:$0xff] %vm846, %v831
    %850 = vst.msk [vmem:[#allocation19 + $0x18] sm:$0xff] %vm846, %v832
    %851 = vst.msk [vmem:[#allocation19 + $0x20] sm:$0xff] %vm846, %v833
    %852 = vst.msk [vmem:[#allocation19 + $0x28] sm:$0xff] %vm846, %v834
    %853 = vst.msk [vmem:[#allocation19 + $0x30] sm:$0xff] %vm846, %v835
    %854 = vst.msk [vmem:[#allocation19 + $0x38] sm:$0xff] %vm846, %v836
    %855 = vst.msk [vmem:[#allocation19 + $0x40] sm:$0xff] %vm846, %v837
    %856 = vst.msk [vmem:[#allocation19 + $0x48] sm:$0xff] %vm846, %v838
    %857 = vst.msk [vmem:[#allocation19 + $0x50] sm:$0xff] %vm846, %v839
    %858 = vst.msk [vmem:[#allocation19 + $0x58] sm:$0xff] %vm846, %v840
    %859 = vst.msk [vmem:[#allocation19 + $0x60] sm:$0xff] %vm846, %v841
    %860 = vst.msk [vmem:[#allocation19 + $0x68] sm:$0xff] %vm846, %v842
    %861 = vst.msk [vmem:[#allocation19 + $0x70] sm:$0xff] %vm846, %v843
    %862 = vst.msk [vmem:[#allocation19 + $0x78] sm:$0xff] %vm846, %v844
    %863 = vst.msk [vmem:[#allocation19 + $0x80] sm:$0xff] %vm846, %v845
    %865 = vset.pattern.permute.xlu0 0
    %866 = vperm.xlu0 %865, %v444
    %v867 = vpop.permute.xlu0 %866
    %v869 = vmul.f32 %v274, %v867
    %v870 = vmul.f32 %v275, %v867
    %v871 = vpack.c.bf16 %v869, %v869
    %v872 = vpack.c.bf16 %v870, %v870
    %v877 = vunpack.c.l.b16 %v250
    %v878 = vunpack.c.l.b16 %v251
    %v879 = vunpack.c.l.b16 %v252
    %v880 = vunpack.c.l.b16 %v253
    %v881 = vpack.c.b16 %v878, %v877
    %v882 = vpack.c.b16 %v880, %v879
    %v884 = vsel %vm281, %v881, 0
    %v887 = vsel %vm281, %v882, 0
    %v890 = vsel %vm536, %v871, 0
    %v893 = vsel %vm536, %v872, 0
    %895 = vmatprep.subr.bf16.mxu0 %v893
    %896 = vmatpush1.bf16.msra.mxu0 %v890
    %897 = vmatprep.subr.bf16.mxu0 0
    %898 = vmatpush1.bf16.msra.mxu0 0
    %899 = vmatprep.subr.bf16.mxu0 0
    %900 = vmatpush1.bf16.msra.mxu0 0
    %901 = vmatprep.subr.bf16.mxu0 0
    %902 = vmatpush1.bf16.msra.mxu0 0
    %903 = vmatprep.subr.bf16.mxu0 0
    %904 = vmatpush1.bf16.msra.mxu0 0
    %905 = vmatprep.subr.bf16.mxu0 0
    %906 = vmatpush1.bf16.msra.mxu0 0
    %907 = vmatprep.subr.bf16.mxu0 0
    %908 = vmatpush1.bf16.msra.mxu0 0
    %909 = vmatprep.subr.bf16.mxu0 0
    %910 = vmatpush1.bf16.msra.mxu0 0
    %911 = vmatprep.subr.bf16.mxu0 0
    %912 = vmatpush1.bf16.msra.mxu0 0
    %913 = vmatprep.subr.bf16.mxu0 0
    %914 = vmatpush1.bf16.msra.mxu0 0
    %915 = vmatprep.subr.bf16.mxu0 0
    %916 = vmatpush1.bf16.msra.mxu0 0
    %917 = vmatprep.subr.bf16.mxu0 0
    %918 = vmatpush1.bf16.msra.mxu0 0
    %919 = vmatprep.subr.bf16.mxu0 0
    %920 = vmatpush1.bf16.msra.mxu0 0
    %921 = vmatprep.subr.bf16.mxu0 0
    %922 = vmatpush1.bf16.msra.mxu0 0
    %923 = vmatprep.subr.bf16.mxu0 0
    %924 = vmatpush1.bf16.msra.mxu0 0
    %925 = vmatprep.subr.bf16.mxu0 0
    %926 = vmatpush1.bf16.msra.mxu0 0
    %927 = vmatprep.mubr.bf16.mxu0 0
    %928 = vmatmul.mubr.bf16.gmra.mrb[0].mxu0 %v884
    %v929 = vpop.f32.mrb[0].mxu0
    %v930 = vadd.f32 0.0, %v929
    %v931 = vpop.f32.mrb[0].mxu0
    %v932 = vadd.f32 0.0, %v931
    %v933 = vpop.f32.mrb[0].mxu0
    %v934 = vadd.f32 0.0, %v933
    %v935 = vpop.f32.mrb[0].mxu0
    %v936 = vadd.f32 0.0, %v935
    %937 = vmatprep.mubr.bf16.mxu0 0
    %938 = vmatmul.mubr.bf16.gmra.mrb[0].mxu0 %v887
    %v939 = vpop.f32.mrb[0].mxu0
    %v940 = vadd.f32 0.0, %v939
    %v941 = vpop.f32.mrb[0].mxu0
    %v942 = vadd.f32 0.0, %v941
    %v943 = vpop.f32.mrb[0].mxu0
    %v944 = vadd.f32 0.0, %v943
    %v945 = vpop.f32.mrb[0].mxu0
    %v946 = vadd.f32 0.0, %v945
    %947 = vdwg.mxu0
    %949 = vset.pattern.permute.xlu0 0
    %950 = vperm.xlu0 %949, %v205
    %v951 = vpop.permute.xlu0 %950
    %954 = vset.pattern.permute.xlu0 0
    %955 = vperm.xlu0 %954, %v206
    %v956 = vpop.permute.xlu0 %955
    %959 = vset.pattern.permute.xlu0 0
    %960 = vperm.xlu0 %959, %v207
    %v961 = vpop.permute.xlu0 %960
    %964 = vset.pattern.permute.xlu0 0
    %965 = vperm.xlu0 %964, %v208
    %v966 = vpop.permute.xlu0 %965
    %v968 = vmul.f32 %v930, %v951
    %v969 = vmul.f32 %v932, %v951
    %v970 = vmul.f32 %v934, %v956
    %v971 = vmul.f32 %v936, %v956
    %v972 = vmul.f32 %v940, %v961
    %v973 = vmul.f32 %v942, %v961
    %v974 = vmul.f32 %v944, %v966
    %v975 = vmul.f32 %v946, %v966
    %977 = vset.pattern.permute.xlu0 0
    %978 = vperm.xlu0 %977, %v209
    %v979 = vpop.permute.xlu0 %978
    %982 = vset.pattern.permute.xlu0 0
    %983 = vperm.xlu0 %982, %v210
    %v984 = vpop.permute.xlu0 %983
    %987 = vset.pattern.permute.xlu0 0
    %988 = vperm.xlu0 %987, %v211
    %v989 = vpop.permute.xlu0 %988
    %992 = vset.pattern.permute.xlu0 0
    %993 = vperm.xlu0 %992, %v212
    %v994 = vpop.permute.xlu0 %993
    %v996 = vadd.f32 %v968, %v979
    %v997 = vadd.f32 %v969, %v979
    %v998 = vadd.f32 %v970, %v984
    %v999 = vadd.f32 %v971, %v984
    %v1000 = vadd.f32 %v972, %v989
    %v1001 = vadd.f32 %v973, %v989
    %v1002 = vadd.f32 %v974, %v994
    %v1003 = vadd.f32 %v975, %v994
    %v1004 = vmax.f32 %v996, 0.0
    %v1005 = vmax.f32 %v997, 0.0
    %v1006 = vmax.f32 %v998, 0.0
    %v1007 = vmax.f32 %v999, 0.0
    %v1008 = vmax.f32 %v1000, 0.0
    %v1009 = vmax.f32 %v1001, 0.0
    %v1010 = vmax.f32 %v1002, 0.0
    %v1011 = vmax.f32 %v1003, 0.0
    %1013 = vset.pattern.permute.xlu0 0
    %1014 = vperm.xlu0 %1013, %v830
    %v1015 = vpop.permute.xlu0 %1014
    %1018 = vset.pattern.permute.xlu0 0
    %1019 = vperm.xlu0 %1018, %v831
    %v1020 = vpop.permute.xlu0 %1019
    %1023 = vset.pattern.permute.xlu0 0
    %1024 = vperm.xlu0 %1023, %v832
    %v1025 = vpop.permute.xlu0 %1024
    %1028 = vset.pattern.permute.xlu0 0
    %1029 = vperm.xlu0 %1028, %v833
    %v1030 = vpop.permute.xlu0 %1029
    %v1032 = vmul.f32 %v1004, %v1015
    %v1033 = vmul.f32 %v1005, %v1015
    %v1034 = vmul.f32 %v1006, %v1020
    %v1035 = vmul.f32 %v1007, %v1020
    %v1036 = vmul.f32 %v1008, %v1025
    %v1037 = vmul.f32 %v1009, %v1025
    %v1038 = vmul.f32 %v1010, %v1030
    %v1039 = vmul.f32 %v1011, %v1030
    %v1040 = vpack.c.bf16 %v1034, %v1032
    %v1041 = vpack.c.bf16 %v1035, %v1033
    %v1042 = vpack.c.bf16 %v1038, %v1036
    %v1043 = vpack.c.bf16 %v1039, %v1037
    %v1044 = vld [vmem:[#allocation15] sm:$0xf]
    %v1045 = vld [vmem:[#allocation15 + $0x4] sm:$0xf]
    %v1046 = vld [vmem:[#allocation15 + $0x8] sm:$0x1]
    %v1050 = vunpack.c.l.b16 %v1044
    %v1051 = vunpack.c.l.b16 %v1045
    %v1052 = vunpack.c.l.b16 %v1046
    %v1053 = vpack.c.b16 %v1051, %v1050
    %v1054 = vpack.c.b16 %v1052, %v1052
    %vm1055 = vcmask 261120
    %v1057 = vsel %vm1055, %v1053, 0
    %v1060 = vsel %vm1055, %v1054, 0
    %1062 = vmatprep.subr.bf16.mxu0 %v1041
    %1063 = vmatpush1.bf16.msra.mxu0 %v1040
    %1064 = vmatprep.subr.bf16.mxu0 %v1043
    %1065 = vmatpush1.bf16.msra.mxu0 %v1042
    %1066 = vmatprep.subr.bf16.mxu0 0
    %1067 = vmatpush1.bf16.msra.mxu0 0
    %1068 = vmatprep.subr.bf16.mxu0 0
    %1069 = vmatpush1.bf16.msra.mxu0 0
    %1070 = vmatprep.subr.bf16.mxu0 0
    %1071 = vmatpush1.bf16.msra.mxu0 0
    %1072 = vmatprep.subr.bf16.mxu0 0
    %1073 = vmatpush1.bf16.msra.mxu0 0
    %1074 = vmatprep.subr.bf16.mxu0 0
    %1075 = vmatpush1.bf16.msra.mxu0 0
    %1076 = vmatprep.subr.bf16.mxu0 0
    %1077 = vmatpush1.bf16.msra.mxu0 0
    %1078 = vmatprep.subr.bf16.mxu0 0
    %1079 = vmatpush1.bf16.msra.mxu0 0
    %1080 = vmatprep.subr.bf16.mxu0 0
    %1081 = vmatpush1.bf16.msra.mxu0 0
    %1082 = vmatprep.subr.bf16.mxu0 0
    %1083 = vmatpush1.bf16.msra.mxu0 0
    %1084 = vmatprep.subr.bf16.mxu0 0
    %1085 = vmatpush1.bf16.msra.mxu0 0
    %1086 = vmatprep.subr.bf16.mxu0 0
    %1087 = vmatpush1.bf16.msra.mxu0 0
    %1088 = vmatprep.subr.bf16.mxu0 0
    %1089 = vmatpush1.bf16.msra.mxu0 0
    %1090 = vmatprep.subr.bf16.mxu0 0
    %1091 = vmatpush1.bf16.msra.mxu0 0
    %1092 = vmatprep.subr.bf16.mxu0 0
    %1093 = vmatpush1.bf16.msra.mxu0 0
    %1094 = vmatprep.mubr.bf16.mxu0 0
    %1095 = vmatmul.mubr.bf16.gmra.mrb[0].mxu0 %v1057
    %v1096 = vpop.f32.mrb[0].mxu0
    %v1097 = vadd.f32 0.0, %v1096
    %v1098 = vpop.f32.mrb[0].mxu0
    %v1099 = vadd.f32 0.0, %v1098
    %v1100 = vpop.f32.mrb[0].mxu0
    %v1101 = vadd.f32 0.0, %v1100
    %v1102 = vpop.f32.mrb[0].mxu0
    %v1103 = vadd.f32 0.0, %v1102
    %1104 = vmatprep.mubr.bf16.mxu0 0
    %1105 = vmatmul.mubr.bf16.gmra.mrb[0].mxu0 %v1060
    %v1106 = vpop.f32.mrb[0].mxu0
    %v1107 = vadd.f32 0.0, %v1106
    %v1108 = vpop.f32.mrb[0].mxu0
    %v1109 = vadd.f32 0.0, %v1108
    %v1110 = vpop.f32.mrb[0].mxu0
    %v1111 = vpop.f32.mrb[0].mxu0
    %1112 = vdwg.mxu0
    %1113 = vrot.lane.b32.xlu0 %v1097, 17
    %v1114 = vpop.permute.xlu0 %1113
    %1115 = vrot.lane.b32.xlu0 %v1099, 17
    %v1116 = vpop.permute.xlu0 %1115
    %v1117 = vlaneseq
    %v1118 = vand.u32 %v1117, 127
    %vm1119 = vcmp.lt.s32.totalorder %v1118, 17
    %v1120 = vsel %vm1119, %v1114, %v1116
    %v1121 = vsel %vm1119, %v1116, %v1114
    %v1122 = vlaneseq
    %v1123 = vshrl.u32 %v1122, 7
    %v1124 = vsub.s32 0, %v1123
    %v1125 = vrot.slane %v254, %v1124
    %v1126 = vlaneseq
    %v1127 = vshrl.u32 %v1126, 7
    %v1128 = vsub.s32 0, %v1127
    %v1129 = vrot.slane %v255, %v1128
    %v1130 = vmul.f32 %v1121, %v1125
    %v1131 = vmul.f32 %v1120, %v1129
    %v1132 = vadd.f32 %v1130, 0.0
    %v1133 = vadd.f32 %v1131, 0.0
    %v1136 = vrot.slane %v1097, 2
    %v1137 = vrot.slane %v1099, 2
    %1140 = vrot.lane.b32.xlu0 %v1136, 16
    %v1141 = vpop.permute.xlu0 %1140
    %1142 = vrot.lane.b32.xlu0 %v1137, 16
    %v1143 = vpop.permute.xlu0 %1142
    %vm1144 = vcmp.lt.s32.totalorder %v1118, 16
    %v1145 = vsel %vm1144, %v1141, %v1143
    %v1146 = vsel %vm1144, %v1143, %v1141
    %v1147 = vlaneseq
    %v1148 = vshrl.u32 %v1147, 7
    %v1149 = vsub.s32 1, %v1148
    %v1150 = vrot.slane %v254, %v1149
    %v1151 = vlaneseq
    %v1152 = vshrl.u32 %v1151, 7
    %v1153 = vsub.s32 1, %v1152
    %v1154 = vrot.slane %v255, %v1153
    %v1155 = vmul.f32 %v1146, %v1150
    %v1156 = vmul.f32 %v1145, %v1154
    %v1157 = vadd.f32 %v1132, %v1155
    %v1158 = vadd.f32 %v1133, %v1156
    %v1159 = vrot.slane %v1097, 4
    %v1160 = vrot.slane %v1099, 4
    %1163 = vrot.lane.b32.xlu0 %v1159, 15
    %v1164 = vpop.permute.xlu0 %1163
    %1165 = vrot.lane.b32.xlu0 %v1160, 15
    %v1166 = vpop.permute.xlu0 %1165
    %vm1167 = vcmp.lt.s32.totalorder %v1118, 15
    %v1168 = vsel %vm1167, %v1164, %v1166
    %v1169 = vsel %vm1167, %v1166, %v1164
    %v1170 = vlaneseq
    %v1171 = vshrl.u32 %v1170, 7
    %v1172 = vsub.s32 2, %v1171
    %v1173 = vrot.slane %v254, %v1172
    %v1174 = vlaneseq
    %v1175 = vshrl.u32 %v1174, 7
    %v1176 = vsub.s32 2, %v1175
    %v1177 = vrot.slane %v255, %v1176
    %v1178 = vmul.f32 %v1169, %v1173
    %v1179 = vmul.f32 %v1168, %v1177
    %v1180 = vadd.f32 %v1157, %v1178
    %v1181 = vadd.f32 %v1158, %v1179
    %v1182 = vrot.slane %v1097, 6
    %v1183 = vrot.slane %v1099, 6
    %1186 = vrot.lane.b32.xlu0 %v1182, 1
    %v1187 = vpop.permute.xlu0 %1186
    %1188 = vrot.lane.b32.xlu0 %v1183, 1
    %v1189 = vpop.permute.xlu0 %1188
    %vm1190 = vcmp.lt.s32.totalorder %v1118, 1
    %v1191 = vsel %vm1190, %v1187, %v1189
    %v1192 = vsel %vm1190, %v1189, %v1187
    %v1193 = vlaneseq
    %v1194 = vshrl.u32 %v1193, 7
    %v1195 = vsub.s32 3, %v1194
    %v1196 = vrot.slane %v254, %v1195
    %v1197 = vlaneseq
    %v1198 = vshrl.u32 %v1197, 7
    %v1199 = vsub.s32 3, %v1198
    %v1200 = vrot.slane %v255, %v1199
    %v1201 = vmul.f32 %v1192, %v1196
    %v1202 = vmul.f32 %v1191, %v1200
    %v1203 = vadd.f32 %v1180, %v1201
    %v1204 = vadd.f32 %v1181, %v1202
    %v1205 = vadd.f32 %v1203, %v1101
    %v1206 = vadd.f32 %v1204, %v1103
    %v1209 = vrot.slane %v1101, 2
    %v1210 = vrot.slane %v1103, 2
    %1213 = vrot.lane.b32.xlu0 %v1209, 127
    %v1214 = vpop.permute.xlu0 %1213
    %1215 = vrot.lane.b32.xlu0 %v1210, 127
    %v1216 = vpop.permute.xlu0 %1215
    %vm1217 = vcmp.lt.s32.totalorder %v1118, 127
    %v1218 = vsel %vm1217, %v1214, %v1216
    %v1219 = vsel %vm1217, %v1216, %v1214
    %v1220 = vlaneseq
    %v1221 = vshrl.u32 %v1220, 7
    %v1222 = vsub.s32 5, %v1221
    %v1223 = vrot.slane %v254, %v1222
    %v1224 = vlaneseq
    %v1225 = vshrl.u32 %v1224, 7
    %v1226 = vsub.s32 5, %v1225
    %v1227 = vrot.slane %v255, %v1226
    %v1228 = vmul.f32 %v1218, %v1223
    %v1229 = vmul.f32 %v1219, %v1227
    %v1230 = vadd.f32 %v1205, %v1228
    %v1231 = vadd.f32 %v1206, %v1229
    %v1232 = vrot.slane %v1101, 4
    %v1233 = vrot.slane %v1103, 4
    %1236 = vrot.lane.b32.xlu0 %v1232, 113
    %v1237 = vpop.permute.xlu0 %1236
    %1238 = vrot.lane.b32.xlu0 %v1233, 113
    %v1239 = vpop.permute.xlu0 %1238
    %vm1240 = vcmp.lt.s32.totalorder %v1118, 113
    %v1241 = vsel %vm1240, %v1237, %v1239
    %v1242 = vsel %vm1240, %v1239, %v1237
    %v1243 = vlaneseq
    %v1244 = vshrl.u32 %v1243, 7
    %v1245 = vsub.s32 6, %v1244
    %v1246 = vrot.slane %v254, %v1245
    %v1247 = vlaneseq
    %v1248 = vshrl.u32 %v1247, 7
    %v1249 = vsub.s32 6, %v1248
    %v1250 = vrot.slane %v255, %v1249
    %v1251 = vmul.f32 %v1241, %v1246
    %v1252 = vmul.f32 %v1242, %v1250
    %v1253 = vadd.f32 %v1230, %v1251
    %v1254 = vadd.f32 %v1231, %v1252
    %v1255 = vrot.slane %v1101, 6
    %v1256 = vrot.slane %v1103, 6
    %1259 = vrot.lane.b32.xlu0 %v1255, 112
    %v1260 = vpop.permute.xlu0 %1259
    %1261 = vrot.lane.b32.xlu0 %v1256, 112
    %v1262 = vpop.permute.xlu0 %1261
    %vm1263 = vcmp.lt.s32.totalorder %v1118, 112
    %v1264 = vsel %vm1263, %v1260, %v1262
    %v1265 = vsel %vm1263, %v1262, %v1260
    %v1266 = vlaneseq
    %v1267 = vshrl.u32 %v1266, 7
    %v1268 = vsub.s32 7, %v1267
    %v1269 = vrot.slane %v254, %v1268
    %v1270 = vlaneseq
    %v1271 = vshrl.u32 %v1270, 7
    %v1272 = vsub.s32 7, %v1271
    %v1273 = vrot.slane %v255, %v1272
    %v1274 = vmul.f32 %v1264, %v1269
    %v1275 = vmul.f32 %v1265, %v1273
    %v1276 = vadd.f32 %v1253, %v1274
    %v1277 = vadd.f32 %v1254, %v1275
    %1278 = vrot.lane.b32.xlu0 %v1107, 111
    %v1279 = vpop.permute.xlu0 %1278
    %1280 = vrot.lane.b32.xlu0 %v1109, 111
    %v1281 = vpop.permute.xlu0 %1280
    %vm1282 = vcmp.lt.s32.totalorder %v1118, 111
    %v1283 = vsel %vm1282, %v1279, %v1281
    %v1284 = vsel %vm1282, %v1281, %v1279
    %v1285 = vlaneseq
    %v1286 = vshrl.u32 %v1285, 7
    %v1287 = vsub.s32 0, %v1286
    %v1288 = vrot.slane %v256, %v1287
    %v1289 = vlaneseq
    %v1290 = vshrl.u32 %v1289, 7
    %v1291 = vsub.s32 0, %v1290
    %v1292 = vrot.slane %v257, %v1291
    %v1293 = vmul.f32 %v1283, %v1288
    %v1294 = vmul.f32 %v1284, %v1292
    %v1295 = vadd.f32 %v1276, %v1293
    %v1296 = vadd.f32 %v1277, %v1294
    %1297 = vst [vmem:[#allocation18 + $0x10] sm:$0x3] %v1295
    %1298 = vst [vmem:[#allocation18 + $0x18] sm:$0x3] %v1296
    %1300 = vset.pattern.permute.xlu0 0
    %1301 = vperm.xlu0 %1300, %v834
    %v1302 = vpop.permute.xlu0 %1301
    %1305 = vset.pattern.permute.xlu0 0
    %1306 = vperm.xlu0 %1305, %v835
    %v1307 = vpop.permute.xlu0 %1306
    %1310 = vset.pattern.permute.xlu0 0
    %1311 = vperm.xlu0 %1310, %v836
    %v1312 = vpop.permute.xlu0 %1311
    %1315 = vset.pattern.permute.xlu0 0
    %1316 = vperm.xlu0 %1315, %v837
    %v1317 = vpop.permute.xlu0 %1316
    %v1319 = vmul.f32 %v1004, %v1302
    %v1320 = vmul.f32 %v1005, %v1302
    %v1321 = vmul.f32 %v1006, %v1307
    %v1322 = vmul.f32 %v1007, %v1307
    %v1323 = vmul.f32 %v1008, %v1312
    %v1324 = vmul.f32 %v1009, %v1312
    %v1325 = vmul.f32 %v1010, %v1317
    %v1326 = vmul.f32 %v1011, %v1317
    %v1327 = vpack.c.bf16 %v1321, %v1319
    %v1328 = vpack.c.bf16 %v1322, %v1320
    %v1329 = vpack.c.bf16 %v1325, %v1323
    %v1330 = vpack.c.bf16 %v1326, %v1324
    %s1331 = scalar_lea.vmem [#allocation15], 12
    %v1332 = vld [vmem:[%s1331] sm:$0xf]
    %v1333 = vld [vmem:[%s1331 + $0x4] sm:$0xf]
    %v1334 = vld [vmem:[%s1331 + $0x8] sm:$0x1]
    %v1338 = vunpack.c.l.b16 %v1332
    %v1339 = vunpack.c.l.b16 %v1333
    %v1340 = vunpack.c.l.b16 %v1334
    %v1341 = vpack.c.b16 %v1339, %v1338
    %v1342 = vpack.c.b16 %v1340, %v1340
    %v1344 = vsel %vm1055, %v1341, 0
    %v1347 = vsel %vm1055, %v1342, 0
    %1349 = vmatprep.subr.bf16.mxu0 %v1328
    %1350 = vmatpush1.bf16.msra.mxu0 %v1327
    %1351 = vmatprep.subr.bf16.mxu0 %v1330
    %1352 = vmatpush1.bf16.msra.mxu0 %v1329
    %1353 = vmatprep.subr.bf16.mxu0 0
    %1354 = vmatpush1.bf16.msra.mxu0 0
    %1355 = vmatprep.subr.bf16.mxu0 0
    %1356 = vmatpush1.bf16.msra.mxu0 0
    %1357 = vmatprep.subr.bf16.mxu0 0
    %1358 = vmatpush1.bf16.msra.mxu0 0
    %1359 = vmatprep.subr.bf16.mxu0 0
    %1360 = vmatpush1.bf16.msra.mxu0 0
    %1361 = vmatprep.subr.bf16.mxu0 0
    %1362 = vmatpush1.bf16.msra.mxu0 0
    %1363 = vmatprep.subr.bf16.mxu0 0
    %1364 = vmatpush1.bf16.msra.mxu0 0
    %1365 = vmatprep.subr.bf16.mxu0 0
    %1366 = vmatpush1.bf16.msra.mxu0 0
    %1367 = vmatprep.subr.bf16.mxu0 0
    %1368 = vmatpush1.bf16.msra.mxu0 0
    %1369 = vmatprep.subr.bf16.mxu0 0
    %1370 = vmatpush1.bf16.msra.mxu0 0
    %1371 = vmatprep.subr.bf16.mxu0 0
    %1372 = vmatpush1.bf16.msra.mxu0 0
    %1373 = vmatprep.subr.bf16.mxu0 0
    %1374 = vmatpush1.bf16.msra.mxu0 0
    %1375 = vmatprep.subr.bf16.mxu0 0
    %1376 = vmatpush1.bf16.msra.mxu0 0
    %1377 = vmatprep.subr.bf16.mxu0 0
    %1378 = vmatpush1.bf16.msra.mxu0 0
    %1379 = vmatprep.subr.bf16.mxu0 0
    %1380 = vmatpush1.bf16.msra.mxu0 0
    %1381 = vmatprep.mubr.bf16.mxu0 0
    %1382 = vmatmul.mubr.bf16.gmra.mrb[0].mxu0 %v1344
    %v1383 = vpop.f32.mrb[0].mxu0
    %v1384 = vadd.f32 0.0, %v1383
    %v1385 = vpop.f32.mrb[0].mxu0
    %v1386 = vadd.f32 0.0, %v1385
    %v1387 = vpop.f32.mrb[0].mxu0
    %v1388 = vadd.f32 0.0, %v1387
    %v1389 = vpop.f32.mrb[0].mxu0
    %v1390 = vadd.f32 0.0, %v1389
    %1391 = vmatprep.mubr.bf16.mxu0 0
    %1392 = vmatmul.mubr.bf16.gmra.mrb[0].mxu0 %v1347
    %v1393 = vpop.f32.mrb[0].mxu0
    %v1394 = vadd.f32 0.0, %v1393
    %v1395 = vpop.f32.mrb[0].mxu0
    %v1396 = vadd.f32 0.0, %v1395
    %v1397 = vpop.f32.mrb[0].mxu0
    %v1398 = vpop.f32.mrb[0].mxu0
    %1399 = vdwg.mxu0
    %1400 = vrot.lane.b32.xlu0 %v1384, 17
    %v1401 = vpop.permute.xlu0 %1400
    %1402 = vrot.lane.b32.xlu0 %v1386, 17
    %v1403 = vpop.permute.xlu0 %1402
    %v1404 = vsel %vm1119, %v1401, %v1403
    %v1405 = vsel %vm1119, %v1403, %v1401
    %v1406 = vmul.f32 %v1405, %v1125
    %v1407 = vmul.f32 %v1404, %v1129
    %v1408 = vadd.f32 %v1406, 0.0
    %v1409 = vadd.f32 %v1407, 0.0
    %v1412 = vrot.slane %v1384, 2
    %v1413 = vrot.slane %v1386, 2
    %1416 = vrot.lane.b32.xlu0 %v1412, 16
    %v1417 = vpop.permute.xlu0 %1416
    %1418 = vrot.lane.b32.xlu0 %v1413, 16
    %v1419 = vpop.permute.xlu0 %1418
    %v1420 = vsel %vm1144, %v1417, %v1419
    %v1421 = vsel %vm1144, %v1419, %v1417
    %v1422 = vmul.f32 %v1421, %v1150
    %v1423 = vmul.f32 %v1420, %v1154
    %v1424 = vadd.f32 %v1408, %v1422
    %v1425 = vadd.f32 %v1409, %v1423
    %v1426 = vrot.slane %v1384, 4
    %v1427 = vrot.slane %v1386, 4
    %1430 = vrot.lane.b32.xlu0 %v1426, 15
    %v1431 = vpop.permute.xlu0 %1430
    %1432 = vrot.lane.b32.xlu0 %v1427, 15
    %v1433 = vpop.permute.xlu0 %1432
    %v1434 = vsel %vm1167, %v1431, %v1433
    %v1435 = vsel %vm1167, %v1433, %v1431
    %v1436 = vmul.f32 %v1435, %v1173
    %v1437 = vmul.f32 %v1434, %v1177
    %v1438 = vadd.f32 %v1424, %v1436
    %v1439 = vadd.f32 %v1425, %v1437
    %v1440 = vrot.slane %v1384, 6
    %v1441 = vrot.slane %v1386, 6
    %1444 = vrot.lane.b32.xlu0 %v1440, 1
    %v1445 = vpop.permute.xlu0 %1444
    %1446 = vrot.lane.b32.xlu0 %v1441, 1
    %v1447 = vpop.permute.xlu0 %1446
    %v1448 = vsel %vm1190, %v1445, %v1447
    %v1449 = vsel %vm1190, %v1447, %v1445
    %v1450 = vmul.f32 %v1449, %v1196
    %v1451 = vmul.f32 %v1448, %v1200
    %v1452 = vadd.f32 %v1438, %v1450
    %v1453 = vadd.f32 %v1439, %v1451
    %v1454 = vadd.f32 %v1452, %v1388
    %v1455 = vadd.f32 %v1453, %v1390
    %v1458 = vrot.slane %v1388, 2
    %v1459 = vrot.slane %v1390, 2
    %1462 = vrot.lane.b32.xlu0 %v1458, 127
    %v1463 = vpop.permute.xlu0 %1462
    %1464 = vrot.lane.b32.xlu0 %v1459, 127
    %v1465 = vpop.permute.xlu0 %1464
    %v1466 = vsel %vm1217, %v1463, %v1465
    %v1467 = vsel %vm1217, %v1465, %v1463
    %v1468 = vmul.f32 %v1466, %v1223
    %v1469 = vmul.f32 %v1467, %v1227
    %v1470 = vadd.f32 %v1454, %v1468
    %v1471 = vadd.f32 %v1455, %v1469
    %v1472 = vrot.slane %v1388, 4
    %v1473 = vrot.slane %v1390, 4
    %1476 = vrot.lane.b32.xlu0 %v1472, 113
    %v1477 = vpop.permute.xlu0 %1476
    %1478 = vrot.lane.b32.xlu0 %v1473, 113
    %v1479 = vpop.permute.xlu0 %1478
    %v1480 = vsel %vm1240, %v1477, %v1479
    %v1481 = vsel %vm1240, %v1479, %v1477
    %v1482 = vmul.f32 %v1480, %v1246
    %v1483 = vmul.f32 %v1481, %v1250
    %v1484 = vadd.f32 %v1470, %v1482
    %v1485 = vadd.f32 %v1471, %v1483
    %v1486 = vrot.slane %v1388, 6
    %v1487 = vrot.slane %v1390, 6
    %1490 = vrot.lane.b32.xlu0 %v1486, 112
    %v1491 = vpop.permute.xlu0 %1490
    %1492 = vrot.lane.b32.xlu0 %v1487, 112
    %v1493 = vpop.permute.xlu0 %1492
    %v1494 = vsel %vm1263, %v1491, %v1493
    %v1495 = vsel %vm1263, %v1493, %v1491
    %v1496 = vmul.f32 %v1494, %v1269
    %v1497 = vmul.f32 %v1495, %v1273
    %v1498 = vadd.f32 %v1484, %v1496
    %v1499 = vadd.f32 %v1485, %v1497
    %1500 = vrot.lane.b32.xlu0 %v1394, 111
    %v1501 = vpop.permute.xlu0 %1500
    %1502 = vrot.lane.b32.xlu0 %v1396, 111
    %v1503 = vpop.permute.xlu0 %1502
    %v1504 = vsel %vm1282, %v1501, %v1503
    %v1505 = vsel %vm1282, %v1503, %v1501
    %v1506 = vmul.f32 %v1504, %v1288
    %v1507 = vmul.f32 %v1505, %v1292
    %v1508 = vadd.f32 %v1498, %v1506
    %v1509 = vadd.f32 %v1499, %v1507
    %v1512 = vrot.slane %v1508, 6
    %v1513 = vrot.slane %v1509, 6
    %1516 = vst [vmem:[#allocation18 + $0x10] sm:$0xc] %v1512
    %1517 = vst [vmem:[#allocation18 + $0x18] sm:$0xc] %v1513
    %1519 = vset.pattern.permute.xlu0 0
    %1520 = vperm.xlu0 %1519, %v838
    %v1521 = vpop.permute.xlu0 %1520
    %1524 = vset.pattern.permute.xlu0 0
    %1525 = vperm.xlu0 %1524, %v839
    %v1526 = vpop.permute.xlu0 %1525
    %1529 = vset.pattern.permute.xlu0 0
    %1530 = vperm.xlu0 %1529, %v840
    %v1531 = vpop.permute.xlu0 %1530
    %1534 = vset.pattern.permute.xlu0 0
    %1535 = vperm.xlu0 %1534, %v841
    %v1536 = vpop.permute.xlu0 %1535
    %v1538 = vmul.f32 %v1004, %v1521
    %v1539 = vmul.f32 %v1005, %v1521
    %v1540 = vmul.f32 %v1006, %v1526
    %v1541 = vmul.f32 %v1007, %v1526
    %v1542 = vmul.f32 %v1008, %v1531
    %v1543 = vmul.f32 %v1009, %v1531
    %v1544 = vmul.f32 %v1010, %v1536
    %v1545 = vmul.f32 %v1011, %v1536
    %v1546 = vpack.c.bf16 %v1540, %v1538
    %v1547 = vpack.c.bf16 %v1541, %v1539
    %v1548 = vpack.c.bf16 %v1544, %v1542
    %v1549 = vpack.c.bf16 %v1545, %v1543
    %s1550 = scalar_lea.vmem [#allocation15], 24
    %v1551 = vld [vmem:[%s1550] sm:$0xf]
    %v1552 = vld [vmem:[%s1550 + $0x4] sm:$0xf]
    %v1553 = vld [vmem:[%s1550 + $0x8] sm:$0x1]
    %v1557 = vunpack.c.l.b16 %v1551
    %v1558 = vunpack.c.l.b16 %v1552
    %v1559 = vunpack.c.l.b16 %v1553
    %v1560 = vpack.c.b16 %v1558, %v1557
    %v1561 = vpack.c.b16 %v1559, %v1559
    %v1563 = vsel %vm1055, %v1560, 0
    %v1566 = vsel %vm1055, %v1561, 0
    %1568 = vmatprep.subr.bf16.mxu0 %v1547
    %1569 = vmatpush1.bf16.msra.mxu0 %v1546
    %1570 = vmatprep.subr.bf16.mxu0 %v1549
    %1571 = vmatpush1.bf16.msra.mxu0 %v1548
    %1572 = vmatprep.subr.bf16.mxu0 0
    %1573 = vmatpush1.bf16.msra.mxu0 0
    %1574 = vmatprep.subr.bf16.mxu0 0
    %1575 = vmatpush1.bf16.msra.mxu0 0
    %1576 = vmatprep.subr.bf16.mxu0 0
    %1577 = vmatpush1.bf16.msra.mxu0 0
    %1578 = vmatprep.subr.bf16.mxu0 0
    %1579 = vmatpush1.bf16.msra.mxu0 0
    %1580 = vmatprep.subr.bf16.mxu0 0
    %1581 = vmatpush1.bf16.msra.mxu0 0
    %1582 = vmatprep.subr.bf16.mxu0 0
    %1583 = vmatpush1.bf16.msra.mxu0 0
    %1584 = vmatprep.subr.bf16.mxu0 0
    %1585 = vmatpush1.bf16.msra.mxu0 0
    %1586 = vmatprep.subr.bf16.mxu0 0
    %1587 = vmatpush1.bf16.msra.mxu0 0
    %1588 = vmatprep.subr.bf16.mxu0 0
    %1589 = vmatpush1.bf16.msra.mxu0 0
    %1590 = vmatprep.subr.bf16.mxu0 0
    %1591 = vmatpush1.bf16.msra.mxu0 0
    %1592 = vmatprep.subr.bf16.mxu0 0
    %1593 = vmatpush1.bf16.msra.mxu0 0
    %1594 = vmatprep.subr.bf16.mxu0 0
    %1595 = vmatpush1.bf16.msra.mxu0 0
    %1596 = vmatprep.subr.bf16.mxu0 0
    %1597 = vmatpush1.bf16.msra.mxu0 0
    %1598 = vmatprep.subr.bf16.mxu0 0
    %1599 = vmatpush1.bf16.msra.mxu0 0
    %1600 = vmatprep.mubr.bf16.mxu0 0
    %1601 = vmatmul.mubr.bf16.gmra.mrb[0].mxu0 %v1563
    %v1602 = vpop.f32.mrb[0].mxu0
    %v1603 = vadd.f32 0.0, %v1602
    %v1604 = vpop.f32.mrb[0].mxu0
    %v1605 = vadd.f32 0.0, %v1604
    %v1606 = vpop.f32.mrb[0].mxu0
    %v1607 = vadd.f32 0.0, %v1606
    %v1608 = vpop.f32.mrb[0].mxu0
    %v1609 = vadd.f32 0.0, %v1608
    %1610 = vmatprep.mubr.bf16.mxu0 0
    %1611 = vmatmul.mubr.bf16.gmra.mrb[0].mxu0 %v1566
    %v1612 = vpop.f32.mrb[0].mxu0
    %v1613 = vadd.f32 0.0, %v1612
    %v1614 = vpop.f32.mrb[0].mxu0
    %v1615 = vadd.f32 0.0, %v1614
    %v1616 = vpop.f32.mrb[0].mxu0
    %v1617 = vpop.f32.mrb[0].mxu0
    %1618 = vdwg.mxu0
    %1619 = vrot.lane.b32.xlu0 %v1603, 17
    %v1620 = vpop.permute.xlu0 %1619
    %1621 = vrot.lane.b32.xlu0 %v1605, 17
    %v1622 = vpop.permute.xlu0 %1621
    %v1623 = vsel %vm1119, %v1620, %v1622
    %v1624 = vsel %vm1119, %v1622, %v1620
    %v1625 = vmul.f32 %v1624, %v1125
    %v1626 = vmul.f32 %v1623, %v1129
    %v1627 = vadd.f32 %v1625, 0.0
    %v1628 = vadd.f32 %v1626, 0.0
    %v1631 = vrot.slane %v1603, 2
    %v1632 = vrot.slane %v1605, 2
    %1635 = vrot.lane.b32.xlu0 %v1631, 16
    %v1636 = vpop.permute.xlu0 %1635
    %1637 = vrot.lane.b32.xlu0 %v1632, 16
    %v1638 = vpop.permute.xlu0 %1637
    %v1639 = vsel %vm1144, %v1636, %v1638
    %v1640 = vsel %vm1144, %v1638, %v1636
    %v1641 = vmul.f32 %v1640, %v1150
    %v1642 = vmul.f32 %v1639, %v1154
    %v1643 = vadd.f32 %v1627, %v1641
    %v1644 = vadd.f32 %v1628, %v1642
    %v1645 = vrot.slane %v1603, 4
    %v1646 = vrot.slane %v1605, 4
    %1649 = vrot.lane.b32.xlu0 %v1645, 15
    %v1650 = vpop.permute.xlu0 %1649
    %1651 = vrot.lane.b32.xlu0 %v1646, 15
    %v1652 = vpop.permute.xlu0 %1651
    %v1653 = vsel %vm1167, %v1650, %v1652
    %v1654 = vsel %vm1167, %v1652, %v1650
    %v1655 = vmul.f32 %v1654, %v1173
    %v1656 = vmul.f32 %v1653, %v1177
    %v1657 = vadd.f32 %v1643, %v1655
    %v1658 = vadd.f32 %v1644, %v1656
    %v1659 = vrot.slane %v1603, 6
    %v1660 = vrot.slane %v1605, 6
    %1663 = vrot.lane.b32.xlu0 %v1659, 1
    %v1664 = vpop.permute.xlu0 %1663
    %1665 = vrot.lane.b32.xlu0 %v1660, 1
    %v1666 = vpop.permute.xlu0 %1665
    %v1667 = vsel %vm1190, %v1664, %v1666
    %v1668 = vsel %vm1190, %v1666, %v1664
    %v1669 = vmul.f32 %v1668, %v1196
    %v1670 = vmul.f32 %v1667, %v1200
    %v1671 = vadd.f32 %v1657, %v1669
    %v1672 = vadd.f32 %v1658, %v1670
    %v1673 = vadd.f32 %v1671, %v1607
    %v1674 = vadd.f32 %v1672, %v1609
    %v1677 = vrot.slane %v1607, 2
    %v1678 = vrot.slane %v1609, 2
    %1681 = vrot.lane.b32.xlu0 %v1677, 127
    %v1682 = vpop.permute.xlu0 %1681
    %1683 = vrot.lane.b32.xlu0 %v1678, 127
    %v1684 = vpop.permute.xlu0 %1683
    %v1685 = vsel %vm1217, %v1682, %v1684
    %v1686 = vsel %vm1217, %v1684, %v1682
    %v1687 = vmul.f32 %v1685, %v1223
    %v1688 = vmul.f32 %v1686, %v1227
    %v1689 = vadd.f32 %v1673, %v1687
    %v1690 = vadd.f32 %v1674, %v1688
    %v1691 = vrot.slane %v1607, 4
    %v1692 = vrot.slane %v1609, 4
    %1695 = vrot.lane.b32.xlu0 %v1691, 113
    %v1696 = vpop.permute.xlu0 %1695
    %1697 = vrot.lane.b32.xlu0 %v1692, 113
    %v1698 = vpop.permute.xlu0 %1697
    %v1699 = vsel %vm1240, %v1696, %v1698
    %v1700 = vsel %vm1240, %v1698, %v1696
    %v1701 = vmul.f32 %v1699, %v1246
    %v1702 = vmul.f32 %v1700, %v1250
    %v1703 = vadd.f32 %v1689, %v1701
    %v1704 = vadd.f32 %v1690, %v1702
    %v1705 = vrot.slane %v1607, 6
    %v1706 = vrot.slane %v1609, 6
    %1709 = vrot.lane.b32.xlu0 %v1705, 112
    %v1710 = vpop.permute.xlu0 %1709
    %1711 = vrot.lane.b32.xlu0 %v1706, 112
    %v1712 = vpop.permute.xlu0 %1711
    %v1713 = vsel %vm1263, %v1710, %v1712
    %v1714 = vsel %vm1263, %v1712, %v1710
    %v1715 = vmul.f32 %v1713, %v1269
    %v1716 = vmul.f32 %v1714, %v1273
    %v1717 = vadd.f32 %v1703, %v1715
    %v1718 = vadd.f32 %v1704, %v1716
    %1719 = vrot.lane.b32.xlu0 %v1613, 111
    %v1720 = vpop.permute.xlu0 %1719
    %1721 = vrot.lane.b32.xlu0 %v1615, 111
    %v1722 = vpop.permute.xlu0 %1721
    %v1723 = vsel %vm1282, %v1720, %v1722
    %v1724 = vsel %vm1282, %v1722, %v1720
    %v1725 = vmul.f32 %v1723, %v1288
    %v1726 = vmul.f32 %v1724, %v1292
    %v1727 = vadd.f32 %v1717, %v1725
    %v1728 = vadd.f32 %v1718, %v1726
    %v1731 = vrot.slane %v1727, 4
    %v1732 = vrot.slane %v1728, 4
    %1735 = vst [vmem:[#allocation18 + $0x10] sm:$0x30] %v1731
    %1736 = vst [vmem:[#allocation18 + $0x18] sm:$0x30] %v1732
    %1738 = vset.pattern.permute.xlu0 0
    %1739 = vperm.xlu0 %1738, %v842
    %v1740 = vpop.permute.xlu0 %1739
    %1743 = vset.pattern.permute.xlu0 0
    %1744 = vperm.xlu0 %1743, %v843
    %v1745 = vpop.permute.xlu0 %1744
    %1748 = vset.pattern.permute.xlu0 0
    %1749 = vperm.xlu0 %1748, %v844
    %v1750 = vpop.permute.xlu0 %1749
    %1753 = vset.pattern.permute.xlu0 0
    %1754 = vperm.xlu0 %1753, %v845
    %v1755 = vpop.permute.xlu0 %1754
    %v1757 = vmul.f32 %v1004, %v1740
    %v1758 = vmul.f32 %v1005, %v1740
    %v1759 = vmul.f32 %v1006, %v1745
    %v1760 = vmul.f32 %v1007, %v1745
    %v1761 = vmul.f32 %v1008, %v1750
    %v1762 = vmul.f32 %v1009, %v1750
    %v1763 = vmul.f32 %v1010, %v1755
    %v1764 = vmul.f32 %v1011, %v1755
    %v1765 = vpack.c.bf16 %v1759, %v1757
    %v1766 = vpack.c.bf16 %v1760, %v1758
    %v1767 = vpack.c.bf16 %v1763, %v1761
    %v1768 = vpack.c.bf16 %v1764, %v1762
    %s1769 = scalar_lea.vmem [#allocation15], 36
    %v1770 = vld [vmem:[%s1769] sm:$0xf]
    %v1771 = vld [vmem:[%s1769 + $0x4] sm:$0xf]
    %v1772 = vld [vmem:[%s1769 + $0x8] sm:$0x1]
    %v1776 = vunpack.c.l.b16 %v1770
    %v1777 = vunpack.c.l.b16 %v1771
    %v1778 = vunpack.c.l.b16 %v1772
    %v1779 = vpack.c.b16 %v1777, %v1776
    %v1780 = vpack.c.b16 %v1778, %v1778
    %v1782 = vsel %vm1055, %v1779, 0
    %v1785 = vsel %vm1055, %v1780, 0
    %1787 = vmatprep.subr.bf16.mxu0 %v1766
    %1788 = vmatpush1.bf16.msra.mxu0 %v1765
    %1789 = vmatprep.subr.bf16.mxu0 %v1768
    %1790 = vmatpush1.bf16.msra.mxu0 %v1767
    %1791 = vmatprep.subr.bf16.mxu0 0
    %1792 = vmatpush1.bf16.msra.mxu0 0
    %1793 = vmatprep.subr.bf16.mxu0 0
    %1794 = vmatpush1.bf16.msra.mxu0 0
    %1795 = vmatprep.subr.bf16.mxu0 0
    %1796 = vmatpush1.bf16.msra.mxu0 0
    %1797 = vmatprep.subr.bf16.mxu0 0
    %1798 = vmatpush1.bf16.msra.mxu0 0
    %1799 = vmatprep.subr.bf16.mxu0 0
    %1800 = vmatpush1.bf16.msra.mxu0 0
    %1801 = vmatprep.subr.bf16.mxu0 0
    %1802 = vmatpush1.bf16.msra.mxu0 0
    %1803 = vmatprep.subr.bf16.mxu0 0
    %1804 = vmatpush1.bf16.msra.mxu0 0
    %1805 = vmatprep.subr.bf16.mxu0 0
    %1806 = vmatpush1.bf16.msra.mxu0 0
    %1807 = vmatprep.subr.bf16.mxu0 0
    %1808 = vmatpush1.bf16.msra.mxu0 0
    %1809 = vmatprep.subr.bf16.mxu0 0
    %1810 = vmatpush1.bf16.msra.mxu0 0
    %1811 = vmatprep.subr.bf16.mxu0 0
    %1812 = vmatpush1.bf16.msra.mxu0 0
    %1813 = vmatprep.subr.bf16.mxu0 0
    %1814 = vmatpush1.bf16.msra.mxu0 0
    %1815 = vmatprep.subr.bf16.mxu0 0
    %1816 = vmatpush1.bf16.msra.mxu0 0
    %1817 = vmatprep.subr.bf16.mxu0 0
    %1818 = vmatpush1.bf16.msra.mxu0 0
    %1819 = vmatprep.mubr.bf16.mxu0 0
    %1820 = vmatmul.mubr.bf16.gmra.mrb[0].mxu0 %v1782
    %v1821 = vpop.f32.mrb[0].mxu0
    %v1822 = vadd.f32 0.0, %v1821
    %v1823 = vpop.f32.mrb[0].mxu0
    %v1824 = vadd.f32 0.0, %v1823
    %v1825 = vpop.f32.mrb[0].mxu0
    %v1826 = vadd.f32 0.0, %v1825
    %v1827 = vpop.f32.mrb[0].mxu0
    %v1828 = vadd.f32 0.0, %v1827
    %1829 = vmatprep.mubr.bf16.mxu0 0
    %1830 = vmatmul.mubr.bf16.gmra.mrb[0].mxu0 %v1785
    %v1831 = vpop.f32.mrb[0].mxu0
    %v1832 = vadd.f32 0.0, %v1831
    %v1833 = vpop.f32.mrb[0].mxu0
    %v1834 = vadd.f32 0.0, %v1833
    %v1835 = vpop.f32.mrb[0].mxu0
    %v1836 = vpop.f32.mrb[0].mxu0
    %1837 = vdwg.mxu0
    %1838 = vrot.lane.b32.xlu0 %v1822, 17
    %v1839 = vpop.permute.xlu0 %1838
    %1840 = vrot.lane.b32.xlu0 %v1824, 17
    %v1841 = vpop.permute.xlu0 %1840
    %v1842 = vsel %vm1119, %v1839, %v1841
    %v1843 = vsel %vm1119, %v1841, %v1839
    %v1844 = vmul.f32 %v1843, %v1125
    %v1845 = vmul.f32 %v1842, %v1129
    %v1846 = vadd.f32 %v1844, 0.0
    %v1847 = vadd.f32 %v1845, 0.0
    %v1850 = vrot.slane %v1822, 2
    %v1851 = vrot.slane %v1824, 2
    %1854 = vrot.lane.b32.xlu0 %v1850, 16
    %v1855 = vpop.permute.xlu0 %1854
    %1856 = vrot.lane.b32.xlu0 %v1851, 16
    %v1857 = vpop.permute.xlu0 %1856
    %v1858 = vsel %vm1144, %v1855, %v1857
    %v1859 = vsel %vm1144, %v1857, %v1855
    %v1860 = vmul.f32 %v1859, %v1150
    %v1861 = vmul.f32 %v1858, %v1154
    %v1862 = vadd.f32 %v1846, %v1860
    %v1863 = vadd.f32 %v1847, %v1861
    %v1864 = vrot.slane %v1822, 4
    %v1865 = vrot.slane %v1824, 4
    %1868 = vrot.lane.b32.xlu0 %v1864, 15
    %v1869 = vpop.permute.xlu0 %1868
    %1870 = vrot.lane.b32.xlu0 %v1865, 15
    %v1871 = vpop.permute.xlu0 %1870
    %v1872 = vsel %vm1167, %v1869, %v1871
    %v1873 = vsel %vm1167, %v1871, %v1869
    %v1874 = vmul.f32 %v1873, %v1173
    %v1875 = vmul.f32 %v1872, %v1177
    %v1876 = vadd.f32 %v1862, %v1874
    %v1877 = vadd.f32 %v1863, %v1875
    %v1878 = vrot.slane %v1822, 6
    %v1879 = vrot.slane %v1824, 6
    %1882 = vrot.lane.b32.xlu0 %v1878, 1
    %v1883 = vpop.permute.xlu0 %1882
    %1884 = vrot.lane.b32.xlu0 %v1879, 1
    %v1885 = vpop.permute.xlu0 %1884
    %v1886 = vsel %vm1190, %v1883, %v1885
    %v1887 = vsel %vm1190, %v1885, %v1883
    %v1888 = vmul.f32 %v1887, %v1196
    %v1889 = vmul.f32 %v1886, %v1200
    %v1890 = vadd.f32 %v1876, %v1888
    %v1891 = vadd.f32 %v1877, %v1889
    %v1892 = vadd.f32 %v1890, %v1826
    %v1893 = vadd.f32 %v1891, %v1828
    %v1896 = vrot.slane %v1826, 2
    %v1897 = vrot.slane %v1828, 2
    %1900 = vrot.lane.b32.xlu0 %v1896, 127
    %v1901 = vpop.permute.xlu0 %1900
    %1902 = vrot.lane.b32.xlu0 %v1897, 127
    %v1903 = vpop.permute.xlu0 %1902
    %v1904 = vsel %vm1217, %v1901, %v1903
    %v1905 = vsel %vm1217, %v1903, %v1901
    %v1906 = vmul.f32 %v1904, %v1223
    %v1907 = vmul.f32 %v1905, %v1227
    %v1908 = vadd.f32 %v1892, %v1906
    %v1909 = vadd.f32 %v1893, %v1907
    %v1910 = vrot.slane %v1826, 4
    %v1911 = vrot.slane %v1828, 4
    %1914 = vrot.lane.b32.xlu0 %v1910, 113
    %v1915 = vpop.permute.xlu0 %1914
    %1916 = vrot.lane.b32.xlu0 %v1911, 113
    %v1917 = vpop.permute.xlu0 %1916
    %v1918 = vsel %vm1240, %v1915, %v1917
    %v1919 = vsel %vm1240, %v1917, %v1915
    %v1920 = vmul.f32 %v1918, %v1246
    %v1921 = vmul.f32 %v1919, %v1250
    %v1922 = vadd.f32 %v1908, %v1920
    %v1923 = vadd.f32 %v1909, %v1921
    %v1924 = vrot.slane %v1826, 6
    %v1925 = vrot.slane %v1828, 6
    %1928 = vrot.lane.b32.xlu0 %v1924, 112
    %v1929 = vpop.permute.xlu0 %1928
    %1930 = vrot.lane.b32.xlu0 %v1925, 112
    %v1931 = vpop.permute.xlu0 %1930
    %v1932 = vsel %vm1263, %v1929, %v1931
    %v1933 = vsel %vm1263, %v1931, %v1929
    %v1934 = vmul.f32 %v1932, %v1269
    %v1935 = vmul.f32 %v1933, %v1273
    %v1936 = vadd.f32 %v1922, %v1934
    %v1937 = vadd.f32 %v1923, %v1935
    %1938 = vrot.lane.b32.xlu0 %v1832, 111
    %v1939 = vpop.permute.xlu0 %1938
    %1940 = vrot.lane.b32.xlu0 %v1834, 111
    %v1941 = vpop.permute.xlu0 %1940
    %v1942 = vsel %vm1282, %v1939, %v1941
    %v1943 = vsel %vm1282, %v1941, %v1939
    %v1944 = vmul.f32 %v1942, %v1288
    %v1945 = vmul.f32 %v1943, %v1292
    %v1946 = vadd.f32 %v1936, %v1944
    %v1947 = vadd.f32 %v1937, %v1945
    %v1950 = vrot.slane %v1946, 2
    %v1951 = vrot.slane %v1947, 2
    %1954 = vst [vmem:[#allocation18 + $0x10] sm:$0xc0] %v1950
    %1955 = vst [vmem:[#allocation18 + $0x18] sm:$0xc0] %v1951
    %s1956 = scalar_lea.vmem [#allocation3], 16
    %v1957 = vld [vmem:[%s1956] sm:$0xff]
    %v1958 = vld [vmem:[%s1956 + $0x8] sm:$0xff]
    %v1959 = vmul.f32 %v1957, %v263
    %v1960 = vmul.f32 %v1958, %v263
    %v1961 = vadd.f32 %v1959, %v270
    %v1962 = vadd.f32 %v1960, %v270
    %v1963 = vmax.f32 %v1961, 0.0
    %v1964 = vmax.f32 %v1962, 0.0
    %v1965 = vadd.f32 %v1963, %v1964
    %1966 = vadd.xlane.f32.xlu0 %v1965
    %v1967 = vpop.xlane.xlu0 %1966
    %v1968 = vmul.f32 %v1967, %v279
    %1969 = vmatprep.subr.mxu0 0.0
    %1970 = vmatpush1.msra.mxu0 %v1968
    %1971 = vmatprep.subr.mxu0 0.0
    %1972 = vmatpush1.msra.mxu0 0.0
    %1973 = vmatprep.subr.mxu0 0.0
    %1974 = vmatpush1.msra.mxu0 0.0
    %1975 = vmatprep.subr.mxu0 0.0
    %1976 = vmatpush1.msra.mxu0 0.0
    %1977 = vmatprep.subr.mxu0 0.0
    %1978 = vmatpush1.msra.mxu0 0.0
    %1979 = vmatprep.subr.mxu0 0.0
    %1980 = vmatpush1.msra.mxu0 0.0
    %1981 = vmatprep.subr.mxu0 0.0
    %1982 = vmatpush1.msra.mxu0 0.0
    %1983 = vmatprep.subr.mxu0 0.0
    %1984 = vmatpush1.msra.mxu0 0.0
    %1985 = vmatprep.subr.mxu0 0.0
    %1986 = vmatpush1.msra.mxu0 0.0
    %1987 = vmatprep.subr.mxu0 0.0
    %1988 = vmatpush1.msra.mxu0 0.0
    %1989 = vmatprep.subr.mxu0 0.0
    %1990 = vmatpush1.msra.mxu0 0.0
    %1991 = vmatprep.subr.mxu0 0.0
    %1992 = vmatpush1.msra.mxu0 0.0
    %1993 = vmatprep.subr.mxu0 0.0
    %1994 = vmatpush1.msra.mxu0 0.0
    %1995 = vmatprep.subr.mxu0 0.0
    %1996 = vmatpush1.msra.mxu0 0.0
    %1997 = vmatprep.subr.mxu0 0.0
    %1998 = vmatpush1.msra.mxu0 0.0
    %1999 = vmatprep.subr.mxu0 0.0
    %2000 = vmatpush1.msra.mxu0 0.0
    %2001 = vmatprep.subr.mxu0 0.0
    %2002 = vmatpush1.msra.mxu0 0.0
    %2003 = vmatprep.subr.mxu0 0.0
    %2004 = vmatpush1.msra.mxu0 0.0
    %2005 = vmatprep.subr.mxu0 0.0
    %2006 = vmatpush1.msra.mxu0 0.0
    %2007 = vmatprep.subr.mxu0 0.0
    %2008 = vmatpush1.msra.mxu0 0.0
    %2009 = vmatprep.subr.mxu0 0.0
    %2010 = vmatpush1.msra.mxu0 0.0
    %2011 = vmatprep.subr.mxu0 0.0
    %2012 = vmatpush1.msra.mxu0 0.0
    %2013 = vmatprep.subr.mxu0 0.0
    %2014 = vmatpush1.msra.mxu0 0.0
    %2015 = vmatprep.subr.mxu0 0.0
    %2016 = vmatpush1.msra.mxu0 0.0
    %2017 = vmatprep.subr.mxu0 0.0
    %2018 = vmatpush1.msra.mxu0 0.0
    %2019 = vmatprep.subr.mxu0 0.0
    %2020 = vmatpush1.msra.mxu0 0.0
    %2021 = vmatprep.subr.mxu0 0.0
    %2022 = vmatpush1.msra.mxu0 0.0
    %2023 = vmatprep.subr.mxu0 0.0
    %2024 = vmatpush1.msra.mxu0 0.0
    %2025 = vmatprep.subr.mxu0 0.0
    %2026 = vmatpush1.msra.mxu0 0.0
    %2027 = vmatprep.subr.mxu0 0.0
    %2028 = vmatpush1.msra.mxu0 0.0
    %2029 = vmatprep.subr.mxu0 0.0
    %2030 = vmatpush1.msra.mxu0 0.0
    %2031 = vmatprep.subr.mxu0 0.0
    %2032 = vmatpush1.msra.mxu0 0.0
    %2033 = vmatprep.mubr.f32.mxu0 0.0
    %2034 = vmatmul.mubr.f32.gmra.mrb[0].mxu0 %v283
    %v2035 = vpop.f32.mrb[0].mxu0
    %v2036 = vadd.f32 %v213, %v2035
    %v2037 = vpop.f32.mrb[0].mxu0
    %2038 = vdwg.mxu0
    %v2039 = vmax.f32 %v2036, 0.0
    %v2041 = vsel %vm367, %v2039, 0
    %2043 = vmatprep.subr.mxu0 0.0
    %2044 = vmatpush1.msra.mxu0 %v2041
    %2045 = vmatprep.subr.mxu0 0.0
    %2046 = vmatpush1.msra.mxu0 0.0
    %2047 = vmatprep.subr.mxu0 0.0
    %2048 = vmatpush1.msra.mxu0 0.0
    %2049 = vmatprep.subr.mxu0 0.0
    %2050 = vmatpush1.msra.mxu0 0.0
    %2051 = vmatprep.subr.mxu0 0.0
    %2052 = vmatpush1.msra.mxu0 0.0
    %2053 = vmatprep.subr.mxu0 0.0
    %2054 = vmatpush1.msra.mxu0 0.0
    %2055 = vmatprep.subr.mxu0 0.0
    %2056 = vmatpush1.msra.mxu0 0.0
    %2057 = vmatprep.subr.mxu0 0.0
    %2058 = vmatpush1.msra.mxu0 0.0
    %2059 = vmatprep.subr.mxu0 0.0
    %2060 = vmatpush1.msra.mxu0 0.0
    %2061 = vmatprep.subr.mxu0 0.0
    %2062 = vmatpush1.msra.mxu0 0.0
    %2063 = vmatprep.subr.mxu0 0.0
    %2064 = vmatpush1.msra.mxu0 0.0
    %2065 = vmatprep.subr.mxu0 0.0
    %2066 = vmatpush1.msra.mxu0 0.0
    %2067 = vmatprep.subr.mxu0 0.0
    %2068 = vmatpush1.msra.mxu0 0.0
    %2069 = vmatprep.subr.mxu0 0.0
    %2070 = vmatpush1.msra.mxu0 0.0
    %2071 = vmatprep.subr.mxu0 0.0
    %2072 = vmatpush1.msra.mxu0 0.0
    %2073 = vmatprep.subr.mxu0 0.0
    %2074 = vmatpush1.msra.mxu0 0.0
    %2075 = vmatprep.subr.mxu0 0.0
    %2076 = vmatpush1.msra.mxu0 0.0
    %2077 = vmatprep.subr.mxu0 0.0
    %2078 = vmatpush1.msra.mxu0 0.0
    %2079 = vmatprep.subr.mxu0 0.0
    %2080 = vmatpush1.msra.mxu0 0.0
    %2081 = vmatprep.subr.mxu0 0.0
    %2082 = vmatpush1.msra.mxu0 0.0
    %2083 = vmatprep.subr.mxu0 0.0
    %2084 = vmatpush1.msra.mxu0 0.0
    %2085 = vmatprep.subr.mxu0 0.0
    %2086 = vmatpush1.msra.mxu0 0.0
    %2087 = vmatprep.subr.mxu0 0.0
    %2088 = vmatpush1.msra.mxu0 0.0
    %2089 = vmatprep.subr.mxu0 0.0
    %2090 = vmatpush1.msra.mxu0 0.0
    %2091 = vmatprep.subr.mxu0 0.0
    %2092 = vmatpush1.msra.mxu0 0.0
    %2093 = vmatprep.subr.mxu0 0.0
    %2094 = vmatpush1.msra.mxu0 0.0
    %2095 = vmatprep.subr.mxu0 0.0
    %2096 = vmatpush1.msra.mxu0 0.0
    %2097 = vmatprep.subr.mxu0 0.0
    %2098 = vmatpush1.msra.mxu0 0.0
    %2099 = vmatprep.subr.mxu0 0.0
    %2100 = vmatpush1.msra.mxu0 0.0
    %2101 = vmatprep.subr.mxu0 0.0
    %2102 = vmatpush1.msra.mxu0 0.0
    %2103 = vmatprep.subr.mxu0 0.0
    %2104 = vmatpush1.msra.mxu0 0.0
    %2105 = vmatprep.subr.mxu0 0.0
    %2106 = vmatpush1.msra.mxu0 0.0
    %2107 = vmatprep.mubr.f32.mxu0 0.0
    %2108 = vmatmul.mubr.f32.gmra.mrb[0].mxu0 %v365
    %v2109 = vpop.f32.mrb[0].mxu0
    %v2110 = vadd.f32 %v361, %v2109
    %v2111 = vpop.f32.mrb[0].mxu0
    %2112 = vdwg.mxu0
    %v2113 = vmul.f32 %v2110, 0.5
    %v2114 = vtanh.pop %v2113
    %v2115 = vadd.f32 %v2114, 1.0
    %v2116 = vmul.f32 %v2115, 0.5
    %2117 = vmatprep.subr.mxu0 0.0
    %2118 = vmatpush1.msra.mxu0 %v1968
    %2119 = vmatprep.subr.mxu0 0.0
    %2120 = vmatpush1.msra.mxu0 0.0
    %2121 = vmatprep.subr.mxu0 0.0
    %2122 = vmatpush1.msra.mxu0 0.0
    %2123 = vmatprep.subr.mxu0 0.0
    %2124 = vmatpush1.msra.mxu0 0.0
    %2125 = vmatprep.subr.mxu0 0.0
    %2126 = vmatpush1.msra.mxu0 0.0
    %2127 = vmatprep.subr.mxu0 0.0
    %2128 = vmatpush1.msra.mxu0 0.0
    %2129 = vmatprep.subr.mxu0 0.0
    %2130 = vmatpush1.msra.mxu0 0.0
    %2131 = vmatprep.subr.mxu0 0.0
    %2132 = vmatpush1.msra.mxu0 0.0
    %2133 = vmatprep.subr.mxu0 0.0
    %2134 = vmatpush1.msra.mxu0 0.0
    %2135 = vmatprep.subr.mxu0 0.0
    %2136 = vmatpush1.msra.mxu0 0.0
    %2137 = vmatprep.subr.mxu0 0.0
    %2138 = vmatpush1.msra.mxu0 0.0
    %2139 = vmatprep.subr.mxu0 0.0
    %2140 = vmatpush1.msra.mxu0 0.0
    %2141 = vmatprep.subr.mxu0 0.0
    %2142 = vmatpush1.msra.mxu0 0.0
    %2143 = vmatprep.subr.mxu0 0.0
    %2144 = vmatpush1.msra.mxu0 0.0
    %2145 = vmatprep.subr.mxu0 0.0
    %2146 = vmatpush1.msra.mxu0 0.0
    %2147 = vmatprep.subr.mxu0 0.0
    %2148 = vmatpush1.msra.mxu0 0.0
    %2149 = vmatprep.subr.mxu0 0.0
    %2150 = vmatpush1.msra.mxu0 0.0
    %2151 = vmatprep.subr.mxu0 0.0
    %2152 = vmatpush1.msra.mxu0 0.0
    %2153 = vmatprep.subr.mxu0 0.0
    %2154 = vmatpush1.msra.mxu0 0.0
    %2155 = vmatprep.subr.mxu0 0.0
    %2156 = vmatpush1.msra.mxu0 0.0
    %2157 = vmatprep.subr.mxu0 0.0
    %2158 = vmatpush1.msra.mxu0 0.0
    %2159 = vmatprep.subr.mxu0 0.0
    %2160 = vmatpush1.msra.mxu0 0.0
    %2161 = vmatprep.subr.mxu0 0.0
    %2162 = vmatpush1.msra.mxu0 0.0
    %2163 = vmatprep.subr.mxu0 0.0
    %2164 = vmatpush1.msra.mxu0 0.0
    %2165 = vmatprep.subr.mxu0 0.0
    %2166 = vmatpush1.msra.mxu0 0.0
    %2167 = vmatprep.subr.mxu0 0.0
    %2168 = vmatpush1.msra.mxu0 0.0
    %2169 = vmatprep.subr.mxu0 0.0
    %2170 = vmatpush1.msra.mxu0 0.0
    %2171 = vmatprep.subr.mxu0 0.0
    %2172 = vmatpush1.msra.mxu0 0.0
    %2173 = vmatprep.subr.mxu0 0.0
    %2174 = vmatpush1.msra.mxu0 0.0
    %2175 = vmatprep.subr.mxu0 0.0
    %2176 = vmatpush1.msra.mxu0 0.0
    %2177 = vmatprep.subr.mxu0 0.0
    %2178 = vmatpush1.msra.mxu0 0.0
    %2179 = vmatprep.subr.mxu0 0.0
    %2180 = vmatpush1.msra.mxu0 0.0
    %2181 = vmatprep.mubr.f32.mxu0 0.0
    %2182 = vmatmul.mubr.f32.gmra.mrb[0].mxu0 %v447
    %v2183 = vpop.f32.mrb[0].mxu0
    %v2184 = vadd.f32 %v360, %v2183
    %v2185 = vpop.f32.mrb[0].mxu0
    %2186 = vdwg.mxu0
    %v2187 = vmax.f32 %v2184, 0.0
    %v2189 = vsel %vm367, %v2187, 0
    %2191 = vmatprep.subr.mxu0 0.0
    %2192 = vmatpush1.msra.mxu0 %v2189
    %2193 = vmatprep.subr.mxu0 0.0
    %2194 = vmatpush1.msra.mxu0 0.0
    %2195 = vmatprep.subr.mxu0 0.0
    %2196 = vmatpush1.msra.mxu0 0.0
    %2197 = vmatprep.subr.mxu0 0.0
    %2198 = vmatpush1.msra.mxu0 0.0
    %2199 = vmatprep.subr.mxu0 0.0
    %2200 = vmatpush1.msra.mxu0 0.0
    %2201 = vmatprep.subr.mxu0 0.0
    %2202 = vmatpush1.msra.mxu0 0.0
    %2203 = vmatprep.subr.mxu0 0.0
    %2204 = vmatpush1.msra.mxu0 0.0
    %2205 = vmatprep.subr.mxu0 0.0
    %2206 = vmatpush1.msra.mxu0 0.0
    %2207 = vmatprep.subr.mxu0 0.0
    %2208 = vmatpush1.msra.mxu0 0.0
    %2209 = vmatprep.subr.mxu0 0.0
    %2210 = vmatpush1.msra.mxu0 0.0
    %2211 = vmatprep.subr.mxu0 0.0
    %2212 = vmatpush1.msra.mxu0 0.0
    %2213 = vmatprep.subr.mxu0 0.0
    %2214 = vmatpush1.msra.mxu0 0.0
    %2215 = vmatprep.subr.mxu0 0.0
    %2216 = vmatpush1.msra.mxu0 0.0
    %2217 = vmatprep.subr.mxu0 0.0
    %2218 = vmatpush1.msra.mxu0 0.0
    %2219 = vmatprep.subr.mxu0 0.0
    %2220 = vmatpush1.msra.mxu0 0.0
    %2221 = vmatprep.subr.mxu0 0.0
    %2222 = vmatpush1.msra.mxu0 0.0
    %2223 = vmatprep.subr.mxu0 0.0
    %2224 = vmatpush1.msra.mxu0 0.0
    %2225 = vmatprep.subr.mxu0 0.0
    %2226 = vmatpush1.msra.mxu0 0.0
    %2227 = vmatprep.subr.mxu0 0.0
    %2228 = vmatpush1.msra.mxu0 0.0
    %2229 = vmatprep.subr.mxu0 0.0
    %2230 = vmatpush1.msra.mxu0 0.0
    %2231 = vmatprep.subr.mxu0 0.0
    %2232 = vmatpush1.msra.mxu0 0.0
    %2233 = vmatprep.subr.mxu0 0.0
    %2234 = vmatpush1.msra.mxu0 0.0
    %2235 = vmatprep.subr.mxu0 0.0
    %2236 = vmatpush1.msra.mxu0 0.0
    %2237 = vmatprep.subr.mxu0 0.0
    %2238 = vmatpush1.msra.mxu0 0.0
    %2239 = vmatprep.subr.mxu0 0.0
    %2240 = vmatpush1.msra.mxu0 0.0
    %2241 = vmatprep.subr.mxu0 0.0
    %2242 = vmatpush1.msra.mxu0 0.0
    %2243 = vmatprep.subr.mxu0 0.0
    %2244 = vmatpush1.msra.mxu0 0.0
    %2245 = vmatprep.subr.mxu0 0.0
    %2246 = vmatpush1.msra.mxu0 0.0
    %2247 = vmatprep.subr.mxu0 0.0
    %2248 = vmatpush1.msra.mxu0 0.0
    %2249 = vmatprep.subr.mxu0 0.0
    %2250 = vmatpush1.msra.mxu0 0.0
    %2251 = vmatprep.subr.mxu0 0.0
    %2252 = vmatpush1.msra.mxu0 0.0
    %2253 = vmatprep.subr.mxu0 0.0
    %2254 = vmatpush1.msra.mxu0 0.0
    %2255 = vmatprep.mubr.f32.mxu0 0.0
    %2256 = vmatmul.mubr.f32.gmra.mrb[0].mxu0 %v587
    %v2257 = vpop.f32.mrb[0].mxu0
    %v2258 = vadd.f32 %v539, %v2257
    %v2259 = vpop.f32.mrb[0].mxu0
    %2260 = vmatprep.mubr.f32.mxu0 0.0
    %2261 = vmatmul.mubr.f32.gmra.mrb[0].mxu0 %v590
    %v2262 = vpop.f32.mrb[0].mxu0
    %v2263 = vadd.f32 %v541, %v2262
    %v2264 = vpop.f32.mrb[0].mxu0
    %2265 = vmatprep.mubr.f32.mxu0 0.0
    %2266 = vmatmul.mubr.f32.gmra.mrb[0].mxu0 %v593
    %v2267 = vpop.f32.mrb[0].mxu0
    %v2268 = vadd.f32 %v543, %v2267
    %v2269 = vpop.f32.mrb[0].mxu0
    %2270 = vmatprep.mubr.f32.mxu0 0.0
    %2271 = vmatmul.mubr.f32.gmra.mrb[0].mxu0 %v596
    %v2272 = vpop.f32.mrb[0].mxu0
    %v2273 = vadd.f32 %v545, %v2272
    %v2274 = vpop.f32.mrb[0].mxu0
    %2275 = vmatprep.mubr.f32.mxu0 0.0
    %2276 = vmatmul.mubr.f32.gmra.mrb[0].mxu0 %v599
    %v2277 = vpop.f32.mrb[0].mxu0
    %v2278 = vadd.f32 %v547, %v2277
    %v2279 = vpop.f32.mrb[0].mxu0
    %2280 = vmatprep.mubr.f32.mxu0 0.0
    %2281 = vmatmul.mubr.f32.gmra.mrb[0].mxu0 %v602
    %v2282 = vpop.f32.mrb[0].mxu0
    %v2283 = vadd.f32 %v549, %v2282
    %v2284 = vpop.f32.mrb[0].mxu0
    %2285 = vmatprep.mubr.f32.mxu0 0.0
    %2286 = vmatmul.mubr.f32.gmra.mrb[0].mxu0 %v605
    %v2287 = vpop.f32.mrb[0].mxu0
    %v2288 = vadd.f32 %v551, %v2287
    %v2289 = vpop.f32.mrb[0].mxu0
    %2290 = vmatprep.mubr.f32.mxu0 0.0
    %2291 = vmatmul.mubr.f32.gmra.mrb[0].mxu0 %v608
    %v2292 = vpop.f32.mrb[0].mxu0
    %v2293 = vadd.f32 %v553, %v2292
    %v2294 = vpop.f32.mrb[0].mxu0
    %2295 = vmatprep.mubr.f32.mxu0 0.0
    %2296 = vmatmul.mubr.f32.gmra.mrb[0].mxu0 %v611
    %v2297 = vpop.f32.mrb[0].mxu0
    %v2298 = vadd.f32 %v555, %v2297
    %v2299 = vpop.f32.mrb[0].mxu0
    %2300 = vmatprep.mubr.f32.mxu0 0.0
    %2301 = vmatmul.mubr.f32.gmra.mrb[0].mxu0 %v614
    %v2302 = vpop.f32.mrb[0].mxu0
    %v2303 = vadd.f32 %v557, %v2302
    %v2304 = vpop.f32.mrb[0].mxu0
    %2305 = vmatprep.mubr.f32.mxu0 0.0
    %2306 = vmatmul.mubr.f32.gmra.mrb[0].mxu0 %v617
    %v2307 = vpop.f32.mrb[0].mxu0
    %v2308 = vadd.f32 %v559, %v2307
    %v2309 = vpop.f32.mrb[0].mxu0
    %2310 = vmatprep.mubr.f32.mxu0 0.0
    %2311 = vmatmul.mubr.f32.gmra.mrb[0].mxu0 %v620
    %v2312 = vpop.f32.mrb[0].mxu0
    %v2313 = vadd.f32 %v561, %v2312
    %v2314 = vpop.f32.mrb[0].mxu0
    %2315 = vmatprep.mubr.f32.mxu0 0.0
    %2316 = vmatmul.mubr.f32.gmra.mrb[0].mxu0 %v623
    %v2317 = vpop.f32.mrb[0].mxu0
    %v2318 = vadd.f32 %v563, %v2317
    %v2319 = vpop.f32.mrb[0].mxu0
    %2320 = vmatprep.mubr.f32.mxu0 0.0
    %2321 = vmatmul.mubr.f32.gmra.mrb[0].mxu0 %v626
    %v2322 = vpop.f32.mrb[0].mxu0
    %v2323 = vadd.f32 %v565, %v2322
    %v2324 = vpop.f32.mrb[0].mxu0
    %2325 = vmatprep.mubr.f32.mxu0 0.0
    %2326 = vmatmul.mubr.f32.gmra.mrb[0].mxu0 %v629
    %v2327 = vpop.f32.mrb[0].mxu0
    %v2328 = vadd.f32 %v567, %v2327
    %v2329 = vpop.f32.mrb[0].mxu0
    %2330 = vmatprep.mubr.f32.mxu0 0.0
    %2331 = vmatmul.mubr.f32.gmra.mrb[0].mxu0 %v632
    %v2332 = vpop.f32.mrb[0].mxu0
    %v2333 = vadd.f32 %v569, %v2332
    %v2334 = vpop.f32.mrb[0].mxu0
    %2335 = vdwg.mxu0
    %v2336 = vmul.f32 %v2258, 0.5
    %v2337 = vmul.f32 %v2263, 0.5
    %v2338 = vmul.f32 %v2268, 0.5
    %v2339 = vmul.f32 %v2273, 0.5
    %v2340 = vmul.f32 %v2278, 0.5
    %v2341 = vmul.f32 %v2283, 0.5
    %v2342 = vmul.f32 %v2288, 0.5
    %v2343 = vmul.f32 %v2293, 0.5
    %v2344 = vmul.f32 %v2298, 0.5
    %v2345 = vmul.f32 %v2303, 0.5
    %v2346 = vmul.f32 %v2308, 0.5
    %v2347 = vmul.f32 %v2313, 0.5
    %v2348 = vmul.f32 %v2318, 0.5
    %v2349 = vmul.f32 %v2323, 0.5
    %v2350 = vmul.f32 %v2328, 0.5
    %v2351 = vmul.f32 %v2333, 0.5
    %v2352 = vtanh.pop %v2336
    %v2353 = vtanh.pop %v2337
    %v2354 = vtanh.pop %v2338
    %v2355 = vtanh.pop %v2339
    %v2356 = vtanh.pop %v2340
    %v2357 = vtanh.pop %v2341
    %v2358 = vtanh.pop %v2342
    %v2359 = vtanh.pop %v2343
    %v2360 = vtanh.pop %v2344
    %v2361 = vtanh.pop %v2345
    %v2362 = vtanh.pop %v2346
    %v2363 = vtanh.pop %v2347
    %v2364 = vtanh.pop %v2348
    %v2365 = vtanh.pop %v2349
    %v2366 = vtanh.pop %v2350
    %v2367 = vtanh.pop %v2351
    %v2368 = vadd.f32 %v2352, 1.0
    %v2369 = vadd.f32 %v2353, 1.0
    %v2370 = vadd.f32 %v2354, 1.0
    %v2371 = vadd.f32 %v2355, 1.0
    %v2372 = vadd.f32 %v2356, 1.0
    %v2373 = vadd.f32 %v2357, 1.0
    %v2374 = vadd.f32 %v2358, 1.0
    %v2375 = vadd.f32 %v2359, 1.0
    %v2376 = vadd.f32 %v2360, 1.0
    %v2377 = vadd.f32 %v2361, 1.0
    %v2378 = vadd.f32 %v2362, 1.0
    %v2379 = vadd.f32 %v2363, 1.0
    %v2380 = vadd.f32 %v2364, 1.0
    %v2381 = vadd.f32 %v2365, 1.0
    %v2382 = vadd.f32 %v2366, 1.0
    %v2383 = vadd.f32 %v2367, 1.0
    %v2384 = vmul.f32 %v2368, 0.5
    %v2385 = vmul.f32 %v2369, 0.5
    %v2386 = vmul.f32 %v2370, 0.5
    %v2387 = vmul.f32 %v2371, 0.5
    %v2388 = vmul.f32 %v2372, 0.5
    %v2389 = vmul.f32 %v2373, 0.5
    %v2390 = vmul.f32 %v2374, 0.5
    %v2391 = vmul.f32 %v2375, 0.5
    %v2392 = vmul.f32 %v2376, 0.5
    %v2393 = vmul.f32 %v2377, 0.5
    %v2394 = vmul.f32 %v2378, 0.5
    %v2395 = vmul.f32 %v2379, 0.5
    %v2396 = vmul.f32 %v2380, 0.5
    %v2397 = vmul.f32 %v2381, 0.5
    %v2398 = vmul.f32 %v2382, 0.5
    %v2399 = vmul.f32 %v2383, 0.5
    %s2400 = scalar_lea.vmem [#allocation19], 136
    %2401 = vst.msk [vmem:[%s2400] sm:$0xff] %vm846, %v2116
    %2402 = vst.msk [vmem:[%s2400 + $0x8] sm:$0xff] %vm846, %v2384
    %2403 = vst.msk [vmem:[%s2400 + $0x10] sm:$0xff] %vm846, %v2385
    %2404 = vst.msk [vmem:[%s2400 + $0x18] sm:$0xff] %vm846, %v2386
    %2405 = vst.msk [vmem:[%s2400 + $0x20] sm:$0xff] %vm846, %v2387
    %2406 = vst.msk [vmem:[%s2400 + $0x28] sm:$0xff] %vm846, %v2388
    %2407 = vst.msk [vmem:[%s2400 + $0x30] sm:$0xff] %vm846, %v2389
    %2408 = vst.msk [vmem:[%s2400 + $0x38] sm:$0xff] %vm846, %v2390
    %2409 = vst.msk [vmem:[%s2400 + $0x40] sm:$0xff] %vm846, %v2391
    %2410 = vst.msk [vmem:[%s2400 + $0x48] sm:$0xff] %vm846, %v2392
    %2411 = vst.msk [vmem:[%s2400 + $0x50] sm:$0xff] %vm846, %v2393
    %2412 = vst.msk [vmem:[%s2400 + $0x58] sm:$0xff] %vm846, %v2394
    %2413 = vst.msk [vmem:[%s2400 + $0x60] sm:$0xff] %vm846, %v2395
    %2414 = vst.msk [vmem:[%s2400 + $0x68] sm:$0xff] %vm846, %v2396
    %2415 = vst.msk [vmem:[%s2400 + $0x70] sm:$0xff] %vm846, %v2397
    %2416 = vst.msk [vmem:[%s2400 + $0x78] sm:$0xff] %vm846, %v2398
    %2417 = vst.msk [vmem:[%s2400 + $0x80] sm:$0xff] %vm846, %v2399
    %2419 = vset.pattern.permute.xlu0 0
    %2420 = vperm.xlu0 %2419, %v2116
    %v2421 = vpop.permute.xlu0 %2420
    %v2423 = vmul.f32 %v1963, %v2421
    %v2424 = vmul.f32 %v1964, %v2421
    %v2425 = vpack.c.bf16 %v2423, %v2423
    %v2426 = vpack.c.bf16 %v2424, %v2424
    %v2428 = vsel %vm536, %v2425, 0
    %v2431 = vsel %vm536, %v2426, 0
    %2433 = vmatprep.subr.bf16.mxu0 %v2431
    %2434 = vmatpush1.bf16.msra.mxu0 %v2428
    %2435 = vmatprep.subr.bf16.mxu0 0
    %2436 = vmatpush1.bf16.msra.mxu0 0
    %2437 = vmatprep.subr.bf16.mxu0 0
    %2438 = vmatpush1.bf16.msra.mxu0 0
    %2439 = vmatprep.subr.bf16.mxu0 0
    %2440 = vmatpush1.bf16.msra.mxu0 0
    %2441 = vmatprep.subr.bf16.mxu0 0
    %2442 = vmatpush1.bf16.msra.mxu0 0
    %2443 = vmatprep.subr.bf16.mxu0 0
    %2444 = vmatpush1.bf16.msra.mxu0 0
    %2445 = vmatprep.subr.bf16.mxu0 0
    %2446 = vmatpush1.bf16.msra.mxu0 0
    %2447 = vmatprep.subr.bf16.mxu0 0
    %2448 = vmatpush1.bf16.msra.mxu0 0
    %2449 = vmatprep.subr.bf16.mxu0 0
    %2450 = vmatpush1.bf16.msra.mxu0 0
    %2451 = vmatprep.subr.bf16.mxu0 0
    %2452 = vmatpush1.bf16.msra.mxu0 0
    %2453 = vmatprep.subr.bf16.mxu0 0
    %2454 = vmatpush1.bf16.msra.mxu0 0
    %2455 = vmatprep.subr.bf16.mxu0 0
    %2456 = vmatpush1.bf16.msra.mxu0 0
    %2457 = vmatprep.subr.bf16.mxu0 0
    %2458 = vmatpush1.bf16.msra.mxu0 0
    %2459 = vmatprep.subr.bf16.mxu0 0
    %2460 = vmatpush1.bf16.msra.mxu0 0
    %2461 = vmatprep.subr.bf16.mxu0 0
    %2462 = vmatpush1.bf16.msra.mxu0 0
    %2463 = vmatprep.subr.bf16.mxu0 0
    %2464 = vmatpush1.bf16.msra.mxu0 0
    %2465 = vmatprep.mubr.bf16.mxu0 0
    %2466 = vmatmul.mubr.bf16.gmra.mrb[0].mxu0 %v884
    %v2467 = vpop.f32.mrb[0].mxu0
    %v2468 = vadd.f32 0.0, %v2467
    %v2469 = vpop.f32.mrb[0].mxu0
    %v2470 = vadd.f32 0.0, %v2469
    %v2471 = vpop.f32.mrb[0].mxu0
    %v2472 = vadd.f32 0.0, %v2471
    %v2473 = vpop.f32.mrb[0].mxu0
    %v2474 = vadd.f32 0.0, %v2473
    %2475 = vmatprep.mubr.bf16.mxu0 0
    %2476 = vmatmul.mubr.bf16.gmra.mrb[0].mxu0 %v887
    %v2477 = vpop.f32.mrb[0].mxu0
    %v2478 = vadd.f32 0.0, %v2477
    %v2479 = vpop.f32.mrb[0].mxu0
    %v2480 = vadd.f32 0.0, %v2479
    %v2481 = vpop.f32.mrb[0].mxu0
    %v2482 = vadd.f32 0.0, %v2481
    %v2483 = vpop.f32.mrb[0].mxu0
    %v2484 = vadd.f32 0.0, %v2483
    %2485 = vdwg.mxu0
    %v2486 = vmul.f32 %v2468, %v951
    %v2487 = vmul.f32 %v2470, %v951
    %v2488 = vmul.f32 %v2472, %v956
    %v2489 = vmul.f32 %v2474, %v956
    %v2490 = vmul.f32 %v2478, %v961
    %v2491 = vmul.f32 %v2480, %v961
    %v2492 = vmul.f32 %v2482, %v966
    %v2493 = vmul.f32 %v2484, %v966
    %v2494 = vadd.f32 %v2486, %v979
    %v2495 = vadd.f32 %v2487, %v979
    %v2496 = vadd.f32 %v2488, %v984
    %v2497 = vadd.f32 %v2489, %v984
    %v2498 = vadd.f32 %v2490, %v989
    %v2499 = vadd.f32 %v2491, %v989
    %v2500 = vadd.f32 %v2492, %v994
    %v2501 = vadd.f32 %v2493, %v994
    %v2502 = vmax.f32 %v2494, 0.0
    %v2503 = vmax.f32 %v2495, 0.0
    %v2504 = vmax.f32 %v2496, 0.0
    %v2505 = vmax.f32 %v2497, 0.0
    %v2506 = vmax.f32 %v2498, 0.0
    %v2507 = vmax.f32 %v2499, 0.0
    %v2508 = vmax.f32 %v2500, 0.0
    %v2509 = vmax.f32 %v2501, 0.0
    %2511 = vset.pattern.permute.xlu0 0
    %2512 = vperm.xlu0 %2511, %v2384
    %v2513 = vpop.permute.xlu0 %2512
    %2516 = vset.pattern.permute.xlu0 0
    %2517 = vperm.xlu0 %2516, %v2385
    %v2518 = vpop.permute.xlu0 %2517
    %2521 = vset.pattern.permute.xlu0 0
    %2522 = vperm.xlu0 %2521, %v2386
    %v2523 = vpop.permute.xlu0 %2522
    %2526 = vset.pattern.permute.xlu0 0
    %2527 = vperm.xlu0 %2526, %v2387
    %v2528 = vpop.permute.xlu0 %2527
    %v2530 = vmul.f32 %v2502, %v2513
    %v2531 = vmul.f32 %v2503, %v2513
    %v2532 = vmul.f32 %v2504, %v2518
    %v2533 = vmul.f32 %v2505, %v2518
    %v2534 = vmul.f32 %v2506, %v2523
    %v2535 = vmul.f32 %v2507, %v2523
    %v2536 = vmul.f32 %v2508, %v2528
    %v2537 = vmul.f32 %v2509, %v2528
    %v2538 = vpack.c.bf16 %v2532, %v2530
    %v2539 = vpack.c.bf16 %v2533, %v2531
    %v2540 = vpack.c.bf16 %v2536, %v2534
    %v2541 = vpack.c.bf16 %v2537, %v2535
    %v2542 = vld [vmem:[#allocation15] sm:$0xf]
    %v2543 = vld [vmem:[#allocation15 + $0x4] sm:$0xf]
    %v2544 = vld [vmem:[#allocation15 + $0x8] sm:$0x1]
    %v2548 = vunpack.c.l.b16 %v2542
    %v2549 = vunpack.c.l.b16 %v2543
    %v2550 = vunpack.c.l.b16 %v2544
    %v2551 = vpack.c.b16 %v2549, %v2548
    %v2552 = vpack.c.b16 %v2550, %v2550
    %v2554 = vsel %vm1055, %v2551, 0
    %v2557 = vsel %vm1055, %v2552, 0
    %2559 = vmatprep.subr.bf16.mxu0 %v2539
    %2560 = vmatpush1.bf16.msra.mxu0 %v2538
    %2561 = vmatprep.subr.bf16.mxu0 %v2541
    %2562 = vmatpush1.bf16.msra.mxu0 %v2540
    %2563 = vmatprep.subr.bf16.mxu0 0
    %2564 = vmatpush1.bf16.msra.mxu0 0
    %2565 = vmatprep.subr.bf16.mxu0 0
    %2566 = vmatpush1.bf16.msra.mxu0 0
    %2567 = vmatprep.subr.bf16.mxu0 0
    %2568 = vmatpush1.bf16.msra.mxu0 0
    %2569 = vmatprep.subr.bf16.mxu0 0
    %2570 = vmatpush1.bf16.msra.mxu0 0
    %2571 = vmatprep.subr.bf16.mxu0 0
    %2572 = vmatpush1.bf16.msra.mxu0 0
    %2573 = vmatprep.subr.bf16.mxu0 0
    %2574 = vmatpush1.bf16.msra.mxu0 0
    %2575 = vmatprep.subr.bf16.mxu0 0
    %2576 = vmatpush1.bf16.msra.mxu0 0
    %2577 = vmatprep.subr.bf16.mxu0 0
    %2578 = vmatpush1.bf16.msra.mxu0 0
    %2579 = vmatprep.subr.bf16.mxu0 0
    %2580 = vmatpush1.bf16.msra.mxu0 0
    %2581 = vmatprep.subr.bf16.mxu0 0
    %2582 = vmatpush1.bf16.msra.mxu0 0
    %2583 = vmatprep.subr.bf16.mxu0 0
    %2584 = vmatpush1.bf16.msra.mxu0 0
    %2585 = vmatprep.subr.bf16.mxu0 0
    %2586 = vmatpush1.bf16.msra.mxu0 0
    %2587 = vmatprep.subr.bf16.mxu0 0
    %2588 = vmatpush1.bf16.msra.mxu0 0
    %2589 = vmatprep.subr.bf16.mxu0 0
    %2590 = vmatpush1.bf16.msra.mxu0 0
    %2591 = vmatprep.mubr.bf16.mxu0 0
    %2592 = vmatmul.mubr.bf16.gmra.mrb[0].mxu0 %v2554
    %v2593 = vpop.f32.mrb[0].mxu0
    %v2594 = vadd.f32 0.0, %v2593
    %v2595 = vpop.f32.mrb[0].mxu0
    %v2596 = vadd.f32 0.0, %v2595
    %v2597 = vpop.f32.mrb[0].mxu0
    %v2598 = vadd.f32 0.0, %v2597
    %v2599 = vpop.f32.mrb[0].mxu0
    %v2600 = vadd.f32 0.0, %v2599
    %2601 = vmatprep.mubr.bf16.mxu0 0
    %2602 = vmatmul.mubr.bf16.gmra.mrb[0].mxu0 %v2557
    %v2603 = vpop.f32.mrb[0].mxu0
    %v2604 = vadd.f32 0.0, %v2603
    %v2605 = vpop.f32.mrb[0].mxu0
    %v2606 = vadd.f32 0.0, %v2605
    %v2607 = vpop.f32.mrb[0].mxu0
    %v2608 = vpop.f32.mrb[0].mxu0
    %2609 = vdwg.mxu0
    %2610 = vrot.lane.b32.xlu0 %v2594, 17
    %v2611 = vpop.permute.xlu0 %2610
    %2612 = vrot.lane.b32.xlu0 %v2596, 17
    %v2613 = vpop.permute.xlu0 %2612
    %v2614 = vsel %vm1119, %v2611, %v2613
    %v2615 = vsel %vm1119, %v2613, %v2611
    %v2616 = vmul.f32 %v2615, %v1125
    %v2617 = vmul.f32 %v2614, %v1129
    %v2618 = vadd.f32 %v2616, 0.0
    %v2619 = vadd.f32 %v2617, 0.0
    %v2622 = vrot.slane %v2594, 2
    %v2623 = vrot.slane %v2596, 2
    %2626 = vrot.lane.b32.xlu0 %v2622, 16
    %v2627 = vpop.permute.xlu0 %2626
    %2628 = vrot.lane.b32.xlu0 %v2623, 16
    %v2629 = vpop.permute.xlu0 %2628
    %v2630 = vsel %vm1144, %v2627, %v2629
    %v2631 = vsel %vm1144, %v2629, %v2627
    %v2632 = vmul.f32 %v2631, %v1150
    %v2633 = vmul.f32 %v2630, %v1154
    %v2634 = vadd.f32 %v2618, %v2632
    %v2635 = vadd.f32 %v2619, %v2633
    %v2636 = vrot.slane %v2594, 4
    %v2637 = vrot.slane %v2596, 4
    %2640 = vrot.lane.b32.xlu0 %v2636, 15
    %v2641 = vpop.permute.xlu0 %2640
    %2642 = vrot.lane.b32.xlu0 %v2637, 15
    %v2643 = vpop.permute.xlu0 %2642
    %v2644 = vsel %vm1167, %v2641, %v2643
    %v2645 = vsel %vm1167, %v2643, %v2641
    %v2646 = vmul.f32 %v2645, %v1173
    %v2647 = vmul.f32 %v2644, %v1177
    %v2648 = vadd.f32 %v2634, %v2646
    %v2649 = vadd.f32 %v2635, %v2647
    %v2650 = vrot.slane %v2594, 6
    %v2651 = vrot.slane %v2596, 6
    %2654 = vrot.lane.b32.xlu0 %v2650, 1
    %v2655 = vpop.permute.xlu0 %2654
    %2656 = vrot.lane.b32.xlu0 %v2651, 1
    %v2657 = vpop.permute.xlu0 %2656
    %v2658 = vsel %vm1190, %v2655, %v2657
    %v2659 = vsel %vm1190, %v2657, %v2655
    %v2660 = vmul.f32 %v2659, %v1196
    %v2661 = vmul.f32 %v2658, %v1200
    %v2662 = vadd.f32 %v2648, %v2660
    %v2663 = vadd.f32 %v2649, %v2661
    %v2664 = vadd.f32 %v2662, %v2598
    %v2665 = vadd.f32 %v2663, %v2600
    %v2668 = vrot.slane %v2598, 2
    %v2669 = vrot.slane %v2600, 2
    %2672 = vrot.lane.b32.xlu0 %v2668, 127
    %v2673 = vpop.permute.xlu0 %2672
    %2674 = vrot.lane.b32.xlu0 %v2669, 127
    %v2675 = vpop.permute.xlu0 %2674
    %v2676 = vsel %vm1217, %v2673, %v2675
    %v2677 = vsel %vm1217, %v2675, %v2673
    %v2678 = vmul.f32 %v2676, %v1223
    %v2679 = vmul.f32 %v2677, %v1227
    %v2680 = vadd.f32 %v2664, %v2678
    %v2681 = vadd.f32 %v2665, %v2679
    %v2682 = vrot.slane %v2598, 4
    %v2683 = vrot.slane %v2600, 4
    %2686 = vrot.lane.b32.xlu0 %v2682, 113
    %v2687 = vpop.permute.xlu0 %2686
    %2688 = vrot.lane.b32.xlu0 %v2683, 113
    %v2689 = vpop.permute.xlu0 %2688
    %v2690 = vsel %vm1240, %v2687, %v2689
    %v2691 = vsel %vm1240, %v2689, %v2687
    %v2692 = vmul.f32 %v2690, %v1246
    %v2693 = vmul.f32 %v2691, %v1250
    %v2694 = vadd.f32 %v2680, %v2692
    %v2695 = vadd.f32 %v2681, %v2693
    %v2696 = vrot.slane %v2598, 6
    %v2697 = vrot.slane %v2600, 6
    %2700 = vrot.lane.b32.xlu0 %v2696, 112
    %v2701 = vpop.permute.xlu0 %2700
    %2702 = vrot.lane.b32.xlu0 %v2697, 112
    %v2703 = vpop.permute.xlu0 %2702
    %v2704 = vsel %vm1263, %v2701, %v2703
    %v2705 = vsel %vm1263, %v2703, %v2701
    %v2706 = vmul.f32 %v2704, %v1269
    %v2707 = vmul.f32 %v2705, %v1273
    %v2708 = vadd.f32 %v2694, %v2706
    %v2709 = vadd.f32 %v2695, %v2707
    %2710 = vrot.lane.b32.xlu0 %v2604, 111
    %v2711 = vpop.permute.xlu0 %2710
    %2712 = vrot.lane.b32.xlu0 %v2606, 111
    %v2713 = vpop.permute.xlu0 %2712
    %v2714 = vsel %vm1282, %v2711, %v2713
    %v2715 = vsel %vm1282, %v2713, %v2711
    %v2716 = vmul.f32 %v2714, %v1288
    %v2717 = vmul.f32 %v2715, %v1292
    %v2718 = vadd.f32 %v2708, %v2716
    %v2719 = vadd.f32 %v2709, %v2717
    %s2720 = scalar_lea.vmem [#allocation18], 32
    %2721 = vst [vmem:[%s2720 + $0x10] sm:$0x3] %v2718
    %2722 = vst [vmem:[%s2720 + $0x18] sm:$0x3] %v2719
    %2724 = vset.pattern.permute.xlu0 0
    %2725 = vperm.xlu0 %2724, %v2388
    %v2726 = vpop.permute.xlu0 %2725
    %2729 = vset.pattern.permute.xlu0 0
    %2730 = vperm.xlu0 %2729, %v2389
    %v2731 = vpop.permute.xlu0 %2730
    %2734 = vset.pattern.permute.xlu0 0
    %2735 = vperm.xlu0 %2734, %v2390
    %v2736 = vpop.permute.xlu0 %2735
    %2739 = vset.pattern.permute.xlu0 0
    %2740 = vperm.xlu0 %2739, %v2391
    %v2741 = vpop.permute.xlu0 %2740
    %v2743 = vmul.f32 %v2502, %v2726
    %v2744 = vmul.f32 %v2503, %v2726
    %v2745 = vmul.f32 %v2504, %v2731
    %v2746 = vmul.f32 %v2505, %v2731
    %v2747 = vmul.f32 %v2506, %v2736
    %v2748 = vmul.f32 %v2507, %v2736
    %v2749 = vmul.f32 %v2508, %v2741
    %v2750 = vmul.f32 %v2509, %v2741
    %v2751 = vpack.c.bf16 %v2745, %v2743
    %v2752 = vpack.c.bf16 %v2746, %v2744
    %v2753 = vpack.c.bf16 %v2749, %v2747
    %v2754 = vpack.c.bf16 %v2750, %v2748
    %v2755 = vld [vmem:[%s1331] sm:$0xf]
    %v2756 = vld [vmem:[%s1331 + $0x4] sm:$0xf]
    %v2757 = vld [vmem:[%s1331 + $0x8] sm:$0x1]
    %v2761 = vunpack.c.l.b16 %v2755
    %v2762 = vunpack.c.l.b16 %v2756
    %v2763 = vunpack.c.l.b16 %v2757
    %v2764 = vpack.c.b16 %v2762, %v2761
    %v2765 = vpack.c.b16 %v2763, %v2763
    %v2767 = vsel %vm1055, %v2764, 0
    %v2770 = vsel %vm1055, %v2765, 0
    %2772 = vmatprep.subr.bf16.mxu0 %v2752
    %2773 = vmatpush1.bf16.msra.mxu0 %v2751
    %2774 = vmatprep.subr.bf16.mxu0 %v2754
    %2775 = vmatpush1.bf16.msra.mxu0 %v2753
    %2776 = vmatprep.subr.bf16.mxu0 0
    %2777 = vmatpush1.bf16.msra.mxu0 0
    %2778 = vmatprep.subr.bf16.mxu0 0
    %2779 = vmatpush1.bf16.msra.mxu0 0
    %2780 = vmatprep.subr.bf16.mxu0 0
    %2781 = vmatpush1.bf16.msra.mxu0 0
    %2782 = vmatprep.subr.bf16.mxu0 0
    %2783 = vmatpush1.bf16.msra.mxu0 0
    %2784 = vmatprep.subr.bf16.mxu0 0
    %2785 = vmatpush1.bf16.msra.mxu0 0
    %2786 = vmatprep.subr.bf16.mxu0 0
    %2787 = vmatpush1.bf16.msra.mxu0 0
    %2788 = vmatprep.subr.bf16.mxu0 0
    %2789 = vmatpush1.bf16.msra.mxu0 0
    %2790 = vmatprep.subr.bf16.mxu0 0
    %2791 = vmatpush1.bf16.msra.mxu0 0
    %2792 = vmatprep.subr.bf16.mxu0 0
    %2793 = vmatpush1.bf16.msra.mxu0 0
    %2794 = vmatprep.subr.bf16.mxu0 0
    %2795 = vmatpush1.bf16.msra.mxu0 0
    %2796 = vmatprep.subr.bf16.mxu0 0
    %2797 = vmatpush1.bf16.msra.mxu0 0
    %2798 = vmatprep.subr.bf16.mxu0 0
    %2799 = vmatpush1.bf16.msra.mxu0 0
    %2800 = vmatprep.subr.bf16.mxu0 0
    %2801 = vmatpush1.bf16.msra.mxu0 0
    %2802 = vmatprep.subr.bf16.mxu0 0
    %2803 = vmatpush1.bf16.msra.mxu0 0
    %2804 = vmatprep.mubr.bf16.mxu0 0
    %2805 = vmatmul.mubr.bf16.gmra.mrb[0].mxu0 %v2767
    %v2806 = vpop.f32.mrb[0].mxu0
    %v2807 = vadd.f32 0.0, %v2806
    %v2808 = vpop.f32.mrb[0].mxu0
    %v2809 = vadd.f32 0.0, %v2808
    %v2810 = vpop.f32.mrb[0].mxu0
    %v2811 = vadd.f32 0.0, %v2810
    %v2812 = vpop.f32.mrb[0].mxu0
    %v2813 = vadd.f32 0.0, %v2812
    %2814 = vmatprep.mubr.bf16.mxu0 0
    %2815 = vmatmul.mubr.bf16.gmra.mrb[0].mxu0 %v2770
    %v2816 = vpop.f32.mrb[0].mxu0
    %v2817 = vadd.f32 0.0, %v2816
    %v2818 = vpop.f32.mrb[0].mxu0
    %v2819 = vadd.f32 0.0, %v2818
    %v2820 = vpop.f32.mrb[0].mxu0
    %v2821 = vpop.f32.mrb[0].mxu0
    %2822 = vdwg.mxu0
    %2823 = vrot.lane.b32.xlu0 %v2807, 17
    %v2824 = vpop.permute.xlu0 %2823
    %2825 = vrot.lane.b32.xlu0 %v2809, 17
    %v2826 = vpop.permute.xlu0 %2825
    %v2827 = vsel %vm1119, %v2824, %v2826
    %v2828 = vsel %vm1119, %v2826, %v2824
    %v2829 = vmul.f32 %v2828, %v1125
    %v2830 = vmul.f32 %v2827, %v1129
    %v2831 = vadd.f32 %v2829, 0.0
    %v2832 = vadd.f32 %v2830, 0.0
    %v2835 = vrot.slane %v2807, 2
    %v2836 = vrot.slane %v2809, 2
    %2839 = vrot.lane.b32.xlu0 %v2835, 16
    %v2840 = vpop.permute.xlu0 %2839
    %2841 = vrot.lane.b32.xlu0 %v2836, 16
    %v2842 = vpop.permute.xlu0 %2841
    %v2843 = vsel %vm1144, %v2840, %v2842
    %v2844 = vsel %vm1144, %v2842, %v2840
    %v2845 = vmul.f32 %v2844, %v1150
    %v2846 = vmul.f32 %v2843, %v1154
    %v2847 = vadd.f32 %v2831, %v2845
    %v2848 = vadd.f32 %v2832, %v2846
    %v2849 = vrot.slane %v2807, 4
    %v2850 = vrot.slane %v2809, 4
    %2853 = vrot.lane.b32.xlu0 %v2849, 15
    %v2854 = vpop.permute.xlu0 %2853
    %2855 = vrot.lane.b32.xlu0 %v2850, 15
    %v2856 = vpop.permute.xlu0 %2855
    %v2857 = vsel %vm1167, %v2854, %v2856
    %v2858 = vsel %vm1167, %v2856, %v2854
    %v2859 = vmul.f32 %v2858, %v1173
    %v2860 = vmul.f32 %v2857, %v1177
    %v2861 = vadd.f32 %v2847, %v2859
    %v2862 = vadd.f32 %v2848, %v2860
    %v2863 = vrot.slane %v2807, 6
    %v2864 = vrot.slane %v2809, 6
    %2867 = vrot.lane.b32.xlu0 %v2863, 1
    %v2868 = vpop.permute.xlu0 %2867
    %2869 = vrot.lane.b32.xlu0 %v2864, 1
    %v2870 = vpop.permute.xlu0 %2869
    %v2871 = vsel %vm1190, %v2868, %v2870
    %v2872 = vsel %vm1190, %v2870, %v2868
    %v2873 = vmul.f32 %v2872, %v1196
    %v2874 = vmul.f32 %v2871, %v1200
    %v2875 = vadd.f32 %v2861, %v2873
    %v2876 = vadd.f32 %v2862, %v2874
    %v2877 = vadd.f32 %v2875, %v2811
    %v2878 = vadd.f32 %v2876, %v2813
    %v2881 = vrot.slane %v2811, 2
    %v2882 = vrot.slane %v2813, 2
    %2885 = vrot.lane.b32.xlu0 %v2881, 127
    %v2886 = vpop.permute.xlu0 %2885
    %2887 = vrot.lane.b32.xlu0 %v2882, 127
    %v2888 = vpop.permute.xlu0 %2887
    %v2889 = vsel %vm1217, %v2886, %v2888
    %v2890 = vsel %vm1217, %v2888, %v2886
    %v2891 = vmul.f32 %v2889, %v1223
    %v2892 = vmul.f32 %v2890, %v1227
    %v2893 = vadd.f32 %v2877, %v2891
    %v2894 = vadd.f32 %v2878, %v2892
    %v2895 = vrot.slane %v2811, 4
    %v2896 = vrot.slane %v2813, 4
    %2899 = vrot.lane.b32.xlu0 %v2895, 113
    %v2900 = vpop.permute.xlu0 %2899
    %2901 = vrot.lane.b32.xlu0 %v2896, 113
    %v2902 = vpop.permute.xlu0 %2901
    %v2903 = vsel %vm1240, %v2900, %v2902
    %v2904 = vsel %vm1240, %v2902, %v2900
    %v2905 = vmul.f32 %v2903, %v1246
    %v2906 = vmul.f32 %v2904, %v1250
    %v2907 = vadd.f32 %v2893, %v2905
    %v2908 = vadd.f32 %v2894, %v2906
    %v2909 = vrot.slane %v2811, 6
    %v2910 = vrot.slane %v2813, 6
    %2913 = vrot.lane.b32.xlu0 %v2909, 112
    %v2914 = vpop.permute.xlu0 %2913
    %2915 = vrot.lane.b32.xlu0 %v2910, 112
    %v2916 = vpop.permute.xlu0 %2915
    %v2917 = vsel %vm1263, %v2914, %v2916
    %v2918 = vsel %vm1263, %v2916, %v2914
    %v2919 = vmul.f32 %v2917, %v1269
    %v2920 = vmul.f32 %v2918, %v1273
    %v2921 = vadd.f32 %v2907, %v2919
    %v2922 = vadd.f32 %v2908, %v2920
    %2923 = vrot.lane.b32.xlu0 %v2817, 111
    %v2924 = vpop.permute.xlu0 %2923
    %2925 = vrot.lane.b32.xlu0 %v2819, 111
    %v2926 = vpop.permute.xlu0 %2925
    %v2927 = vsel %vm1282, %v2924, %v2926
    %v2928 = vsel %vm1282, %v2926, %v2924
    %v2929 = vmul.f32 %v2927, %v1288
    %v2930 = vmul.f32 %v2928, %v1292
    %v2931 = vadd.f32 %v2921, %v2929
    %v2932 = vadd.f32 %v2922, %v2930
    %v2935 = vrot.slane %v2931, 6
    %v2936 = vrot.slane %v2932, 6
    %2939 = vst [vmem:[%s2720 + $0x10] sm:$0xc] %v2935
    %2940 = vst [vmem:[%s2720 + $0x18] sm:$0xc] %v2936
    %2942 = vset.pattern.permute.xlu0 0
    %2943 = vperm.xlu0 %2942, %v2392
    %v2944 = vpop.permute.xlu0 %2943
    %2947 = vset.pattern.permute.xlu0 0
    %2948 = vperm.xlu0 %2947, %v2393
    %v2949 = vpop.permute.xlu0 %2948
    %2952 = vset.pattern.permute.xlu0 0
    %2953 = vperm.xlu0 %2952, %v2394
    %v2954 = vpop.permute.xlu0 %2953
    %2957 = vset.pattern.permute.xlu0 0
    %2958 = vperm.xlu0 %2957, %v2395
    %v2959 = vpop.permute.xlu0 %2958
    %v2961 = vmul.f32 %v2502, %v2944
    %v2962 = vmul.f32 %v2503, %v2944
    %v2963 = vmul.f32 %v2504, %v2949
    %v2964 = vmul.f32 %v2505, %v2949
    %v2965 = vmul.f32 %v2506, %v2954
    %v2966 = vmul.f32 %v2507, %v2954
    %v2967 = vmul.f32 %v2508, %v2959
    %v2968 = vmul.f32 %v2509, %v2959
    %v2969 = vpack.c.bf16 %v2963, %v2961
    %v2970 = vpack.c.bf16 %v2964, %v2962
    %v2971 = vpack.c.bf16 %v2967, %v2965
    %v2972 = vpack.c.bf16 %v2968, %v2966
    %v2973 = vld [vmem:[%s1550] sm:$0xf]
    %v2974 = vld [vmem:[%s1550 + $0x4] sm:$0xf]
    %v2975 = vld [vmem:[%s1550 + $0x8] sm:$0x1]
    %v2979 = vunpack.c.l.b16 %v2973
    %v2980 = vunpack.c.l.b16 %v2974
    %v2981 = vunpack.c.l.b16 %v2975
    %v2982 = vpack.c.b16 %v2980, %v2979
    %v2983 = vpack.c.b16 %v2981, %v2981
    %v2985 = vsel %vm1055, %v2982, 0
    %v2988 = vsel %vm1055, %v2983, 0
    %2990 = vmatprep.subr.bf16.mxu0 %v2970
    %2991 = vmatpush1.bf16.msra.mxu0 %v2969
    %2992 = vmatprep.subr.bf16.mxu0 %v2972
    %2993 = vmatpush1.bf16.msra.mxu0 %v2971
    %2994 = vmatprep.subr.bf16.mxu0 0
    %2995 = vmatpush1.bf16.msra.mxu0 0
    %2996 = vmatprep.subr.bf16.mxu0 0
    %2997 = vmatpush1.bf16.msra.mxu0 0
    %2998 = vmatprep.subr.bf16.mxu0 0
    %2999 = vmatpush1.bf16.msra.mxu0 0
    %3000 = vmatprep.subr.bf16.mxu0 0
    %3001 = vmatpush1.bf16.msra.mxu0 0
    %3002 = vmatprep.subr.bf16.mxu0 0
    %3003 = vmatpush1.bf16.msra.mxu0 0
    %3004 = vmatprep.subr.bf16.mxu0 0
    %3005 = vmatpush1.bf16.msra.mxu0 0
    %3006 = vmatprep.subr.bf16.mxu0 0
    %3007 = vmatpush1.bf16.msra.mxu0 0
    %3008 = vmatprep.subr.bf16.mxu0 0
    %3009 = vmatpush1.bf16.msra.mxu0 0
    %3010 = vmatprep.subr.bf16.mxu0 0
    %3011 = vmatpush1.bf16.msra.mxu0 0
    %3012 = vmatprep.subr.bf16.mxu0 0
    %3013 = vmatpush1.bf16.msra.mxu0 0
    %3014 = vmatprep.subr.bf16.mxu0 0
    %3015 = vmatpush1.bf16.msra.mxu0 0
    %3016 = vmatprep.subr.bf16.mxu0 0
    %3017 = vmatpush1.bf16.msra.mxu0 0
    %3018 = vmatprep.subr.bf16.mxu0 0
    %3019 = vmatpush1.bf16.msra.mxu0 0
    %3020 = vmatprep.subr.bf16.mxu0 0
    %3021 = vmatpush1.bf16.msra.mxu0 0
    %3022 = vmatprep.mubr.bf16.mxu0 0
    %3023 = vmatmul.mubr.bf16.gmra.mrb[0].mxu0 %v2985
    %v3024 = vpop.f32.mrb[0].mxu0
    %v3025 = vadd.f32 0.0, %v3024
    %v3026 = vpop.f32.mrb[0].mxu0
    %v3027 = vadd.f32 0.0, %v3026
    %v3028 = vpop.f32.mrb[0].mxu0
    %v3029 = vadd.f32 0.0, %v3028
    %v3030 = vpop.f32.mrb[0].mxu0
    %v3031 = vadd.f32 0.0, %v3030
    %3032 = vmatprep.mubr.bf16.mxu0 0
    %3033 = vmatmul.mubr.bf16.gmra.mrb[0].mxu0 %v2988
    %v3034 = vpop.f32.mrb[0].mxu0
    %v3035 = vadd.f32 0.0, %v3034
    %v3036 = vpop.f32.mrb[0].mxu0
    %v3037 = vadd.f32 0.0, %v3036
    %v3038 = vpop.f32.mrb[0].mxu0
    %v3039 = vpop.f32.mrb[0].mxu0
    %3040 = vdwg.mxu0
    %3041 = vrot.lane.b32.xlu0 %v3025, 17
    %v3042 = vpop.permute.xlu0 %3041
    %3043 = vrot.lane.b32.xlu0 %v3027, 17
    %v3044 = vpop.permute.xlu0 %3043
    %v3045 = vsel %vm1119, %v3042, %v3044
    %v3046 = vsel %vm1119, %v3044, %v3042
    %v3047 = vmul.f32 %v3046, %v1125
    %v3048 = vmul.f32 %v3045, %v1129
    %v3049 = vadd.f32 %v3047, 0.0
    %v3050 = vadd.f32 %v3048, 0.0
    %v3053 = vrot.slane %v3025, 2
    %v3054 = vrot.slane %v3027, 2
    %3057 = vrot.lane.b32.xlu0 %v3053, 16
    %v3058 = vpop.permute.xlu0 %3057
    %3059 = vrot.lane.b32.xlu0 %v3054, 16
    %v3060 = vpop.permute.xlu0 %3059
    %v3061 = vsel %vm1144, %v3058, %v3060
    %v3062 = vsel %vm1144, %v3060, %v3058
    %v3063 = vmul.f32 %v3062, %v1150
    %v3064 = vmul.f32 %v3061, %v1154
    %v3065 = vadd.f32 %v3049, %v3063
    %v3066 = vadd.f32 %v3050, %v3064
    %v3067 = vrot.slane %v3025, 4
    %v3068 = vrot.slane %v3027, 4
    %3071 = vrot.lane.b32.xlu0 %v3067, 15
    %v3072 = vpop.permute.xlu0 %3071
    %3073 = vrot.lane.b32.xlu0 %v3068, 15
    %v3074 = vpop.permute.xlu0 %3073
    %v3075 = vsel %vm1167, %v3072, %v3074
    %v3076 = vsel %vm1167, %v3074, %v3072
    %v3077 = vmul.f32 %v3076, %v1173
    %v3078 = vmul.f32 %v3075, %v1177
    %v3079 = vadd.f32 %v3065, %v3077
    %v3080 = vadd.f32 %v3066, %v3078
    %v3081 = vrot.slane %v3025, 6
    %v3082 = vrot.slane %v3027, 6
    %3085 = vrot.lane.b32.xlu0 %v3081, 1
    %v3086 = vpop.permute.xlu0 %3085
    %3087 = vrot.lane.b32.xlu0 %v3082, 1
    %v3088 = vpop.permute.xlu0 %3087
    %v3089 = vsel %vm1190, %v3086, %v3088
    %v3090 = vsel %vm1190, %v3088, %v3086
    %v3091 = vmul.f32 %v3090, %v1196
    %v3092 = vmul.f32 %v3089, %v1200
    %v3093 = vadd.f32 %v3079, %v3091
    %v3094 = vadd.f32 %v3080, %v3092
    %v3095 = vadd.f32 %v3093, %v3029
    %v3096 = vadd.f32 %v3094, %v3031
    %v3099 = vrot.slane %v3029, 2
    %v3100 = vrot.slane %v3031, 2
    %3103 = vrot.lane.b32.xlu0 %v3099, 127
    %v3104 = vpop.permute.xlu0 %3103
    %3105 = vrot.lane.b32.xlu0 %v3100, 127
    %v3106 = vpop.permute.xlu0 %3105
    %v3107 = vsel %vm1217, %v3104, %v3106
    %v3108 = vsel %vm1217, %v3106, %v3104
    %v3109 = vmul.f32 %v3107, %v1223
    %v3110 = vmul.f32 %v3108, %v1227
    %v3111 = vadd.f32 %v3095, %v3109
    %v3112 = vadd.f32 %v3096, %v3110
    %v3113 = vrot.slane %v3029, 4
    %v3114 = vrot.slane %v3031, 4
    %3117 = vrot.lane.b32.xlu0 %v3113, 113
    %v3118 = vpop.permute.xlu0 %3117
    %3119 = vrot.lane.b32.xlu0 %v3114, 113
    %v3120 = vpop.permute.xlu0 %3119
    %v3121 = vsel %vm1240, %v3118, %v3120
    %v3122 = vsel %vm1240, %v3120, %v3118
    %v3123 = vmul.f32 %v3121, %v1246
    %v3124 = vmul.f32 %v3122, %v1250
    %v3125 = vadd.f32 %v3111, %v3123
    %v3126 = vadd.f32 %v3112, %v3124
    %v3127 = vrot.slane %v3029, 6
    %v3128 = vrot.slane %v3031, 6
    %3131 = vrot.lane.b32.xlu0 %v3127, 112
    %v3132 = vpop.permute.xlu0 %3131
    %3133 = vrot.lane.b32.xlu0 %v3128, 112
    %v3134 = vpop.permute.xlu0 %3133
    %v3135 = vsel %vm1263, %v3132, %v3134
    %v3136 = vsel %vm1263, %v3134, %v3132
    %v3137 = vmul.f32 %v3135, %v1269
    %v3138 = vmul.f32 %v3136, %v1273
    %v3139 = vadd.f32 %v3125, %v3137
    %v3140 = vadd.f32 %v3126, %v3138
    %3141 = vrot.lane.b32.xlu0 %v3035, 111
    %v3142 = vpop.permute.xlu0 %3141
    %3143 = vrot.lane.b32.xlu0 %v3037, 111
    %v3144 = vpop.permute.xlu0 %3143
    %v3145 = vsel %vm1282, %v3142, %v3144
    %v3146 = vsel %vm1282, %v3144, %v3142
    %v3147 = vmul.f32 %v3145, %v1288
    %v3148 = vmul.f32 %v3146, %v1292
    %v3149 = vadd.f32 %v3139, %v3147
    %v3150 = vadd.f32 %v3140, %v3148
    %v3153 = vrot.slane %v3149, 4
    %v3154 = vrot.slane %v3150, 4
    %3157 = vst [vmem:[%s2720 + $0x10] sm:$0x30] %v3153
    %3158 = vst [vmem:[%s2720 + $0x18] sm:$0x30] %v3154
    %3160 = vset.pattern.permute.xlu0 0
    %3161 = vperm.xlu0 %3160, %v2396
    %v3162 = vpop.permute.xlu0 %3161
    %3165 = vset.pattern.permute.xlu0 0
    %3166 = vperm.xlu0 %3165, %v2397
    %v3167 = vpop.permute.xlu0 %3166
    %3170 = vset.pattern.permute.xlu0 0
    %3171 = vperm.xlu0 %3170, %v2398
    %v3172 = vpop.permute.xlu0 %3171
    %3175 = vset.pattern.permute.xlu0 0
    %3176 = vperm.xlu0 %3175, %v2399
    %v3177 = vpop.permute.xlu0 %3176
    %v3179 = vmul.f32 %v2502, %v3162
    %v3180 = vmul.f32 %v2503, %v3162
    %v3181 = vmul.f32 %v2504, %v3167
    %v3182 = vmul.f32 %v2505, %v3167
    %v3183 = vmul.f32 %v2506, %v3172
    %v3184 = vmul.f32 %v2507, %v3172
    %v3185 = vmul.f32 %v2508, %v3177
    %v3186 = vmul.f32 %v2509, %v3177
    %v3187 = vpack.c.bf16 %v3181, %v3179
    %v3188 = vpack.c.bf16 %v3182, %v3180
    %v3189 = vpack.c.bf16 %v3185, %v3183
    %v3190 = vpack.c.bf16 %v3186, %v3184
    %v3191 = vld [vmem:[%s1769] sm:$0xf]
    %v3192 = vld [vmem:[%s1769 + $0x4] sm:$0xf]
    %v3193 = vld [vmem:[%s1769 + $0x8] sm:$0x1]
    %v3197 = vunpack.c.l.b16 %v3191
    %v3198 = vunpack.c.l.b16 %v3192
    %v3199 = vunpack.c.l.b16 %v3193
    %v3200 = vpack.c.b16 %v3198, %v3197
    %v3201 = vpack.c.b16 %v3199, %v3199
    %v3203 = vsel %vm1055, %v3200, 0
    %v3206 = vsel %vm1055, %v3201, 0
    %3208 = vmatprep.subr.bf16.mxu0 %v3188
    %3209 = vmatpush1.bf16.msra.mxu0 %v3187
    %3210 = vmatprep.subr.bf16.mxu0 %v3190
    %3211 = vmatpush1.bf16.msra.mxu0 %v3189
    %3212 = vmatprep.subr.bf16.mxu0 0
    %3213 = vmatpush1.bf16.msra.mxu0 0
    %3214 = vmatprep.subr.bf16.mxu0 0
    %3215 = vmatpush1.bf16.msra.mxu0 0
    %3216 = vmatprep.subr.bf16.mxu0 0
    %3217 = vmatpush1.bf16.msra.mxu0 0
    %3218 = vmatprep.subr.bf16.mxu0 0
    %3219 = vmatpush1.bf16.msra.mxu0 0
    %3220 = vmatprep.subr.bf16.mxu0 0
    %3221 = vmatpush1.bf16.msra.mxu0 0
    %3222 = vmatprep.subr.bf16.mxu0 0
    %3223 = vmatpush1.bf16.msra.mxu0 0
    %3224 = vmatprep.subr.bf16.mxu0 0
    %3225 = vmatpush1.bf16.msra.mxu0 0
    %3226 = vmatprep.subr.bf16.mxu0 0
    %3227 = vmatpush1.bf16.msra.mxu0 0
    %3228 = vmatprep.subr.bf16.mxu0 0
    %3229 = vmatpush1.bf16.msra.mxu0 0
    %3230 = vmatprep.subr.bf16.mxu0 0
    %3231 = vmatpush1.bf16.msra.mxu0 0
    %3232 = vmatprep.subr.bf16.mxu0 0
    %3233 = vmatpush1.bf16.msra.mxu0 0
    %3234 = vmatprep.subr.bf16.mxu0 0
    %3235 = vmatpush1.bf16.msra.mxu0 0
    %3236 = vmatprep.subr.bf16.mxu0 0
    %3237 = vmatpush1.bf16.msra.mxu0 0
    %3238 = vmatprep.subr.bf16.mxu0 0
    %3239 = vmatpush1.bf16.msra.mxu0 0
    %3240 = vmatprep.mubr.bf16.mxu0 0
    %3241 = vmatmul.mubr.bf16.gmra.mrb[0].mxu0 %v3203
    %v3242 = vpop.f32.mrb[0].mxu0
    %v3243 = vadd.f32 0.0, %v3242
    %v3244 = vpop.f32.mrb[0].mxu0
    %v3245 = vadd.f32 0.0, %v3244
    %v3246 = vpop.f32.mrb[0].mxu0
    %v3247 = vadd.f32 0.0, %v3246
    %v3248 = vpop.f32.mrb[0].mxu0
    %v3249 = vadd.f32 0.0, %v3248
    %3250 = vmatprep.mubr.bf16.mxu0 0
    %3251 = vmatmul.mubr.bf16.gmra.mrb[0].mxu0 %v3206
    %v3252 = vpop.f32.mrb[0].mxu0
    %v3253 = vadd.f32 0.0, %v3252
    %v3254 = vpop.f32.mrb[0].mxu0
    %v3255 = vadd.f32 0.0, %v3254
    %v3256 = vpop.f32.mrb[0].mxu0
    %v3257 = vpop.f32.mrb[0].mxu0
    %3258 = vdwg.mxu0
    %3259 = vrot.lane.b32.xlu0 %v3243, 17
    %v3260 = vpop.permute.xlu0 %3259
    %3261 = vrot.lane.b32.xlu0 %v3245, 17
    %v3262 = vpop.permute.xlu0 %3261
    %v3263 = vsel %vm1119, %v3260, %v3262
    %v3264 = vsel %vm1119, %v3262, %v3260
    %v3265 = vmul.f32 %v3264, %v1125
    %v3266 = vmul.f32 %v3263, %v1129
    %v3267 = vadd.f32 %v3265, 0.0
    %v3268 = vadd.f32 %v3266, 0.0
    %v3271 = vrot.slane %v3243, 2
    %v3272 = vrot.slane %v3245, 2
    %3275 = vrot.lane.b32.xlu0 %v3271, 16
    %v3276 = vpop.permute.xlu0 %3275
    %3277 = vrot.lane.b32.xlu0 %v3272, 16
    %v3278 = vpop.permute.xlu0 %3277
    %v3279 = vsel %vm1144, %v3276, %v3278
    %v3280 = vsel %vm1144, %v3278, %v3276
    %v3281 = vmul.f32 %v3280, %v1150
    %v3282 = vmul.f32 %v3279, %v1154
    %v3283 = vadd.f32 %v3267, %v3281
    %v3284 = vadd.f32 %v3268, %v3282
    %v3285 = vrot.slane %v3243, 4
    %v3286 = vrot.slane %v3245, 4
    %3289 = vrot.lane.b32.xlu0 %v3285, 15
    %v3290 = vpop.permute.xlu0 %3289
    %3291 = vrot.lane.b32.xlu0 %v3286, 15
    %v3292 = vpop.permute.xlu0 %3291
    %v3293 = vsel %vm1167, %v3290, %v3292
    %v3294 = vsel %vm1167, %v3292, %v3290
    %v3295 = vmul.f32 %v3294, %v1173
    %v3296 = vmul.f32 %v3293, %v1177
    %v3297 = vadd.f32 %v3283, %v3295
    %v3298 = vadd.f32 %v3284, %v3296
    %v3299 = vrot.slane %v3243, 6
    %v3300 = vrot.slane %v3245, 6
    %3303 = vrot.lane.b32.xlu0 %v3299, 1
    %v3304 = vpop.permute.xlu0 %3303
    %3305 = vrot.lane.b32.xlu0 %v3300, 1
    %v3306 = vpop.permute.xlu0 %3305
    %v3307 = vsel %vm1190, %v3304, %v3306
    %v3308 = vsel %vm1190, %v3306, %v3304
    %v3309 = vmul.f32 %v3308, %v1196
    %v3310 = vmul.f32 %v3307, %v1200
    %v3311 = vadd.f32 %v3297, %v3309
    %v3312 = vadd.f32 %v3298, %v3310
    %v3313 = vadd.f32 %v3311, %v3247
    %v3314 = vadd.f32 %v3312, %v3249
    %v3317 = vrot.slane %v3247, 2
    %v3318 = vrot.slane %v3249, 2
    %3321 = vrot.lane.b32.xlu0 %v3317, 127
    %v3322 = vpop.permute.xlu0 %3321
    %3323 = vrot.lane.b32.xlu0 %v3318, 127
    %v3324 = vpop.permute.xlu0 %3323
    %v3325 = vsel %vm1217, %v3322, %v3324
    %v3326 = vsel %vm1217, %v3324, %v3322
    %v3327 = vmul.f32 %v3325, %v1223
    %v3328 = vmul.f32 %v3326, %v1227
    %v3329 = vadd.f32 %v3313, %v3327
    %v3330 = vadd.f32 %v3314, %v3328
    %v3331 = vrot.slane %v3247, 4
    %v3332 = vrot.slane %v3249, 4
    %3335 = vrot.lane.b32.xlu0 %v3331, 113
    %v3336 = vpop.permute.xlu0 %3335
    %3337 = vrot.lane.b32.xlu0 %v3332, 113
    %v3338 = vpop.permute.xlu0 %3337
    %v3339 = vsel %vm1240, %v3336, %v3338
    %v3340 = vsel %vm1240, %v3338, %v3336
    %v3341 = vmul.f32 %v3339, %v1246
    %v3342 = vmul.f32 %v3340, %v1250
    %v3343 = vadd.f32 %v3329, %v3341
    %v3344 = vadd.f32 %v3330, %v3342
    %v3345 = vrot.slane %v3247, 6
    %v3346 = vrot.slane %v3249, 6
    %3349 = vrot.lane.b32.xlu0 %v3345, 112
    %v3350 = vpop.permute.xlu0 %3349
    %3351 = vrot.lane.b32.xlu0 %v3346, 112
    %v3352 = vpop.permute.xlu0 %3351
    %v3353 = vsel %vm1263, %v3350, %v3352
    %v3354 = vsel %vm1263, %v3352, %v3350
    %v3355 = vmul.f32 %v3353, %v1269
    %v3356 = vmul.f32 %v3354, %v1273
    %v3357 = vadd.f32 %v3343, %v3355
    %v3358 = vadd.f32 %v3344, %v3356
    %3359 = vrot.lane.b32.xlu0 %v3253, 111
    %v3360 = vpop.permute.xlu0 %3359
    %3361 = vrot.lane.b32.xlu0 %v3255, 111
    %v3362 = vpop.permute.xlu0 %3361
    %v3363 = vsel %vm1282, %v3360, %v3362
    %v3364 = vsel %vm1282, %v3362, %v3360
    %v3365 = vmul.f32 %v3363, %v1288
    %v3366 = vmul.f32 %v3364, %v1292
    %v3367 = vadd.f32 %v3357, %v3365
    %v3368 = vadd.f32 %v3358, %v3366
    %v3371 = vrot.slane %v3367, 2
    %v3372 = vrot.slane %v3368, 2
    %3375 = vst [vmem:[%s2720 + $0x10] sm:$0xc0] %v3371
    %3376 = vst [vmem:[%s2720 + $0x18] sm:$0xc0] %v3372
    %s3377 = smul.u32 8, 2
    %s3378 = smul.u32 %s3377, 1
    %s3379 = smul.u32 %s3378, 2
    %s3380 = sshll.u32 %s3379, 4
    %3381 = dma.done [#allocation2], %s3380
    // Predicated region
    $region108: #{dy_dense_layer_forward.1} parent=1 // pred_check
      _
    $region109: #{dy_dense_layer_forward.1} parent=1 // pred_check_branch
      %3383 = sbr.rel (0) target = $region111
    $region110: #{dy_dense_layer_forward.1} parent=1 // pred_region
      %s3385 = ssub.s32 1024, 1024
      %3386 = vsyncadd [#allocation5], %s3385
      %s3387 = sshll.u32 [#allocation18], 4
      %s3388 = int_to_ptr.vmem [resolvable:$true] %s3387
      %3393 = dma.vmem_to_hbm [thread:$0]  %s3388, 1024, %s9, [#allocation5], 256, 256, 16
    $region111: #{dy_dense_layer_forward.1} parent=1 // pred_fallthru
      _
    // Predicated region
    $region112: #{dy_dense_layer_forward.1} parent=1 // pred_check
      _
    $region113: #{dy_dense_layer_forward.1} parent=1 // pred_check_branch
      %3395 = sbr.rel (0) target = $region115
    $region114: #{dy_dense_layer_forward.1} parent=1 // pred_region
      %s3397 = ssub.s32 4352, 4352
      %3398 = vsyncadd [#allocation20], %s3397
      %s3399 = sshll.u32 [#allocation19], 4
      %s3400 = int_to_ptr.vmem [resolvable:$true] %s3399
      %3405 = dma.vmem_to_hbm [thread:$0]  %s3400, 4352, %s10, [#allocation20], 128, 128, 8
    $region115: #{dy_dense_layer_forward.1} parent=1 // pred_fallthru
      _
    // Predicated region
    $region116: #{dy_dense_layer_forward.1} parent=1 // pred_check
      _
    $region117: #{dy_dense_layer_forward.1} parent=1 // pred_check_branch
      %3407 = sbr.rel (0) target = $region119
    $region118: #{dy_dense_layer_forward.1} parent=1 // pred_region
      %3408 = dma.done [#allocation5], 1024
    $region119: #{dy_dense_layer_forward.1} parent=1 // pred_fallthru
      _
    // Predicated region
    $region120: #{dy_dense_layer_forward.1} parent=1 // pred_check
      _
    $region121: #{dy_dense_layer_forward.1} parent=1 // pred_check_branch
      %3410 = sbr.rel (0) target = $region123
    $region122: #{dy_dense_layer_forward.1} parent=1 // pred_region
      %3411 = dma.done [#allocation20], 4352
    $region123: #{dy_dense_layer_forward.1} parent=1 // pred_fallthru
      _
    %3412 = vsyncpa [#allocation4], 1
    %3413 = vsyncpa [#allocation7], 1
    %3414 = vsyncpa [#allocation10], 1
    %3415 = vsyncpa [#allocation13], 1
    %3416 = vsyncpa [#allocation16], 1
    %3417 = vsyncpa [#allocation5], 1
    %3418 = vsyncpa [#allocation20], 1
  %3419 = vsyncmov [#allocation2]
  %s3420 = vpop.sfrf %3419
  %p3421 = scmp.eq.s32.totalorder %s3420, 0
  %p3422 = pneg %p3421
  %3424 = shalt.err (%p3422)

</llo_original>
